<compile_context>
chip_gen: v7x
topology: tpu7x:2x2x1
jax: 0.10.0
libtpu: 0.0.40
codegen_flags: <defaults>
</compile_context>

<pallas_src>
import math

import jax
import jax.numpy as jnp
from jax import lax
from jax.experimental import pallas as pl
from jax.experimental.pallas import tpu as pltpu

# ---- small, deterministic config ----
B = 2
L = 8
D_MODEL = 32
EXPAND = 2
D_INNER = EXPAND * D_MODEL           # 64
D_STATE = 16
D_CONV = 4
DT_RANK = math.ceil(D_MODEL / 16)    # 2
N_LAYERS = 2
EPS = 1e-5
ROWS = B * L                         # 16
LANES = B * D_INNER                  # 128 (lane-dense scan state width)


def _mm_bf16(a, w):
    # (m, k) @ (k, n) -> (m, n); bf16 MXU operands, f32 accumulation.
    return jnp.dot(a.astype(jnp.bfloat16), w.astype(jnp.bfloat16),
                   preferred_element_type=jnp.float32)


def _mm_nt_bf16(a, b):
    # (m, k), (n, k) -> (m, n) == a @ b.T (B/C projections produced transposed,
    # states landing on sublanes).
    return lax.dot_general(a.astype(jnp.bfloat16), b.astype(jnp.bfloat16),
                           (((1,), (1,)), ((), ())),
                           preferred_element_type=jnp.float32)


def _rmsnorm(x, w):
    var = jnp.mean(x * x, axis=-1, keepdims=True)
    return x * lax.rsqrt(var + EPS) * w


def fused_mamba_att_kernel(x_ref, norm_w_ref, x_w_ref, z_w_ref,
                           conv_tap_ref, conv_b_ref, b_w_ref, c_w_ref,
                           dt_w_ref, dt_b_ref, A2_ref, Dp_ref, out_w_ref,
                           normf_w_ref, out_ref, y_scr):
    hid = x_ref[...]                                   # (ROWS, D_MODEL), f32
    residual = None

    for layer in range(N_LAYERS):                      # static unroll
        # ---- residual add (residual_in_fp32); layer 0 specialized ----
        residual = hid if residual is None else hid + residual

        # ---- pre-norm RMSNorm ----
        normed = _rmsnorm(residual, norm_w_ref[layer])

        # ---- in_proj split into x / z matmuls (pre-transposed weights) ----
        xc = _mm_bf16(normed, x_w_ref[layer])          # (ROWS, D_INNER)
        z = _mm_bf16(normed, z_w_ref[layer])           # (ROWS, D_INNER)

        # ---- causal depthwise conv1d: sublane roll + pre-masked tap weights.
        # conv_tap[l*D_CONV + s] = w[D_CONV-1-s] zeroed on rows with t < s, so
        # batch boundaries / left zero-padding come for free.  XLU rolls + VPU
        # mul-adds; no MXU, no O(L^2) shift matrices.
        acc = conv_b_ref[layer] + conv_tap_ref[layer * D_CONV] * xc
        for s in range(1, D_CONV):
            acc = acc + (conv_tap_ref[layer * D_CONV + s]
                         * pltpu.roll(xc, shift=s, axis=0))
        u = acc * jax.nn.sigmoid(acc)                  # SiLU, (ROWS, D_INNER)

        # ---- dt: folded (x_proj dt-rank @ dt_proj) matmul (bf16 MXU) ----
        dt = jax.nn.softplus(_mm_bf16(u, dt_w_ref[layer]) + dt_b_ref[layer])
        dtu = dt * u                                   # (ROWS, D_INNER)

        # ---- B / C projections, transposed: (D_STATE, ROWS), states on sublanes
        BmatT = _mm_nt_bf16(b_w_ref[layer], u)
        CmatT = _mm_nt_bf16(c_w_ref[layer], u)

        A2 = A2_ref[layer]                             # (D_STATE, LANES), = -exp(A_log), lane-tiled per batch
        # batches interleaved along lanes: column block b*D_INNER.. holds batch b
        dt_lane = jnp.concatenate([dt[:L], dt[L:]], axis=1)      # (L, LANES)

        # ---- hoisted per-step slabs (off the serial chain): dA_t and B_t (x) dt_t*u_t
        dA_list = [jnp.exp(dt_lane[t:t + 1, :] * A2) for t in range(L)]
        bx_list = [
            jnp.concatenate(
                [BmatT[:, t:t + 1] * dtu[t:t + 1, :],
                 BmatT[:, L + t:L + t + 1] * dtu[L + t:L + t + 1, :]], axis=1)
            for t in range(L)
        ]

        # ---- selective scan: lane-dense state (16, 128), 8 serial mul+add steps.
        # y_t rows are reduced off the carried chain and row-stored to scratch.
        h = jnp.zeros((D_STATE, LANES), jnp.float32)
        for t in range(L):
            h = dA_list[t] * h + bx_list[t]
            y_scr[pl.ds(t, 1), :] = jnp.sum(
                CmatT[:, t:t + 1] * h[:, :D_INNER], axis=0, keepdims=True)
            y_scr[pl.ds(L + t, 1), :] = jnp.sum(
                CmatT[:, L + t:L + t + 1] * h[:, D_INNER:], axis=0,
                keepdims=True)

        y = y_scr[...]                                 # (ROWS, D_INNER)
        y = y + u * Dp_ref[layer]                      # D * u skip connection
        y = y * (z * jax.nn.sigmoid(z))                # gate with SiLU(z)

        # ---- out_proj ----
        hid = _mm_bf16(y, out_w_ref[layer])            # (ROWS, D_MODEL)

    # ---- final (non-fused) add + RMSNorm ----
    residual = hid + residual
    out_ref[...] = _rmsnorm(residual, normf_w_ref[...])


def _full_spec(shape):
    nd = len(shape)
    return pl.BlockSpec(shape, lambda i, nd=nd: (0,) * nd)


def init_params(key):
    per = {k: [] for k in ('norm_w', 'x_w', 'z_w', 'conv_w', 'conv_b', 'b_w',
                           'c_w', 'dt_w', 'dt_b', 'A2', 'Dp', 'out_w')}
    for _ in range(N_LAYERS):
        key, k_in, k_conv, k_xp, k_dtw, k_dtb, k_out = jax.random.split(key, 7)
        in_w = 0.02 * jax.random.normal(k_in, (2 * D_INNER, D_MODEL), jnp.float32)
        xproj_w = 0.02 * jax.random.normal(
            k_xp, (DT_RANK + 2 * D_STATE, D_INNER), jnp.float32)
        dtproj_w = 0.1 * jax.random.normal(k_dtw, (D_INNER, DT_RANK), jnp.float32)
        # S4D-real init: A = -(1..d_state); precompute A = -exp(A_log), transposed
        # to (d_state, d_inner) and lane-tiled for both batches.
        A_log = jnp.log(jnp.broadcast_to(
            jnp.arange(1, D_STATE + 1, dtype=jnp.float32), (D_INNER, D_STATE)))
        A_T = -jnp.exp(A_log).T                              # (D_STATE, D_INNER)

        per['norm_w'].append(jnp.ones((1, D_MODEL), jnp.float32))
        per['x_w'].append(in_w[:D_INNER].T)                  # (D_MODEL, D_INNER)
        per['z_w'].append(in_w[D_INNER:].T)                  # (D_MODEL, D_INNER)
        per['conv_w'].append(
            0.1 * jax.random.normal(k_conv, (D_CONV, D_INNER), jnp.float32))
        per['conv_b'].append(jnp.zeros((1, D_INNER), jnp.float32))
        per['b_w'].append(xproj_w[DT_RANK:DT_RANK + D_STATE])    # (D_STATE, D_INNER)
        per['c_w'].append(xproj_w[DT_RANK + D_STATE:])           # (D_STATE, D_INNER)
        # fold x_proj's dt_rank rows with dt_proj into one (d_inner, d_inner) matrix
        per['dt_w'].append(xproj_w[:DT_RANK].T @ dtproj_w.T)
        # dt bias via inverse-softplus of dt in [1e-3, 1e-1] (Mamba-style init)
        per['dt_b'].append(jnp.log(jnp.expm1(
            0.001 + 0.099 * jax.random.uniform(k_dtb, (1, D_INNER), jnp.float32))))
        per['A2'].append(jnp.concatenate([A_T, A_T], axis=1))   # (D_STATE, B*D_INNER)
        per['Dp'].append(jnp.ones((1, D_INNER), jnp.float32))
        per['out_w'].append(
            (0.02 * jax.random.normal(k_out, (D_MODEL, D_INNER), jnp.float32)).T)

    params = {k: jnp.stack(v) for k, v in per.items()}
    params['norm_f_w'] = jnp.ones((1, D_MODEL), jnp.float32)

    # Pre-masked conv tap weights: tap s uses w[D_CONV-1-s], zeroed on rows with
    # (r % L) < s, so rolled-in rows from the previous batch / sequence wrap are
    # killed exactly like the causal zero padding.
    conv_w = params['conv_w']                                # (N_LAYERS, D_CONV, D_INNER)
    t_idx = jnp.arange(ROWS) % L
    taps = []
    for s in range(D_CONV):
        mask = (t_idx >= s).astype(jnp.float32)[:, None]     # (ROWS, 1)
        taps.append(conv_w[:, D_CONV - 1 - s, :][:, None, :] * mask[None])
    params['conv_tap'] = jnp.stack(taps, axis=1).reshape(
        N_LAYERS * D_CONV, ROWS, D_INNER)
    return params


@jax.jit
def mamba_att_forward(hidden_states, params):
    xf = hidden_states.reshape(ROWS, D_MODEL)
    args = (xf, params['norm_w'], params['x_w'], params['z_w'],
            params['conv_tap'], params['conv_b'], params['b_w'], params['c_w'],
            params['dt_w'], params['dt_b'], params['A2'], params['Dp'],
            params['out_w'], params['norm_f_w'])
    out = pl.pallas_call(
        fused_mamba_att_kernel,
        grid_spec=pltpu.PrefetchScalarGridSpec(
            num_scalar_prefetch=0,
            grid=(1,),
            in_specs=[_full_spec(a.shape) for a in args],
            out_specs=_full_spec((ROWS, D_MODEL)),
            scratch_shapes=[pltpu.VMEM((ROWS, D_INNER), jnp.float32)]),
        out_shape=jax.ShapeDtypeStruct((ROWS, D_MODEL), jnp.float32),
        compiler_params=pltpu.CompilerParams(
            dimension_semantics=("arbitrary",)),
    )(*args)
    return out.reshape(B, L, D_MODEL)


def mamba_att_reference(hidden_states, params):
    # Pure-JAX reference mirroring the PyTorch module semantics (explicit
    # zero-padded causal conv, per-batch row-layout scan), using the same bf16
    # matmul precision split as the kernel.
    hid = hidden_states.reshape(ROWS, D_MODEL)
    residual = None
    for layer in range(N_LAYERS):
        residual = hid if residual is None else hid + residual
        normed = _rmsnorm(residual, params['norm_w'][layer])
        xc = _mm_bf16(normed, params['x_w'][layer])
        z = _mm_bf16(normed, params['z_w'][layer])

        xc_b = xc.reshape(B, L, D_INNER)
        pad = jnp.concatenate(
            [jnp.zeros((B, D_CONV - 1, D_INNER), xc.dtype), xc_b], axis=1)
        acc = jnp.zeros((B, L, D_INNER), xc.dtype)
        for k in range(D_CONV):
            acc = acc + params['conv_w'][layer][k] * pad[:, k:k + L, :]
        acc = (acc + params['conv_b'][layer]).reshape(ROWS, D_INNER)
        u = acc * jax.nn.sigmoid(acc)

        dt = jax.nn.softplus(
            _mm_bf16(u, params['dt_w'][layer]) + params['dt_b'][layer])
        A_T = params['A2'][layer][:, :D_INNER]
        BmatT = _mm_nt_bf16(params['b_w'][layer], u)
        CmatT = _mm_nt_bf16(params['c_w'][layer], u)

        ys = []
        for b in range(B):
            h = jnp.zeros((D_STATE, D_INNER), jnp.float32)
            for t in range(L):
                r = b * L + t
                dA = jnp.exp(dt[r][None, :] * A_T)
                h = dA * h + BmatT[:, r][:, None] * (dt[r] * u[r])[None, :]
                ys.append(jnp.sum(CmatT[:, r][:, None] * h, axis=0))
        y = jnp.stack(ys, axis=0)
        y = y + u * params['Dp'][layer]
        y = y * (z * jax.nn.sigmoid(z))
        hid = _mm_bf16(y, params['out_w'][layer])
    residual = hid + residual
    return _rmsnorm(residual, params['norm_f_w']).reshape(B, L, D_MODEL)


if __name__ == "__main__":
    key = jax.random.PRNGKey(0)
    key, k_x, k_p = jax.random.split(key, 3)
    x = jax.random.normal(k_x, (B, L, D_MODEL), jnp.float32)
    params = init_params(k_p)

    out = jax.block_until_ready(mamba_att_forward(x, params))
    assert out.shape == (B, L, D_MODEL) and out.dtype == jnp.float32

    ref = jax.block_until_ready(jax.jit(mamba_att_reference)(x, params))
    err = float(jnp.max(jnp.abs(out - ref)))
    assert err < 2e-2, f"kernel/reference mismatch: max abs err {err}"
    print("KERNEL_OK")
</pallas_src>

<mosaic_0001>
module attributes {stable_mosaic.version = 11 : i64} {
  func.func @fused_mamba_att_kernel(%arg0: i32, %arg1: memref<16x32xf32, #tpu.memory_space<vmem>>, %arg2: memref<2x1x32xf32, #tpu.memory_space<vmem>>, %arg3: memref<2x32x64xf32, #tpu.memory_space<vmem>>, %arg4: memref<2x32x64xf32, #tpu.memory_space<vmem>>, %arg5: memref<8x16x64xf32, #tpu.memory_space<vmem>>, %arg6: memref<2x1x64xf32, #tpu.memory_space<vmem>>, %arg7: memref<2x16x64xf32, #tpu.memory_space<vmem>>, %arg8: memref<2x16x64xf32, #tpu.memory_space<vmem>>, %arg9: memref<2x64x64xf32, #tpu.memory_space<vmem>>, %arg10: memref<2x1x64xf32, #tpu.memory_space<vmem>>, %arg11: memref<2x16x128xf32, #tpu.memory_space<vmem>>, %arg12: memref<2x1x64xf32, #tpu.memory_space<vmem>>, %arg13: memref<2x64x32xf32, #tpu.memory_space<vmem>>, %arg14: memref<1x32xf32, #tpu.memory_space<vmem>>, %arg15: memref<16x32xf32, #tpu.memory_space<vmem>>, %arg16: memref<16x64xf32, #tpu.memory_space<vmem>>) attributes {dimension_semantics = [#tpu.dimension_semantics<arbitrary>], iteration_bounds = array<i64: 1>, scalar_prefetch = 0 : i64, scratch_operands = 1 : i64, tpu.core_type = #tpu.core_type<tc>, window_params = [{pipeline_mode = #tpu.pipeline_mode<synchronous>, transform_indices = @transform_0, window_bounds = array<i64: 16, 32>}, {pipeline_mode = #tpu.pipeline_mode<synchronous>, transform_indices = @transform_1, window_bounds = array<i64: 2, 1, 32>}, {pipeline_mode = #tpu.pipeline_mode<synchronous>, transform_indices = @transform_2, window_bounds = array<i64: 2, 32, 64>}, {pipeline_mode = #tpu.pipeline_mode<synchronous>, transform_indices = @transform_3, window_bounds = array<i64: 2, 32, 64>}, {pipeline_mode = #tpu.pipeline_mode<synchronous>, transform_indices = @transform_4, window_bounds = array<i64: 8, 16, 64>}, {pipeline_mode = #tpu.pipeline_mode<synchronous>, transform_indices = @transform_5, window_bounds = array<i64: 2, 1, 64>}, {pipeline_mode = #tpu.pipeline_mode<synchronous>, transform_indices = @transform_6, window_bounds = array<i64: 2, 16, 64>}, {pipeline_mode = #tpu.pipeline_mode<synchronous>, transform_indices = @transform_7, window_bounds = array<i64: 2, 16, 64>}, {pipeline_mode = #tpu.pipeline_mode<synchronous>, transform_indices = @transform_8, window_bounds = array<i64: 2, 64, 64>}, {pipeline_mode = #tpu.pipeline_mode<synchronous>, transform_indices = @transform_9, window_bounds = array<i64: 2, 1, 64>}, {pipeline_mode = #tpu.pipeline_mode<synchronous>, transform_indices = @transform_10, window_bounds = array<i64: 2, 16, 128>}, {pipeline_mode = #tpu.pipeline_mode<synchronous>, transform_indices = @transform_11, window_bounds = array<i64: 2, 1, 64>}, {pipeline_mode = #tpu.pipeline_mode<synchronous>, transform_indices = @transform_12, window_bounds = array<i64: 2, 64, 32>}, {pipeline_mode = #tpu.pipeline_mode<synchronous>, transform_indices = @transform_13, window_bounds = array<i64: 1, 32>}, {pipeline_mode = #tpu.pipeline_mode<synchronous>, transform_indices = @transform_14, window_bounds = array<i64: 16, 32>}]} {
    %c0 = arith.constant 0 : index
    %c0_0 = arith.constant 0 : index
    %0 = vector.load %arg1[%c0, %c0_0] : memref<16x32xf32, #tpu.memory_space<vmem>>, vector<16x32xf32>
    %c0_1 = arith.constant 0 : index
    %c0_2 = arith.constant 0 : index
    %c0_3 = arith.constant 0 : index
    %1 = vector.load %arg2[%c0_1, %c0_2, %c0_3] : memref<2x1x32xf32, #tpu.memory_space<vmem>>, vector<1x1x32xf32>
    %2 = vector.shape_cast %1 : vector<1x1x32xf32> to vector<1x32xf32>
    %3 = arith.mulf %0, %0 : vector<16x32xf32>
    %cst = arith.constant dense<0.000000e+00> : vector<16xf32>
    %4 = vector.multi_reduction <add>, %3, %cst [1] : vector<16x32xf32> to vector<16xf32>
    %5 = vector.shape_cast %4 : vector<16xf32> to vector<16x1xf32>
    %cst_4 = arith.constant 3.200000e+01 : f32
    %6 = vector.broadcast %cst_4 : f32 to vector<16x1xf32>
    %7 = arith.divf %5, %6 : vector<16x1xf32>
    %cst_5 = arith.constant 9.99999974E-6 : f32
    %8 = vector.broadcast %cst_5 : f32 to vector<16x1xf32>
    %9 = arith.addf %7, %8 : vector<16x1xf32>
    %10 = math.rsqrt %9 : vector<16x1xf32>
    %11 = vector.broadcast %10 : vector<16x1xf32> to vector<16x32xf32>
    %12 = arith.mulf %0, %11 : vector<16x32xf32>
    %13 = vector.broadcast %2 : vector<1x32xf32> to vector<16x32xf32>
    %14 = arith.mulf %12, %13 : vector<16x32xf32>
    %c0_6 = arith.constant 0 : index
    %c0_7 = arith.constant 0 : index
    %c0_8 = arith.constant 0 : index
    %15 = vector.load %arg3[%c0_6, %c0_7, %c0_8] : memref<2x32x64xf32, #tpu.memory_space<vmem>>, vector<1x32x64xf32>
    %16 = vector.shape_cast %15 : vector<1x32x64xf32> to vector<32x64xf32>
    %17 = arith.truncf %14 : vector<16x32xf32> to vector<16x32xbf16>
    %18 = arith.truncf %16 : vector<32x64xf32> to vector<32x64xbf16>
    %cst_9 = arith.constant dense<0.000000e+00> : vector<16x64xf32>
    %19 = tpu.matmul %17, %18, %cst_9 {dimension_numbers = #tpu.dot_dimension_numbers<[1], [0], [0], [1], [0, 0, 1, 1], [], []>} : vector<16x32xbf16>, vector<32x64xbf16>, vector<16x64xf32> -> vector<16x64xf32>
    %c0_10 = arith.constant 0 : index
    %c0_11 = arith.constant 0 : index
    %c0_12 = arith.constant 0 : index
    %20 = vector.load %arg4[%c0_10, %c0_11, %c0_12] : memref<2x32x64xf32, #tpu.memory_space<vmem>>, vector<1x32x64xf32>
    %21 = vector.shape_cast %20 : vector<1x32x64xf32> to vector<32x64xf32>
    %22 = arith.truncf %14 : vector<16x32xf32> to vector<16x32xbf16>
    %23 = arith.truncf %21 : vector<32x64xf32> to vector<32x64xbf16>
    %cst_13 = arith.constant dense<0.000000e+00> : vector<16x64xf32>
    %24 = tpu.matmul %22, %23, %cst_13 {dimension_numbers = #tpu.dot_dimension_numbers<[1], [0], [0], [1], [0, 0, 1, 1], [], []>} : vector<16x32xbf16>, vector<32x64xbf16>, vector<16x64xf32> -> vector<16x64xf32>
    %c0_14 = arith.constant 0 : index
    %c0_15 = arith.constant 0 : index
    %c0_16 = arith.constant 0 : index
    %25 = vector.load %arg6[%c0_14, %c0_15, %c0_16] : memref<2x1x64xf32, #tpu.memory_space<vmem>>, vector<1x1x64xf32>
    %26 = vector.shape_cast %25 : vector<1x1x64xf32> to vector<1x64xf32>
    %c0_17 = arith.constant 0 : index
    %c0_18 = arith.constant 0 : index
    %c0_19 = arith.constant 0 : index
    %27 = vector.load %arg5[%c0_17, %c0_18, %c0_19] : memref<8x16x64xf32, #tpu.memory_space<vmem>>, vector<1x16x64xf32>
    %28 = vector.shape_cast %27 : vector<1x16x64xf32> to vector<16x64xf32>
    %29 = arith.mulf %28, %19 : vector<16x64xf32>
    %30 = vector.broadcast %26 : vector<1x64xf32> to vector<16x64xf32>
    %31 = arith.addf %30, %29 : vector<16x64xf32>
    %c1 = arith.constant 1 : index
    %c0_20 = arith.constant 0 : index
    %c0_21 = arith.constant 0 : index
    %32 = vector.load %arg5[%c1, %c0_20, %c0_21] : memref<8x16x64xf32, #tpu.memory_space<vmem>>, vector<1x16x64xf32>
    %33 = vector.shape_cast %32 : vector<1x16x64xf32> to vector<16x64xf32>
    %c1_i32 = arith.constant 1 : i32
    %34 = tpu.dynamic_rotate %19 by %c1_i32 dim 0 : vector<16x64xf32>, i32 -> vector<16x64xf32>
    %35 = arith.mulf %33, %34 : vector<16x64xf32>
    %36 = arith.addf %31, %35 : vector<16x64xf32>
    %c2 = arith.constant 2 : index
    %c0_22 = arith.constant 0 : index
    %c0_23 = arith.constant 0 : index
    %37 = vector.load %arg5[%c2, %c0_22, %c0_23] : memref<8x16x64xf32, #tpu.memory_space<vmem>>, vector<1x16x64xf32>
    %38 = vector.shape_cast %37 : vector<1x16x64xf32> to vector<16x64xf32>
    %c2_i32 = arith.constant 2 : i32
    %39 = tpu.dynamic_rotate %19 by %c2_i32 dim 0 : vector<16x64xf32>, i32 -> vector<16x64xf32>
    %40 = arith.mulf %38, %39 : vector<16x64xf32>
    %41 = arith.addf %36, %40 : vector<16x64xf32>
    %c3 = arith.constant 3 : index
    %c0_24 = arith.constant 0 : index
    %c0_25 = arith.constant 0 : index
    %42 = vector.load %arg5[%c3, %c0_24, %c0_25] : memref<8x16x64xf32, #tpu.memory_space<vmem>>, vector<1x16x64xf32>
    %43 = vector.shape_cast %42 : vector<1x16x64xf32> to vector<16x64xf32>
    %c3_i32 = arith.constant 3 : i32
    %44 = tpu.dynamic_rotate %19 by %c3_i32 dim 0 : vector<16x64xf32>, i32 -> vector<16x64xf32>
    %45 = arith.mulf %43, %44 : vector<16x64xf32>
    %46 = arith.addf %41, %45 : vector<16x64xf32>
    %47 = arith.negf %46 : vector<16x64xf32>
    %48 = math.exp %47 : vector<16x64xf32>
    %cst_26 = arith.constant 1.000000e+00 : f32
    %49 = vector.broadcast %cst_26 : f32 to vector<16x64xf32>
    %50 = arith.addf %49, %48 : vector<16x64xf32>
    %51 = arith.divf %49, %50 : vector<16x64xf32>
    %52 = arith.mulf %46, %51 : vector<16x64xf32>
    %c0_27 = arith.constant 0 : index
    %c0_28 = arith.constant 0 : index
    %c0_29 = arith.constant 0 : index
    %53 = vector.load %arg9[%c0_27, %c0_28, %c0_29] : memref<2x64x64xf32, #tpu.memory_space<vmem>>, vector<1x64x64xf32>
    %54 = vector.shape_cast %53 : vector<1x64x64xf32> to vector<64x64xf32>
    %55 = arith.truncf %52 : vector<16x64xf32> to vector<16x64xbf16>
    %56 = arith.truncf %54 : vector<64x64xf32> to vector<64x64xbf16>
    %cst_30 = arith.constant dense<0.000000e+00> : vector<16x64xf32>
    %57 = tpu.matmul %55, %56, %cst_30 {dimension_numbers = #tpu.dot_dimension_numbers<[1], [0], [0], [1], [0, 0, 1, 1], [], []>} : vector<16x64xbf16>, vector<64x64xbf16>, vector<16x64xf32> -> vector<16x64xf32>
    %c0_31 = arith.constant 0 : index
    %c0_32 = arith.constant 0 : index
    %c0_33 = arith.constant 0 : index
    %58 = vector.load %arg10[%c0_31, %c0_32, %c0_33] : memref<2x1x64xf32, #tpu.memory_space<vmem>>, vector<1x1x64xf32>
    %59 = vector.shape_cast %58 : vector<1x1x64xf32> to vector<1x64xf32>
    %60 = vector.broadcast %59 : vector<1x64xf32> to vector<16x64xf32>
    %61 = arith.addf %57, %60 : vector<16x64xf32>
    %cst_34 = arith.constant 0.000000e+00 : f32
    %62 = vector.broadcast %cst_34 : f32 to vector<16x64xf32>
    %63 = arith.maximumf %61, %62 : vector<16x64xf32>
    %64 = vector.broadcast %cst_34 : f32 to vector<16x64xf32>
    %65 = arith.subf %61, %64 : vector<16x64xf32>
    %66 = arith.cmpf one, %65, %65 : vector<16x64xf32>
    %67 = vector.broadcast %cst_34 : f32 to vector<16x64xf32>
    %68 = arith.addf %61, %67 : vector<16x64xf32>
    %69 = math.absf %65 : vector<16x64xf32>
    %cst_35 = arith.constant 0.000000e+00 : f32
    %70 = vector.broadcast %cst_35 : f32 to vector<16x64xf32>
    %71 = arith.subf %70, %69 : vector<16x64xf32>
    %72 = math.exp %71 : vector<16x64xf32>
    %73 = math.log1p %72 : vector<16x64xf32>
    %74 = arith.addf %63, %73 : vector<16x64xf32>
    %75 = arith.select %66, %68, %74 : vector<16x64xi1>, vector<16x64xf32>
    %76 = arith.mulf %75, %52 : vector<16x64xf32>
    %c0_36 = arith.constant 0 : index
    %c0_37 = arith.constant 0 : index
    %c0_38 = arith.constant 0 : index
    %77 = vector.load %arg7[%c0_36, %c0_37, %c0_38] : memref<2x16x64xf32, #tpu.memory_space<vmem>>, vector<1x16x64xf32>
    %78 = vector.shape_cast %77 : vector<1x16x64xf32> to vector<16x64xf32>
    %79 = arith.truncf %78 : vector<16x64xf32> to vector<16x64xbf16>
    %80 = arith.truncf %52 : vector<16x64xf32> to vector<16x64xbf16>
    %cst_39 = arith.constant dense<0.000000e+00> : vector<16x16xf32>
    %81 = tpu.matmul %79, %80, %cst_39 {dimension_numbers = #tpu.dot_dimension_numbers<[1], [1], [0], [0], [0, 0, 1, 0], [], []>} : vector<16x64xbf16>, vector<16x64xbf16>, vector<16x16xf32> -> vector<16x16xf32>
    %c0_40 = arith.constant 0 : index
    %c0_41 = arith.constant 0 : index
    %c0_42 = arith.constant 0 : index
    %82 = vector.load %arg8[%c0_40, %c0_41, %c0_42] : memref<2x16x64xf32, #tpu.memory_space<vmem>>, vector<1x16x64xf32>
    %83 = vector.shape_cast %82 : vector<1x16x64xf32> to vector<16x64xf32>
    %84 = arith.truncf %83 : vector<16x64xf32> to vector<16x64xbf16>
    %85 = arith.truncf %52 : vector<16x64xf32> to vector<16x64xbf16>
    %cst_43 = arith.constant dense<0.000000e+00> : vector<16x16xf32>
    %86 = tpu.matmul %84, %85, %cst_43 {dimension_numbers = #tpu.dot_dimension_numbers<[1], [1], [0], [0], [0, 0, 1, 0], [], []>} : vector<16x64xbf16>, vector<16x64xbf16>, vector<16x16xf32> -> vector<16x16xf32>
    %c0_44 = arith.constant 0 : index
    %c0_45 = arith.constant 0 : index
    %c0_46 = arith.constant 0 : index
    %87 = vector.load %arg11[%c0_44, %c0_45, %c0_46] : memref<2x16x128xf32, #tpu.memory_space<vmem>>, vector<1x16x128xf32>
    %88 = vector.shape_cast %87 : vector<1x16x128xf32> to vector<16x128xf32>
    %89 = vector.extract_strided_slice %75 {offsets = [0, 0], sizes = [8, 64], strides = [1, 1]} : vector<16x64xf32> to vector<8x64xf32>
    %90 = vector.extract_strided_slice %75 {offsets = [8, 0], sizes = [8, 64], strides = [1, 1]} : vector<16x64xf32> to vector<8x64xf32>
    %91 = tpu.concatenate %89, %90 in 1 : vector<8x64xf32>, vector<8x64xf32> -> vector<8x128xf32>
    %92 = vector.extract_strided_slice %91 {offsets = [0, 0], sizes = [1, 128], strides = [1, 1]} : vector<8x128xf32> to vector<1x128xf32>
    %93 = vector.broadcast %92 : vector<1x128xf32> to vector<16x128xf32>
    %94 = arith.mulf %93, %88 : vector<16x128xf32>
    %95 = math.exp %94 : vector<16x128xf32>
    %96 = vector.extract_strided_slice %91 {offsets = [1, 0], sizes = [1, 128], strides = [1, 1]} : vector<8x128xf32> to vector<1x128xf32>
    %97 = vector.broadcast %96 : vector<1x128xf32> to vector<16x128xf32>
    %98 = arith.mulf %97, %88 : vector<16x128xf32>
    %99 = math.exp %98 : vector<16x128xf32>
    %100 = vector.extract_strided_slice %91 {offsets = [2, 0], sizes = [1, 128], strides = [1, 1]} : vector<8x128xf32> to vector<1x128xf32>
    %101 = vector.broadcast %100 : vector<1x128xf32> to vector<16x128xf32>
    %102 = arith.mulf %101, %88 : vector<16x128xf32>
    %103 = math.exp %102 : vector<16x128xf32>
    %104 = vector.extract_strided_slice %91 {offsets = [3, 0], sizes = [1, 128], strides = [1, 1]} : vector<8x128xf32> to vector<1x128xf32>
    %105 = vector.broadcast %104 : vector<1x128xf32> to vector<16x128xf32>
    %106 = arith.mulf %105, %88 : vector<16x128xf32>
    %107 = math.exp %106 : vector<16x128xf32>
    %108 = vector.extract_strided_slice %91 {offsets = [4, 0], sizes = [1, 128], strides = [1, 1]} : vector<8x128xf32> to vector<1x128xf32>
    %109 = vector.broadcast %108 : vector<1x128xf32> to vector<16x128xf32>
    %110 = arith.mulf %109, %88 : vector<16x128xf32>
    %111 = math.exp %110 : vector<16x128xf32>
    %112 = vector.extract_strided_slice %91 {offsets = [5, 0], sizes = [1, 128], strides = [1, 1]} : vector<8x128xf32> to vector<1x128xf32>
    %113 = vector.broadcast %112 : vector<1x128xf32> to vector<16x128xf32>
    %114 = arith.mulf %113, %88 : vector<16x128xf32>
    %115 = math.exp %114 : vector<16x128xf32>
    %116 = vector.extract_strided_slice %91 {offsets = [6, 0], sizes = [1, 128], strides = [1, 1]} : vector<8x128xf32> to vector<1x128xf32>
    %117 = vector.broadcast %116 : vector<1x128xf32> to vector<16x128xf32>
    %118 = arith.mulf %117, %88 : vector<16x128xf32>
    %119 = math.exp %118 : vector<16x128xf32>
    %120 = vector.extract_strided_slice %91 {offsets = [7, 0], sizes = [1, 128], strides = [1, 1]} : vector<8x128xf32> to vector<1x128xf32>
    %121 = vector.broadcast %120 : vector<1x128xf32> to vector<16x128xf32>
    %122 = arith.mulf %121, %88 : vector<16x128xf32>
    %123 = math.exp %122 : vector<16x128xf32>
    %124 = vector.extract_strided_slice %81 {offsets = [0, 0], sizes = [16, 1], strides = [1, 1]} : vector<16x16xf32> to vector<16x1xf32>
    %125 = vector.extract_strided_slice %76 {offsets = [0, 0], sizes = [1, 64], strides = [1, 1]} : vector<16x64xf32> to vector<1x64xf32>
    %126 = vector.broadcast %124 : vector<16x1xf32> to vector<16x64xf32>
    %127 = vector.broadcast %125 : vector<1x64xf32> to vector<16x64xf32>
    %128 = arith.mulf %126, %127 : vector<16x64xf32>
    %129 = vector.extract_strided_slice %81 {offsets = [0, 8], sizes = [16, 1], strides = [1, 1]} : vector<16x16xf32> to vector<16x1xf32>
    %130 = vector.extract_strided_slice %76 {offsets = [8, 0], sizes = [1, 64], strides = [1, 1]} : vector<16x64xf32> to vector<1x64xf32>
    %131 = vector.broadcast %129 : vector<16x1xf32> to vector<16x64xf32>
    %132 = vector.broadcast %130 : vector<1x64xf32> to vector<16x64xf32>
    %133 = arith.mulf %131, %132 : vector<16x64xf32>
    %134 = tpu.concatenate %128, %133 in 1 : vector<16x64xf32>, vector<16x64xf32> -> vector<16x128xf32>
    %135 = vector.extract_strided_slice %81 {offsets = [0, 1], sizes = [16, 1], strides = [1, 1]} : vector<16x16xf32> to vector<16x1xf32>
    %136 = vector.extract_strided_slice %76 {offsets = [1, 0], sizes = [1, 64], strides = [1, 1]} : vector<16x64xf32> to vector<1x64xf32>
    %137 = vector.broadcast %135 : vector<16x1xf32> to vector<16x64xf32>
    %138 = vector.broadcast %136 : vector<1x64xf32> to vector<16x64xf32>
    %139 = arith.mulf %137, %138 : vector<16x64xf32>
    %140 = vector.extract_strided_slice %81 {offsets = [0, 9], sizes = [16, 1], strides = [1, 1]} : vector<16x16xf32> to vector<16x1xf32>
    %141 = vector.extract_strided_slice %76 {offsets = [9, 0], sizes = [1, 64], strides = [1, 1]} : vector<16x64xf32> to vector<1x64xf32>
    %142 = vector.broadcast %140 : vector<16x1xf32> to vector<16x64xf32>
    %143 = vector.broadcast %141 : vector<1x64xf32> to vector<16x64xf32>
    %144 = arith.mulf %142, %143 : vector<16x64xf32>
    %145 = tpu.concatenate %139, %144 in 1 : vector<16x64xf32>, vector<16x64xf32> -> vector<16x128xf32>
    %146 = vector.extract_strided_slice %81 {offsets = [0, 2], sizes = [16, 1], strides = [1, 1]} : vector<16x16xf32> to vector<16x1xf32>
    %147 = vector.extract_strided_slice %76 {offsets = [2, 0], sizes = [1, 64], strides = [1, 1]} : vector<16x64xf32> to vector<1x64xf32>
    %148 = vector.broadcast %146 : vector<16x1xf32> to vector<16x64xf32>
    %149 = vector.broadcast %147 : vector<1x64xf32> to vector<16x64xf32>
    %150 = arith.mulf %148, %149 : vector<16x64xf32>
    %151 = vector.extract_strided_slice %81 {offsets = [0, 10], sizes = [16, 1], strides = [1, 1]} : vector<16x16xf32> to vector<16x1xf32>
    %152 = vector.extract_strided_slice %76 {offsets = [10, 0], sizes = [1, 64], strides = [1, 1]} : vector<16x64xf32> to vector<1x64xf32>
    %153 = vector.broadcast %151 : vector<16x1xf32> to vector<16x64xf32>
    %154 = vector.broadcast %152 : vector<1x64xf32> to vector<16x64xf32>
    %155 = arith.mulf %153, %154 : vector<16x64xf32>
    %156 = tpu.concatenate %150, %155 in 1 : vector<16x64xf32>, vector<16x64xf32> -> vector<16x128xf32>
    %157 = vector.extract_strided_slice %81 {offsets = [0, 3], sizes = [16, 1], strides = [1, 1]} : vector<16x16xf32> to vector<16x1xf32>
    %158 = vector.extract_strided_slice %76 {offsets = [3, 0], sizes = [1, 64], strides = [1, 1]} : vector<16x64xf32> to vector<1x64xf32>
    %159 = vector.broadcast %157 : vector<16x1xf32> to vector<16x64xf32>
    %160 = vector.broadcast %158 : vector<1x64xf32> to vector<16x64xf32>
    %161 = arith.mulf %159, %160 : vector<16x64xf32>
    %162 = vector.extract_strided_slice %81 {offsets = [0, 11], sizes = [16, 1], strides = [1, 1]} : vector<16x16xf32> to vector<16x1xf32>
    %163 = vector.extract_strided_slice %76 {offsets = [11, 0], sizes = [1, 64], strides = [1, 1]} : vector<16x64xf32> to vector<1x64xf32>
    %164 = vector.broadcast %162 : vector<16x1xf32> to vector<16x64xf32>
    %165 = vector.broadcast %163 : vector<1x64xf32> to vector<16x64xf32>
    %166 = arith.mulf %164, %165 : vector<16x64xf32>
    %167 = tpu.concatenate %161, %166 in 1 : vector<16x64xf32>, vector<16x64xf32> -> vector<16x128xf32>
    %168 = vector.extract_strided_slice %81 {offsets = [0, 4], sizes = [16, 1], strides = [1, 1]} : vector<16x16xf32> to vector<16x1xf32>
    %169 = vector.extract_strided_slice %76 {offsets = [4, 0], sizes = [1, 64], strides = [1, 1]} : vector<16x64xf32> to vector<1x64xf32>
    %170 = vector.broadcast %168 : vector<16x1xf32> to vector<16x64xf32>
    %171 = vector.broadcast %169 : vector<1x64xf32> to vector<16x64xf32>
    %172 = arith.mulf %170, %171 : vector<16x64xf32>
    %173 = vector.extract_strided_slice %81 {offsets = [0, 12], sizes = [16, 1], strides = [1, 1]} : vector<16x16xf32> to vector<16x1xf32>
    %174 = vector.extract_strided_slice %76 {offsets = [12, 0], sizes = [1, 64], strides = [1, 1]} : vector<16x64xf32> to vector<1x64xf32>
    %175 = vector.broadcast %173 : vector<16x1xf32> to vector<16x64xf32>
    %176 = vector.broadcast %174 : vector<1x64xf32> to vector<16x64xf32>
    %177 = arith.mulf %175, %176 : vector<16x64xf32>
    %178 = tpu.concatenate %172, %177 in 1 : vector<16x64xf32>, vector<16x64xf32> -> vector<16x128xf32>
    %179 = vector.extract_strided_slice %81 {offsets = [0, 5], sizes = [16, 1], strides = [1, 1]} : vector<16x16xf32> to vector<16x1xf32>
    %180 = vector.extract_strided_slice %76 {offsets = [5, 0], sizes = [1, 64], strides = [1, 1]} : vector<16x64xf32> to vector<1x64xf32>
    %181 = vector.broadcast %179 : vector<16x1xf32> to vector<16x64xf32>
    %182 = vector.broadcast %180 : vector<1x64xf32> to vector<16x64xf32>
    %183 = arith.mulf %181, %182 : vector<16x64xf32>
    %184 = vector.extract_strided_slice %81 {offsets = [0, 13], sizes = [16, 1], strides = [1, 1]} : vector<16x16xf32> to vector<16x1xf32>
    %185 = vector.extract_strided_slice %76 {offsets = [13, 0], sizes = [1, 64], strides = [1, 1]} : vector<16x64xf32> to vector<1x64xf32>
    %186 = vector.broadcast %184 : vector<16x1xf32> to vector<16x64xf32>
    %187 = vector.broadcast %185 : vector<1x64xf32> to vector<16x64xf32>
    %188 = arith.mulf %186, %187 : vector<16x64xf32>
    %189 = tpu.concatenate %183, %188 in 1 : vector<16x64xf32>, vector<16x64xf32> -> vector<16x128xf32>
    %190 = vector.extract_strided_slice %81 {offsets = [0, 6], sizes = [16, 1], strides = [1, 1]} : vector<16x16xf32> to vector<16x1xf32>
    %191 = vector.extract_strided_slice %76 {offsets = [6, 0], sizes = [1, 64], strides = [1, 1]} : vector<16x64xf32> to vector<1x64xf32>
    %192 = vector.broadcast %190 : vector<16x1xf32> to vector<16x64xf32>
    %193 = vector.broadcast %191 : vector<1x64xf32> to vector<16x64xf32>
    %194 = arith.mulf %192, %193 : vector<16x64xf32>
    %195 = vector.extract_strided_slice %81 {offsets = [0, 14], sizes = [16, 1], strides = [1, 1]} : vector<16x16xf32> to vector<16x1xf32>
    %196 = vector.extract_strided_slice %76 {offsets = [14, 0], sizes = [1, 64], strides = [1, 1]} : vector<16x64xf32> to vector<1x64xf32>
    %197 = vector.broadcast %195 : vector<16x1xf32> to vector<16x64xf32>
    %198 = vector.broadcast %196 : vector<1x64xf32> to vector<16x64xf32>
    %199 = arith.mulf %197, %198 : vector<16x64xf32>
    %200 = tpu.concatenate %194, %199 in 1 : vector<16x64xf32>, vector<16x64xf32> -> vector<16x128xf32>
    %201 = vector.extract_strided_slice %81 {offsets = [0, 7], sizes = [16, 1], strides = [1, 1]} : vector<16x16xf32> to vector<16x1xf32>
    %202 = vector.extract_strided_slice %76 {offsets = [7, 0], sizes = [1, 64], strides = [1, 1]} : vector<16x64xf32> to vector<1x64xf32>
    %203 = vector.broadcast %201 : vector<16x1xf32> to vector<16x64xf32>
    %204 = vector.broadcast %202 : vector<1x64xf32> to vector<16x64xf32>
    %205 = arith.mulf %203, %204 : vector<16x64xf32>
    %206 = vector.extract_strided_slice %81 {offsets = [0, 15], sizes = [16, 1], strides = [1, 1]} : vector<16x16xf32> to vector<16x1xf32>
    %207 = vector.extract_strided_slice %76 {offsets = [15, 0], sizes = [1, 64], strides = [1, 1]} : vector<16x64xf32> to vector<1x64xf32>
    %208 = vector.broadcast %206 : vector<16x1xf32> to vector<16x64xf32>
    %209 = vector.broadcast %207 : vector<1x64xf32> to vector<16x64xf32>
    %210 = arith.mulf %208, %209 : vector<16x64xf32>
    %211 = tpu.concatenate %205, %210 in 1 : vector<16x64xf32>, vector<16x64xf32> -> vector<16x128xf32>
    %cst_47 = arith.constant 0.000000e+00 : f32
    %212 = vector.broadcast %cst_47 : f32 to vector<16x128xf32>
    %213 = arith.mulf %95, %212 : vector<16x128xf32>
    %214 = arith.addf %213, %134 : vector<16x128xf32>
    %215 = vector.extract_strided_slice %86 {offsets = [0, 0], sizes = [16, 1], strides = [1, 1]} : vector<16x16xf32> to vector<16x1xf32>
    %216 = vector.extract_strided_slice %214 {offsets = [0, 0], sizes = [16, 64], strides = [1, 1]} : vector<16x128xf32> to vector<16x64xf32>
    %217 = vector.broadcast %215 : vector<16x1xf32> to vector<16x64xf32>
    %218 = arith.mulf %217, %216 : vector<16x64xf32>
    %cst_48 = arith.constant dense<0.000000e+00> : vector<64xf32>
    %219 = vector.multi_reduction <add>, %218, %cst_48 [0] : vector<16x64xf32> to vector<64xf32>
    %220 = vector.shape_cast %219 : vector<64xf32> to vector<1x64xf32>
    %c0_49 = arith.constant 0 : index
    %c0_50 = arith.constant 0 : index
    %221 = vector.load %arg16[%c0_49, %c0_50] : memref<16x64xf32, #tpu.memory_space<vmem>>, vector<1x64xf32>
    tpu.vector_store %arg16[%c0_49, %c0_50], %220 {strides = array<i32>} : memref<16x64xf32, #tpu.memory_space<vmem>>, vector<1x64xf32>,
    %222 = vector.extract_strided_slice %86 {offsets = [0, 8], sizes = [16, 1], strides = [1, 1]} : vector<16x16xf32> to vector<16x1xf32>
    %223 = vector.extract_strided_slice %214 {offsets = [0, 64], sizes = [16, 64], strides = [1, 1]} : vector<16x128xf32> to vector<16x64xf32>
    %224 = vector.broadcast %222 : vector<16x1xf32> to vector<16x64xf32>
    %225 = arith.mulf %224, %223 : vector<16x64xf32>
    %cst_51 = arith.constant dense<0.000000e+00> : vector<64xf32>
    %226 = vector.multi_reduction <add>, %225, %cst_51 [0] : vector<16x64xf32> to vector<64xf32>
    %227 = vector.shape_cast %226 : vector<64xf32> to vector<1x64xf32>
    %c8 = arith.constant 8 : index
    %c0_52 = arith.constant 0 : index
    %228 = vector.load %arg16[%c8, %c0_52] : memref<16x64xf32, #tpu.memory_space<vmem>>, vector<1x64xf32>
    tpu.vector_store %arg16[%c8, %c0_52], %227 {strides = array<i32>} : memref<16x64xf32, #tpu.memory_space<vmem>>, vector<1x64xf32>,
    %229 = arith.mulf %99, %214 : vector<16x128xf32>
    %230 = arith.addf %229, %145 : vector<16x128xf32>
    %231 = vector.extract_strided_slice %86 {offsets = [0, 1], sizes = [16, 1], strides = [1, 1]} : vector<16x16xf32> to vector<16x1xf32>
    %232 = vector.extract_strided_slice %230 {offsets = [0, 0], sizes = [16, 64], strides = [1, 1]} : vector<16x128xf32> to vector<16x64xf32>
    %233 = vector.broadcast %231 : vector<16x1xf32> to vector<16x64xf32>
    %234 = arith.mulf %233, %232 : vector<16x64xf32>
    %cst_53 = arith.constant dense<0.000000e+00> : vector<64xf32>
    %235 = vector.multi_reduction <add>, %234, %cst_53 [0] : vector<16x64xf32> to vector<64xf32>
    %236 = vector.shape_cast %235 : vector<64xf32> to vector<1x64xf32>
    %c1_54 = arith.constant 1 : index
    %c0_55 = arith.constant 0 : index
    %237 = vector.load %arg16[%c1_54, %c0_55] : memref<16x64xf32, #tpu.memory_space<vmem>>, vector<1x64xf32>
    tpu.vector_store %arg16[%c1_54, %c0_55], %236 {strides = array<i32>} : memref<16x64xf32, #tpu.memory_space<vmem>>, vector<1x64xf32>,
    %238 = vector.extract_strided_slice %86 {offsets = [0, 9], sizes = [16, 1], strides = [1, 1]} : vector<16x16xf32> to vector<16x1xf32>
    %239 = vector.extract_strided_slice %230 {offsets = [0, 64], sizes = [16, 64], strides = [1, 1]} : vector<16x128xf32> to vector<16x64xf32>
    %240 = vector.broadcast %238 : vector<16x1xf32> to vector<16x64xf32>
    %241 = arith.mulf %240, %239 : vector<16x64xf32>
    %cst_56 = arith.constant dense<0.000000e+00> : vector<64xf32>
    %242 = vector.multi_reduction <add>, %241, %cst_56 [0] : vector<16x64xf32> to vector<64xf32>
    %243 = vector.shape_cast %242 : vector<64xf32> to vector<1x64xf32>
    %c9 = arith.constant 9 : index
    %c0_57 = arith.constant 0 : index
    %244 = vector.load %arg16[%c9, %c0_57] : memref<16x64xf32, #tpu.memory_space<vmem>>, vector<1x64xf32>
    tpu.vector_store %arg16[%c9, %c0_57], %243 {strides = array<i32>} : memref<16x64xf32, #tpu.memory_space<vmem>>, vector<1x64xf32>,
    %245 = arith.mulf %103, %230 : vector<16x128xf32>
    %246 = arith.addf %245, %156 : vector<16x128xf32>
    %247 = vector.extract_strided_slice %86 {offsets = [0, 2], sizes = [16, 1], strides = [1, 1]} : vector<16x16xf32> to vector<16x1xf32>
    %248 = vector.extract_strided_slice %246 {offsets = [0, 0], sizes = [16, 64], strides = [1, 1]} : vector<16x128xf32> to vector<16x64xf32>
    %249 = vector.broadcast %247 : vector<16x1xf32> to vector<16x64xf32>
    %250 = arith.mulf %249, %248 : vector<16x64xf32>
    %cst_58 = arith.constant dense<0.000000e+00> : vector<64xf32>
    %251 = vector.multi_reduction <add>, %250, %cst_58 [0] : vector<16x64xf32> to vector<64xf32>
    %252 = vector.shape_cast %251 : vector<64xf32> to vector<1x64xf32>
    %c2_59 = arith.constant 2 : index
    %c0_60 = arith.constant 0 : index
    %253 = vector.load %arg16[%c2_59, %c0_60] : memref<16x64xf32, #tpu.memory_space<vmem>>, vector<1x64xf32>
    tpu.vector_store %arg16[%c2_59, %c0_60], %252 {strides = array<i32>} : memref<16x64xf32, #tpu.memory_space<vmem>>, vector<1x64xf32>,
    %254 = vector.extract_strided_slice %86 {offsets = [0, 10], sizes = [16, 1], strides = [1, 1]} : vector<16x16xf32> to vector<16x1xf32>
    %255 = vector.extract_strided_slice %246 {offsets = [0, 64], sizes = [16, 64], strides = [1, 1]} : vector<16x128xf32> to vector<16x64xf32>
    %256 = vector.broadcast %254 : vector<16x1xf32> to vector<16x64xf32>
    %257 = arith.mulf %256, %255 : vector<16x64xf32>
    %cst_61 = arith.constant dense<0.000000e+00> : vector<64xf32>
    %258 = vector.multi_reduction <add>, %257, %cst_61 [0] : vector<16x64xf32> to vector<64xf32>
    %259 = vector.shape_cast %258 : vector<64xf32> to vector<1x64xf32>
    %c10 = arith.constant 10 : index
    %c0_62 = arith.constant 0 : index
    %260 = vector.load %arg16[%c10, %c0_62] : memref<16x64xf32, #tpu.memory_space<vmem>>, vector<1x64xf32>
    tpu.vector_store %arg16[%c10, %c0_62], %259 {strides = array<i32>} : memref<16x64xf32, #tpu.memory_space<vmem>>, vector<1x64xf32>,
    %261 = arith.mulf %107, %246 : vector<16x128xf32>
    %262 = arith.addf %261, %167 : vector<16x128xf32>
    %263 = vector.extract_strided_slice %86 {offsets = [0, 3], sizes = [16, 1], strides = [1, 1]} : vector<16x16xf32> to vector<16x1xf32>
    %264 = vector.extract_strided_slice %262 {offsets = [0, 0], sizes = [16, 64], strides = [1, 1]} : vector<16x128xf32> to vector<16x64xf32>
    %265 = vector.broadcast %263 : vector<16x1xf32> to vector<16x64xf32>
    %266 = arith.mulf %265, %264 : vector<16x64xf32>
    %cst_63 = arith.constant dense<0.000000e+00> : vector<64xf32>
    %267 = vector.multi_reduction <add>, %266, %cst_63 [0] : vector<16x64xf32> to vector<64xf32>
    %268 = vector.shape_cast %267 : vector<64xf32> to vector<1x64xf32>
    %c3_64 = arith.constant 3 : index
    %c0_65 = arith.constant 0 : index
    %269 = vector.load %arg16[%c3_64, %c0_65] : memref<16x64xf32, #tpu.memory_space<vmem>>, vector<1x64xf32>
    tpu.vector_store %arg16[%c3_64, %c0_65], %268 {strides = array<i32>} : memref<16x64xf32, #tpu.memory_space<vmem>>, vector<1x64xf32>,
    %270 = vector.extract_strided_slice %86 {offsets = [0, 11], sizes = [16, 1], strides = [1, 1]} : vector<16x16xf32> to vector<16x1xf32>
    %271 = vector.extract_strided_slice %262 {offsets = [0, 64], sizes = [16, 64], strides = [1, 1]} : vector<16x128xf32> to vector<16x64xf32>
    %272 = vector.broadcast %270 : vector<16x1xf32> to vector<16x64xf32>
    %273 = arith.mulf %272, %271 : vector<16x64xf32>
    %cst_66 = arith.constant dense<0.000000e+00> : vector<64xf32>
    %274 = vector.multi_reduction <add>, %273, %cst_66 [0] : vector<16x64xf32> to vector<64xf32>
    %275 = vector.shape_cast %274 : vector<64xf32> to vector<1x64xf32>
    %c11 = arith.constant 11 : index
    %c0_67 = arith.constant 0 : index
    %276 = vector.load %arg16[%c11, %c0_67] : memref<16x64xf32, #tpu.memory_space<vmem>>, vector<1x64xf32>
    tpu.vector_store %arg16[%c11, %c0_67], %275 {strides = array<i32>} : memref<16x64xf32, #tpu.memory_space<vmem>>, vector<1x64xf32>,
    %277 = arith.mulf %111, %262 : vector<16x128xf32>
    %278 = arith.addf %277, %178 : vector<16x128xf32>
    %279 = vector.extract_strided_slice %86 {offsets = [0, 4], sizes = [16, 1], strides = [1, 1]} : vector<16x16xf32> to vector<16x1xf32>
    %280 = vector.extract_strided_slice %278 {offsets = [0, 0], sizes = [16, 64], strides = [1, 1]} : vector<16x128xf32> to vector<16x64xf32>
    %281 = vector.broadcast %279 : vector<16x1xf32> to vector<16x64xf32>
    %282 = arith.mulf %281, %280 : vector<16x64xf32>
    %cst_68 = arith.constant dense<0.000000e+00> : vector<64xf32>
    %283 = vector.multi_reduction <add>, %282, %cst_68 [0] : vector<16x64xf32> to vector<64xf32>
    %284 = vector.shape_cast %283 : vector<64xf32> to vector<1x64xf32>
    %c4 = arith.constant 4 : index
    %c0_69 = arith.constant 0 : index
    %285 = vector.load %arg16[%c4, %c0_69] : memref<16x64xf32, #tpu.memory_space<vmem>>, vector<1x64xf32>
    tpu.vector_store %arg16[%c4, %c0_69], %284 {strides = array<i32>} : memref<16x64xf32, #tpu.memory_space<vmem>>, vector<1x64xf32>,
    %286 = vector.extract_strided_slice %86 {offsets = [0, 12], sizes = [16, 1], strides = [1, 1]} : vector<16x16xf32> to vector<16x1xf32>
    %287 = vector.extract_strided_slice %278 {offsets = [0, 64], sizes = [16, 64], strides = [1, 1]} : vector<16x128xf32> to vector<16x64xf32>
    %288 = vector.broadcast %286 : vector<16x1xf32> to vector<16x64xf32>
    %289 = arith.mulf %288, %287 : vector<16x64xf32>
    %cst_70 = arith.constant dense<0.000000e+00> : vector<64xf32>
    %290 = vector.multi_reduction <add>, %289, %cst_70 [0] : vector<16x64xf32> to vector<64xf32>
    %291 = vector.shape_cast %290 : vector<64xf32> to vector<1x64xf32>
    %c12 = arith.constant 12 : index
    %c0_71 = arith.constant 0 : index
    %292 = vector.load %arg16[%c12, %c0_71] : memref<16x64xf32, #tpu.memory_space<vmem>>, vector<1x64xf32>
    tpu.vector_store %arg16[%c12, %c0_71], %291 {strides = array<i32>} : memref<16x64xf32, #tpu.memory_space<vmem>>, vector<1x64xf32>,
    %293 = arith.mulf %115, %278 : vector<16x128xf32>
    %294 = arith.addf %293, %189 : vector<16x128xf32>
    %295 = vector.extract_strided_slice %86 {offsets = [0, 5], sizes = [16, 1], strides = [1, 1]} : vector<16x16xf32> to vector<16x1xf32>
    %296 = vector.extract_strided_slice %294 {offsets = [0, 0], sizes = [16, 64], strides = [1, 1]} : vector<16x128xf32> to vector<16x64xf32>
    %297 = vector.broadcast %295 : vector<16x1xf32> to vector<16x64xf32>
    %298 = arith.mulf %297, %296 : vector<16x64xf32>
    %cst_72 = arith.constant dense<0.000000e+00> : vector<64xf32>
    %299 = vector.multi_reduction <add>, %298, %cst_72 [0] : vector<16x64xf32> to vector<64xf32>
    %300 = vector.shape_cast %299 : vector<64xf32> to vector<1x64xf32>
    %c5 = arith.constant 5 : index
    %c0_73 = arith.constant 0 : index
    %301 = vector.load %arg16[%c5, %c0_73] : memref<16x64xf32, #tpu.memory_space<vmem>>, vector<1x64xf32>
    tpu.vector_store %arg16[%c5, %c0_73], %300 {strides = array<i32>} : memref<16x64xf32, #tpu.memory_space<vmem>>, vector<1x64xf32>,
    %302 = vector.extract_strided_slice %86 {offsets = [0, 13], sizes = [16, 1], strides = [1, 1]} : vector<16x16xf32> to vector<16x1xf32>
    %303 = vector.extract_strided_slice %294 {offsets = [0, 64], sizes = [16, 64], strides = [1, 1]} : vector<16x128xf32> to vector<16x64xf32>
    %304 = vector.broadcast %302 : vector<16x1xf32> to vector<16x64xf32>
    %305 = arith.mulf %304, %303 : vector<16x64xf32>
    %cst_74 = arith.constant dense<0.000000e+00> : vector<64xf32>
    %306 = vector.multi_reduction <add>, %305, %cst_74 [0] : vector<16x64xf32> to vector<64xf32>
    %307 = vector.shape_cast %306 : vector<64xf32> to vector<1x64xf32>
    %c13 = arith.constant 13 : index
    %c0_75 = arith.constant 0 : index
    %308 = vector.load %arg16[%c13, %c0_75] : memref<16x64xf32, #tpu.memory_space<vmem>>, vector<1x64xf32>
    tpu.vector_store %arg16[%c13, %c0_75], %307 {strides = array<i32>} : memref<16x64xf32, #tpu.memory_space<vmem>>, vector<1x64xf32>,
    %309 = arith.mulf %119, %294 : vector<16x128xf32>
    %310 = arith.addf %309, %200 : vector<16x128xf32>
    %311 = vector.extract_strided_slice %86 {offsets = [0, 6], sizes = [16, 1], strides = [1, 1]} : vector<16x16xf32> to vector<16x1xf32>
    %312 = vector.extract_strided_slice %310 {offsets = [0, 0], sizes = [16, 64], strides = [1, 1]} : vector<16x128xf32> to vector<16x64xf32>
    %313 = vector.broadcast %311 : vector<16x1xf32> to vector<16x64xf32>
    %314 = arith.mulf %313, %312 : vector<16x64xf32>
    %cst_76 = arith.constant dense<0.000000e+00> : vector<64xf32>
    %315 = vector.multi_reduction <add>, %314, %cst_76 [0] : vector<16x64xf32> to vector<64xf32>
    %316 = vector.shape_cast %315 : vector<64xf32> to vector<1x64xf32>
    %c6 = arith.constant 6 : index
    %c0_77 = arith.constant 0 : index
    %317 = vector.load %arg16[%c6, %c0_77] : memref<16x64xf32, #tpu.memory_space<vmem>>, vector<1x64xf32>
    tpu.vector_store %arg16[%c6, %c0_77], %316 {strides = array<i32>} : memref<16x64xf32, #tpu.memory_space<vmem>>, vector<1x64xf32>,
    %318 = vector.extract_strided_slice %86 {offsets = [0, 14], sizes = [16, 1], strides = [1, 1]} : vector<16x16xf32> to vector<16x1xf32>
    %319 = vector.extract_strided_slice %310 {offsets = [0, 64], sizes = [16, 64], strides = [1, 1]} : vector<16x128xf32> to vector<16x64xf32>
    %320 = vector.broadcast %318 : vector<16x1xf32> to vector<16x64xf32>
    %321 = arith.mulf %320, %319 : vector<16x64xf32>
    %cst_78 = arith.constant dense<0.000000e+00> : vector<64xf32>
    %322 = vector.multi_reduction <add>, %321, %cst_78 [0] : vector<16x64xf32> to vector<64xf32>
    %323 = vector.shape_cast %322 : vector<64xf32> to vector<1x64xf32>
    %c14 = arith.constant 14 : index
    %c0_79 = arith.constant 0 : index
    %324 = vector.load %arg16[%c14, %c0_79] : memref<16x64xf32, #tpu.memory_space<vmem>>, vector<1x64xf32>
    tpu.vector_store %arg16[%c14, %c0_79], %323 {strides = array<i32>} : memref<16x64xf32, #tpu.memory_space<vmem>>, vector<1x64xf32>,
    %325 = arith.mulf %123, %310 : vector<16x128xf32>
    %326 = arith.addf %325, %211 : vector<16x128xf32>
    %327 = vector.extract_strided_slice %86 {offsets = [0, 7], sizes = [16, 1], strides = [1, 1]} : vector<16x16xf32> to vector<16x1xf32>
    %328 = vector.extract_strided_slice %326 {offsets = [0, 0], sizes = [16, 64], strides = [1, 1]} : vector<16x128xf32> to vector<16x64xf32>
    %329 = vector.broadcast %327 : vector<16x1xf32> to vector<16x64xf32>
    %330 = arith.mulf %329, %328 : vector<16x64xf32>
    %cst_80 = arith.constant dense<0.000000e+00> : vector<64xf32>
    %331 = vector.multi_reduction <add>, %330, %cst_80 [0] : vector<16x64xf32> to vector<64xf32>
    %332 = vector.shape_cast %331 : vector<64xf32> to vector<1x64xf32>
    %c7 = arith.constant 7 : index
    %c0_81 = arith.constant 0 : index
    %333 = vector.load %arg16[%c7, %c0_81] : memref<16x64xf32, #tpu.memory_space<vmem>>, vector<1x64xf32>
    tpu.vector_store %arg16[%c7, %c0_81], %332 {strides = array<i32>} : memref<16x64xf32, #tpu.memory_space<vmem>>, vector<1x64xf32>,
    %334 = vector.extract_strided_slice %86 {offsets = [0, 15], sizes = [16, 1], strides = [1, 1]} : vector<16x16xf32> to vector<16x1xf32>
    %335 = vector.extract_strided_slice %326 {offsets = [0, 64], sizes = [16, 64], strides = [1, 1]} : vector<16x128xf32> to vector<16x64xf32>
    %336 = vector.broadcast %334 : vector<16x1xf32> to vector<16x64xf32>
    %337 = arith.mulf %336, %335 : vector<16x64xf32>
    %cst_82 = arith.constant dense<0.000000e+00> : vector<64xf32>
    %338 = vector.multi_reduction <add>, %337, %cst_82 [0] : vector<16x64xf32> to vector<64xf32>
    %339 = vector.shape_cast %338 : vector<64xf32> to vector<1x64xf32>
    %c15 = arith.constant 15 : index
    %c0_83 = arith.constant 0 : index
    %340 = vector.load %arg16[%c15, %c0_83] : memref<16x64xf32, #tpu.memory_space<vmem>>, vector<1x64xf32>
    tpu.vector_store %arg16[%c15, %c0_83], %339 {strides = array<i32>} : memref<16x64xf32, #tpu.memory_space<vmem>>, vector<1x64xf32>,
    %c0_84 = arith.constant 0 : index
    %c0_85 = arith.constant 0 : index
    %341 = vector.load %arg16[%c0_84, %c0_85] : memref<16x64xf32, #tpu.memory_space<vmem>>, vector<16x64xf32>
    %c0_86 = arith.constant 0 : index
    %c0_87 = arith.constant 0 : index
    %c0_88 = arith.constant 0 : index
    %342 = vector.load %arg12[%c0_86, %c0_87, %c0_88] : memref<2x1x64xf32, #tpu.memory_space<vmem>>, vector<1x1x64xf32>
    %343 = vector.shape_cast %342 : vector<1x1x64xf32> to vector<1x64xf32>
    %344 = vector.broadcast %343 : vector<1x64xf32> to vector<16x64xf32>
    %345 = arith.mulf %52, %344 : vector<16x64xf32>
    %346 = arith.addf %341, %345 : vector<16x64xf32>
    %347 = arith.negf %24 : vector<16x64xf32>
    %348 = math.exp %347 : vector<16x64xf32>
    %cst_89 = arith.constant 1.000000e+00 : f32
    %349 = vector.broadcast %cst_89 : f32 to vector<16x64xf32>
    %350 = arith.addf %349, %348 : vector<16x64xf32>
    %351 = arith.divf %349, %350 : vector<16x64xf32>
    %352 = arith.mulf %24, %351 : vector<16x64xf32>
    %353 = arith.mulf %346, %352 : vector<16x64xf32>
    %c0_90 = arith.constant 0 : index
    %c0_91 = arith.constant 0 : index
    %c0_92 = arith.constant 0 : index
    %354 = vector.load %arg13[%c0_90, %c0_91, %c0_92] : memref<2x64x32xf32, #tpu.memory_space<vmem>>, vector<1x64x32xf32>
    %355 = vector.shape_cast %354 : vector<1x64x32xf32> to vector<64x32xf32>
    %356 = arith.truncf %353 : vector<16x64xf32> to vector<16x64xbf16>
    %357 = arith.truncf %355 : vector<64x32xf32> to vector<64x32xbf16>
    %cst_93 = arith.constant dense<0.000000e+00> : vector<16x32xf32>
    %358 = tpu.matmul %356, %357, %cst_93 {dimension_numbers = #tpu.dot_dimension_numbers<[1], [0], [0], [1], [0, 0, 1, 1], [], []>} : vector<16x64xbf16>, vector<64x32xbf16>, vector<16x32xf32> -> vector<16x32xf32>
    %359 = arith.addf %358, %0 : vector<16x32xf32>
    %c1_94 = arith.constant 1 : index
    %c0_95 = arith.constant 0 : index
    %c0_96 = arith.constant 0 : index
    %360 = vector.load %arg2[%c1_94, %c0_95, %c0_96] : memref<2x1x32xf32, #tpu.memory_space<vmem>>, vector<1x1x32xf32>
    %361 = vector.shape_cast %360 : vector<1x1x32xf32> to vector<1x32xf32>
    %362 = arith.mulf %359, %359 : vector<16x32xf32>
    %cst_97 = arith.constant dense<0.000000e+00> : vector<16xf32>
    %363 = vector.multi_reduction <add>, %362, %cst_97 [1] : vector<16x32xf32> to vector<16xf32>
    %364 = vector.shape_cast %363 : vector<16xf32> to vector<16x1xf32>
    %cst_98 = arith.constant 3.200000e+01 : f32
    %365 = vector.broadcast %cst_98 : f32 to vector<16x1xf32>
    %366 = arith.divf %364, %365 : vector<16x1xf32>
    %cst_99 = arith.constant 9.99999974E-6 : f32
    %367 = vector.broadcast %cst_99 : f32 to vector<16x1xf32>
    %368 = arith.addf %366, %367 : vector<16x1xf32>
    %369 = math.rsqrt %368 : vector<16x1xf32>
    %370 = vector.broadcast %369 : vector<16x1xf32> to vector<16x32xf32>
    %371 = arith.mulf %359, %370 : vector<16x32xf32>
    %372 = vector.broadcast %361 : vector<1x32xf32> to vector<16x32xf32>
    %373 = arith.mulf %371, %372 : vector<16x32xf32>
    %c1_100 = arith.constant 1 : index
    %c0_101 = arith.constant 0 : index
    %c0_102 = arith.constant 0 : index
    %374 = vector.load %arg3[%c1_100, %c0_101, %c0_102] : memref<2x32x64xf32, #tpu.memory_space<vmem>>, vector<1x32x64xf32>
    %375 = vector.shape_cast %374 : vector<1x32x64xf32> to vector<32x64xf32>
    %376 = arith.truncf %373 : vector<16x32xf32> to vector<16x32xbf16>
    %377 = arith.truncf %375 : vector<32x64xf32> to vector<32x64xbf16>
    %cst_103 = arith.constant dense<0.000000e+00> : vector<16x64xf32>
    %378 = tpu.matmul %376, %377, %cst_103 {dimension_numbers = #tpu.dot_dimension_numbers<[1], [0], [0], [1], [0, 0, 1, 1], [], []>} : vector<16x32xbf16>, vector<32x64xbf16>, vector<16x64xf32> -> vector<16x64xf32>
    %c1_104 = arith.constant 1 : index
    %c0_105 = arith.constant 0 : index
    %c0_106 = arith.constant 0 : index
    %379 = vector.load %arg4[%c1_104, %c0_105, %c0_106] : memref<2x32x64xf32, #tpu.memory_space<vmem>>, vector<1x32x64xf32>
    %380 = vector.shape_cast %379 : vector<1x32x64xf32> to vector<32x64xf32>
    %381 = arith.truncf %373 : vector<16x32xf32> to vector<16x32xbf16>
    %382 = arith.truncf %380 : vector<32x64xf32> to vector<32x64xbf16>
    %cst_107 = arith.constant dense<0.000000e+00> : vector<16x64xf32>
    %383 = tpu.matmul %381, %382, %cst_107 {dimension_numbers = #tpu.dot_dimension_numbers<[1], [0], [0], [1], [0, 0, 1, 1], [], []>} : vector<16x32xbf16>, vector<32x64xbf16>, vector<16x64xf32> -> vector<16x64xf32>
    %c1_108 = arith.constant 1 : index
    %c0_109 = arith.constant 0 : index
    %c0_110 = arith.constant 0 : index
    %384 = vector.load %arg6[%c1_108, %c0_109, %c0_110] : memref<2x1x64xf32, #tpu.memory_space<vmem>>, vector<1x1x64xf32>
    %385 = vector.shape_cast %384 : vector<1x1x64xf32> to vector<1x64xf32>
    %c4_111 = arith.constant 4 : index
    %c0_112 = arith.constant 0 : index
    %c0_113 = arith.constant 0 : index
    %386 = vector.load %arg5[%c4_111, %c0_112, %c0_113] : memref<8x16x64xf32, #tpu.memory_space<vmem>>, vector<1x16x64xf32>
    %387 = vector.shape_cast %386 : vector<1x16x64xf32> to vector<16x64xf32>
    %388 = arith.mulf %387, %378 : vector<16x64xf32>
    %389 = vector.broadcast %385 : vector<1x64xf32> to vector<16x64xf32>
    %390 = arith.addf %389, %388 : vector<16x64xf32>
    %c5_114 = arith.constant 5 : index
    %c0_115 = arith.constant 0 : index
    %c0_116 = arith.constant 0 : index
    %391 = vector.load %arg5[%c5_114, %c0_115, %c0_116] : memref<8x16x64xf32, #tpu.memory_space<vmem>>, vector<1x16x64xf32>
    %392 = vector.shape_cast %391 : vector<1x16x64xf32> to vector<16x64xf32>
    %c1_i32_117 = arith.constant 1 : i32
    %393 = tpu.dynamic_rotate %378 by %c1_i32_117 dim 0 : vector<16x64xf32>, i32 -> vector<16x64xf32>
    %394 = arith.mulf %392, %393 : vector<16x64xf32>
    %395 = arith.addf %390, %394 : vector<16x64xf32>
    %c6_118 = arith.constant 6 : index
    %c0_119 = arith.constant 0 : index
    %c0_120 = arith.constant 0 : index
    %396 = vector.load %arg5[%c6_118, %c0_119, %c0_120] : memref<8x16x64xf32, #tpu.memory_space<vmem>>, vector<1x16x64xf32>
    %397 = vector.shape_cast %396 : vector<1x16x64xf32> to vector<16x64xf32>
    %c2_i32_121 = arith.constant 2 : i32
    %398 = tpu.dynamic_rotate %378 by %c2_i32_121 dim 0 : vector<16x64xf32>, i32 -> vector<16x64xf32>
    %399 = arith.mulf %397, %398 : vector<16x64xf32>
    %400 = arith.addf %395, %399 : vector<16x64xf32>
    %c7_122 = arith.constant 7 : index
    %c0_123 = arith.constant 0 : index
    %c0_124 = arith.constant 0 : index
    %401 = vector.load %arg5[%c7_122, %c0_123, %c0_124] : memref<8x16x64xf32, #tpu.memory_space<vmem>>, vector<1x16x64xf32>
    %402 = vector.shape_cast %401 : vector<1x16x64xf32> to vector<16x64xf32>
    %c3_i32_125 = arith.constant 3 : i32
    %403 = tpu.dynamic_rotate %378 by %c3_i32_125 dim 0 : vector<16x64xf32>, i32 -> vector<16x64xf32>
    %404 = arith.mulf %402, %403 : vector<16x64xf32>
    %405 = arith.addf %400, %404 : vector<16x64xf32>
    %406 = arith.negf %405 : vector<16x64xf32>
    %407 = math.exp %406 : vector<16x64xf32>
    %cst_126 = arith.constant 1.000000e+00 : f32
    %408 = vector.broadcast %cst_126 : f32 to vector<16x64xf32>
    %409 = arith.addf %408, %407 : vector<16x64xf32>
    %410 = arith.divf %408, %409 : vector<16x64xf32>
    %411 = arith.mulf %405, %410 : vector<16x64xf32>
    %c1_127 = arith.constant 1 : index
    %c0_128 = arith.constant 0 : index
    %c0_129 = arith.constant 0 : index
    %412 = vector.load %arg9[%c1_127, %c0_128, %c0_129] : memref<2x64x64xf32, #tpu.memory_space<vmem>>, vector<1x64x64xf32>
    %413 = vector.shape_cast %412 : vector<1x64x64xf32> to vector<64x64xf32>
    %414 = arith.truncf %411 : vector<16x64xf32> to vector<16x64xbf16>
    %415 = arith.truncf %413 : vector<64x64xf32> to vector<64x64xbf16>
    %cst_130 = arith.constant dense<0.000000e+00> : vector<16x64xf32>
    %416 = tpu.matmul %414, %415, %cst_130 {dimension_numbers = #tpu.dot_dimension_numbers<[1], [0], [0], [1], [0, 0, 1, 1], [], []>} : vector<16x64xbf16>, vector<64x64xbf16>, vector<16x64xf32> -> vector<16x64xf32>
    %c1_131 = arith.constant 1 : index
    %c0_132 = arith.constant 0 : index
    %c0_133 = arith.constant 0 : index
    %417 = vector.load %arg10[%c1_131, %c0_132, %c0_133] : memref<2x1x64xf32, #tpu.memory_space<vmem>>, vector<1x1x64xf32>
    %418 = vector.shape_cast %417 : vector<1x1x64xf32> to vector<1x64xf32>
    %419 = vector.broadcast %418 : vector<1x64xf32> to vector<16x64xf32>
    %420 = arith.addf %416, %419 : vector<16x64xf32>
    %cst_134 = arith.constant 0.000000e+00 : f32
    %421 = vector.broadcast %cst_134 : f32 to vector<16x64xf32>
    %422 = arith.maximumf %420, %421 : vector<16x64xf32>
    %423 = vector.broadcast %cst_134 : f32 to vector<16x64xf32>
    %424 = arith.subf %420, %423 : vector<16x64xf32>
    %425 = arith.cmpf one, %424, %424 : vector<16x64xf32>
    %426 = vector.broadcast %cst_134 : f32 to vector<16x64xf32>
    %427 = arith.addf %420, %426 : vector<16x64xf32>
    %428 = math.absf %424 : vector<16x64xf32>
    %cst_135 = arith.constant 0.000000e+00 : f32
    %429 = vector.broadcast %cst_135 : f32 to vector<16x64xf32>
    %430 = arith.subf %429, %428 : vector<16x64xf32>
    %431 = math.exp %430 : vector<16x64xf32>
    %432 = math.log1p %431 : vector<16x64xf32>
    %433 = arith.addf %422, %432 : vector<16x64xf32>
    %434 = arith.select %425, %427, %433 : vector<16x64xi1>, vector<16x64xf32>
    %435 = arith.mulf %434, %411 : vector<16x64xf32>
    %c1_136 = arith.constant 1 : index
    %c0_137 = arith.constant 0 : index
    %c0_138 = arith.constant 0 : index
    %436 = vector.load %arg7[%c1_136, %c0_137, %c0_138] : memref<2x16x64xf32, #tpu.memory_space<vmem>>, vector<1x16x64xf32>
    %437 = vector.shape_cast %436 : vector<1x16x64xf32> to vector<16x64xf32>
    %438 = arith.truncf %437 : vector<16x64xf32> to vector<16x64xbf16>
    %439 = arith.truncf %411 : vector<16x64xf32> to vector<16x64xbf16>
    %cst_139 = arith.constant dense<0.000000e+00> : vector<16x16xf32>
    %440 = tpu.matmul %438, %439, %cst_139 {dimension_numbers = #tpu.dot_dimension_numbers<[1], [1], [0], [0], [0, 0, 1, 0], [], []>} : vector<16x64xbf16>, vector<16x64xbf16>, vector<16x16xf32> -> vector<16x16xf32>
    %c1_140 = arith.constant 1 : index
    %c0_141 = arith.constant 0 : index
    %c0_142 = arith.constant 0 : index
    %441 = vector.load %arg8[%c1_140, %c0_141, %c0_142] : memref<2x16x64xf32, #tpu.memory_space<vmem>>, vector<1x16x64xf32>
    %442 = vector.shape_cast %441 : vector<1x16x64xf32> to vector<16x64xf32>
    %443 = arith.truncf %442 : vector<16x64xf32> to vector<16x64xbf16>
    %444 = arith.truncf %411 : vector<16x64xf32> to vector<16x64xbf16>
    %cst_143 = arith.constant dense<0.000000e+00> : vector<16x16xf32>
    %445 = tpu.matmul %443, %444, %cst_143 {dimension_numbers = #tpu.dot_dimension_numbers<[1], [1], [0], [0], [0, 0, 1, 0], [], []>} : vector<16x64xbf16>, vector<16x64xbf16>, vector<16x16xf32> -> vector<16x16xf32>
    %c1_144 = arith.constant 1 : index
    %c0_145 = arith.constant 0 : index
    %c0_146 = arith.constant 0 : index
    %446 = vector.load %arg11[%c1_144, %c0_145, %c0_146] : memref<2x16x128xf32, #tpu.memory_space<vmem>>, vector<1x16x128xf32>
    %447 = vector.shape_cast %446 : vector<1x16x128xf32> to vector<16x128xf32>
    %448 = vector.extract_strided_slice %434 {offsets = [0, 0], sizes = [8, 64], strides = [1, 1]} : vector<16x64xf32> to vector<8x64xf32>
    %449 = vector.extract_strided_slice %434 {offsets = [8, 0], sizes = [8, 64], strides = [1, 1]} : vector<16x64xf32> to vector<8x64xf32>
    %450 = tpu.concatenate %448, %449 in 1 : vector<8x64xf32>, vector<8x64xf32> -> vector<8x128xf32>
    %451 = vector.extract_strided_slice %450 {offsets = [0, 0], sizes = [1, 128], strides = [1, 1]} : vector<8x128xf32> to vector<1x128xf32>
    %452 = vector.broadcast %451 : vector<1x128xf32> to vector<16x128xf32>
    %453 = arith.mulf %452, %447 : vector<16x128xf32>
    %454 = math.exp %453 : vector<16x128xf32>
    %455 = vector.extract_strided_slice %450 {offsets = [1, 0], sizes = [1, 128], strides = [1, 1]} : vector<8x128xf32> to vector<1x128xf32>
    %456 = vector.broadcast %455 : vector<1x128xf32> to vector<16x128xf32>
    %457 = arith.mulf %456, %447 : vector<16x128xf32>
    %458 = math.exp %457 : vector<16x128xf32>
    %459 = vector.extract_strided_slice %450 {offsets = [2, 0], sizes = [1, 128], strides = [1, 1]} : vector<8x128xf32> to vector<1x128xf32>
    %460 = vector.broadcast %459 : vector<1x128xf32> to vector<16x128xf32>
    %461 = arith.mulf %460, %447 : vector<16x128xf32>
    %462 = math.exp %461 : vector<16x128xf32>
    %463 = vector.extract_strided_slice %450 {offsets = [3, 0], sizes = [1, 128], strides = [1, 1]} : vector<8x128xf32> to vector<1x128xf32>
    %464 = vector.broadcast %463 : vector<1x128xf32> to vector<16x128xf32>
    %465 = arith.mulf %464, %447 : vector<16x128xf32>
    %466 = math.exp %465 : vector<16x128xf32>
    %467 = vector.extract_strided_slice %450 {offsets = [4, 0], sizes = [1, 128], strides = [1, 1]} : vector<8x128xf32> to vector<1x128xf32>
    %468 = vector.broadcast %467 : vector<1x128xf32> to vector<16x128xf32>
    %469 = arith.mulf %468, %447 : vector<16x128xf32>
    %470 = math.exp %469 : vector<16x128xf32>
    %471 = vector.extract_strided_slice %450 {offsets = [5, 0], sizes = [1, 128], strides = [1, 1]} : vector<8x128xf32> to vector<1x128xf32>
    %472 = vector.broadcast %471 : vector<1x128xf32> to vector<16x128xf32>
    %473 = arith.mulf %472, %447 : vector<16x128xf32>
    %474 = math.exp %473 : vector<16x128xf32>
    %475 = vector.extract_strided_slice %450 {offsets = [6, 0], sizes = [1, 128], strides = [1, 1]} : vector<8x128xf32> to vector<1x128xf32>
    %476 = vector.broadcast %475 : vector<1x128xf32> to vector<16x128xf32>
    %477 = arith.mulf %476, %447 : vector<16x128xf32>
    %478 = math.exp %477 : vector<16x128xf32>
    %479 = vector.extract_strided_slice %450 {offsets = [7, 0], sizes = [1, 128], strides = [1, 1]} : vector<8x128xf32> to vector<1x128xf32>
    %480 = vector.broadcast %479 : vector<1x128xf32> to vector<16x128xf32>
    %481 = arith.mulf %480, %447 : vector<16x128xf32>
    %482 = math.exp %481 : vector<16x128xf32>
    %483 = vector.extract_strided_slice %440 {offsets = [0, 0], sizes = [16, 1], strides = [1, 1]} : vector<16x16xf32> to vector<16x1xf32>
    %484 = vector.extract_strided_slice %435 {offsets = [0, 0], sizes = [1, 64], strides = [1, 1]} : vector<16x64xf32> to vector<1x64xf32>
    %485 = vector.broadcast %483 : vector<16x1xf32> to vector<16x64xf32>
    %486 = vector.broadcast %484 : vector<1x64xf32> to vector<16x64xf32>
    %487 = arith.mulf %485, %486 : vector<16x64xf32>
    %488 = vector.extract_strided_slice %440 {offsets = [0, 8], sizes = [16, 1], strides = [1, 1]} : vector<16x16xf32> to vector<16x1xf32>
    %489 = vector.extract_strided_slice %435 {offsets = [8, 0], sizes = [1, 64], strides = [1, 1]} : vector<16x64xf32> to vector<1x64xf32>
    %490 = vector.broadcast %488 : vector<16x1xf32> to vector<16x64xf32>
    %491 = vector.broadcast %489 : vector<1x64xf32> to vector<16x64xf32>
    %492 = arith.mulf %490, %491 : vector<16x64xf32>
    %493 = tpu.concatenate %487, %492 in 1 : vector<16x64xf32>, vector<16x64xf32> -> vector<16x128xf32>
    %494 = vector.extract_strided_slice %440 {offsets = [0, 1], sizes = [16, 1], strides = [1, 1]} : vector<16x16xf32> to vector<16x1xf32>
    %495 = vector.extract_strided_slice %435 {offsets = [1, 0], sizes = [1, 64], strides = [1, 1]} : vector<16x64xf32> to vector<1x64xf32>
    %496 = vector.broadcast %494 : vector<16x1xf32> to vector<16x64xf32>
    %497 = vector.broadcast %495 : vector<1x64xf32> to vector<16x64xf32>
    %498 = arith.mulf %496, %497 : vector<16x64xf32>
    %499 = vector.extract_strided_slice %440 {offsets = [0, 9], sizes = [16, 1], strides = [1, 1]} : vector<16x16xf32> to vector<16x1xf32>
    %500 = vector.extract_strided_slice %435 {offsets = [9, 0], sizes = [1, 64], strides = [1, 1]} : vector<16x64xf32> to vector<1x64xf32>
    %501 = vector.broadcast %499 : vector<16x1xf32> to vector<16x64xf32>
    %502 = vector.broadcast %500 : vector<1x64xf32> to vector<16x64xf32>
    %503 = arith.mulf %501, %502 : vector<16x64xf32>
    %504 = tpu.concatenate %498, %503 in 1 : vector<16x64xf32>, vector<16x64xf32> -> vector<16x128xf32>
    %505 = vector.extract_strided_slice %440 {offsets = [0, 2], sizes = [16, 1], strides = [1, 1]} : vector<16x16xf32> to vector<16x1xf32>
    %506 = vector.extract_strided_slice %435 {offsets = [2, 0], sizes = [1, 64], strides = [1, 1]} : vector<16x64xf32> to vector<1x64xf32>
    %507 = vector.broadcast %505 : vector<16x1xf32> to vector<16x64xf32>
    %508 = vector.broadcast %506 : vector<1x64xf32> to vector<16x64xf32>
    %509 = arith.mulf %507, %508 : vector<16x64xf32>
    %510 = vector.extract_strided_slice %440 {offsets = [0, 10], sizes = [16, 1], strides = [1, 1]} : vector<16x16xf32> to vector<16x1xf32>
    %511 = vector.extract_strided_slice %435 {offsets = [10, 0], sizes = [1, 64], strides = [1, 1]} : vector<16x64xf32> to vector<1x64xf32>
    %512 = vector.broadcast %510 : vector<16x1xf32> to vector<16x64xf32>
    %513 = vector.broadcast %511 : vector<1x64xf32> to vector<16x64xf32>
    %514 = arith.mulf %512, %513 : vector<16x64xf32>
    %515 = tpu.concatenate %509, %514 in 1 : vector<16x64xf32>, vector<16x64xf32> -> vector<16x128xf32>
    %516 = vector.extract_strided_slice %440 {offsets = [0, 3], sizes = [16, 1], strides = [1, 1]} : vector<16x16xf32> to vector<16x1xf32>
    %517 = vector.extract_strided_slice %435 {offsets = [3, 0], sizes = [1, 64], strides = [1, 1]} : vector<16x64xf32> to vector<1x64xf32>
    %518 = vector.broadcast %516 : vector<16x1xf32> to vector<16x64xf32>
    %519 = vector.broadcast %517 : vector<1x64xf32> to vector<16x64xf32>
    %520 = arith.mulf %518, %519 : vector<16x64xf32>
    %521 = vector.extract_strided_slice %440 {offsets = [0, 11], sizes = [16, 1], strides = [1, 1]} : vector<16x16xf32> to vector<16x1xf32>
    %522 = vector.extract_strided_slice %435 {offsets = [11, 0], sizes = [1, 64], strides = [1, 1]} : vector<16x64xf32> to vector<1x64xf32>
    %523 = vector.broadcast %521 : vector<16x1xf32> to vector<16x64xf32>
    %524 = vector.broadcast %522 : vector<1x64xf32> to vector<16x64xf32>
    %525 = arith.mulf %523, %524 : vector<16x64xf32>
    %526 = tpu.concatenate %520, %525 in 1 : vector<16x64xf32>, vector<16x64xf32> -> vector<16x128xf32>
    %527 = vector.extract_strided_slice %440 {offsets = [0, 4], sizes = [16, 1], strides = [1, 1]} : vector<16x16xf32> to vector<16x1xf32>
    %528 = vector.extract_strided_slice %435 {offsets = [4, 0], sizes = [1, 64], strides = [1, 1]} : vector<16x64xf32> to vector<1x64xf32>
    %529 = vector.broadcast %527 : vector<16x1xf32> to vector<16x64xf32>
    %530 = vector.broadcast %528 : vector<1x64xf32> to vector<16x64xf32>
    %531 = arith.mulf %529, %530 : vector<16x64xf32>
    %532 = vector.extract_strided_slice %440 {offsets = [0, 12], sizes = [16, 1], strides = [1, 1]} : vector<16x16xf32> to vector<16x1xf32>
    %533 = vector.extract_strided_slice %435 {offsets = [12, 0], sizes = [1, 64], strides = [1, 1]} : vector<16x64xf32> to vector<1x64xf32>
    %534 = vector.broadcast %532 : vector<16x1xf32> to vector<16x64xf32>
    %535 = vector.broadcast %533 : vector<1x64xf32> to vector<16x64xf32>
    %536 = arith.mulf %534, %535 : vector<16x64xf32>
    %537 = tpu.concatenate %531, %536 in 1 : vector<16x64xf32>, vector<16x64xf32> -> vector<16x128xf32>
    %538 = vector.extract_strided_slice %440 {offsets = [0, 5], sizes = [16, 1], strides = [1, 1]} : vector<16x16xf32> to vector<16x1xf32>
    %539 = vector.extract_strided_slice %435 {offsets = [5, 0], sizes = [1, 64], strides = [1, 1]} : vector<16x64xf32> to vector<1x64xf32>
    %540 = vector.broadcast %538 : vector<16x1xf32> to vector<16x64xf32>
    %541 = vector.broadcast %539 : vector<1x64xf32> to vector<16x64xf32>
    %542 = arith.mulf %540, %541 : vector<16x64xf32>
    %543 = vector.extract_strided_slice %440 {offsets = [0, 13], sizes = [16, 1], strides = [1, 1]} : vector<16x16xf32> to vector<16x1xf32>
    %544 = vector.extract_strided_slice %435 {offsets = [13, 0], sizes = [1, 64], strides = [1, 1]} : vector<16x64xf32> to vector<1x64xf32>
    %545 = vector.broadcast %543 : vector<16x1xf32> to vector<16x64xf32>
    %546 = vector.broadcast %544 : vector<1x64xf32> to vector<16x64xf32>
    %547 = arith.mulf %545, %546 : vector<16x64xf32>
    %548 = tpu.concatenate %542, %547 in 1 : vector<16x64xf32>, vector<16x64xf32> -> vector<16x128xf32>
    %549 = vector.extract_strided_slice %440 {offsets = [0, 6], sizes = [16, 1], strides = [1, 1]} : vector<16x16xf32> to vector<16x1xf32>
    %550 = vector.extract_strided_slice %435 {offsets = [6, 0], sizes = [1, 64], strides = [1, 1]} : vector<16x64xf32> to vector<1x64xf32>
    %551 = vector.broadcast %549 : vector<16x1xf32> to vector<16x64xf32>
    %552 = vector.broadcast %550 : vector<1x64xf32> to vector<16x64xf32>
    %553 = arith.mulf %551, %552 : vector<16x64xf32>
    %554 = vector.extract_strided_slice %440 {offsets = [0, 14], sizes = [16, 1], strides = [1, 1]} : vector<16x16xf32> to vector<16x1xf32>
    %555 = vector.extract_strided_slice %435 {offsets = [14, 0], sizes = [1, 64], strides = [1, 1]} : vector<16x64xf32> to vector<1x64xf32>
    %556 = vector.broadcast %554 : vector<16x1xf32> to vector<16x64xf32>
    %557 = vector.broadcast %555 : vector<1x64xf32> to vector<16x64xf32>
    %558 = arith.mulf %556, %557 : vector<16x64xf32>
    %559 = tpu.concatenate %553, %558 in 1 : vector<16x64xf32>, vector<16x64xf32> -> vector<16x128xf32>
    %560 = vector.extract_strided_slice %440 {offsets = [0, 7], sizes = [16, 1], strides = [1, 1]} : vector<16x16xf32> to vector<16x1xf32>
    %561 = vector.extract_strided_slice %435 {offsets = [7, 0], sizes = [1, 64], strides = [1, 1]} : vector<16x64xf32> to vector<1x64xf32>
    %562 = vector.broadcast %560 : vector<16x1xf32> to vector<16x64xf32>
    %563 = vector.broadcast %561 : vector<1x64xf32> to vector<16x64xf32>
    %564 = arith.mulf %562, %563 : vector<16x64xf32>
    %565 = vector.extract_strided_slice %440 {offsets = [0, 15], sizes = [16, 1], strides = [1, 1]} : vector<16x16xf32> to vector<16x1xf32>
    %566 = vector.extract_strided_slice %435 {offsets = [15, 0], sizes = [1, 64], strides = [1, 1]} : vector<16x64xf32> to vector<1x64xf32>
    %567 = vector.broadcast %565 : vector<16x1xf32> to vector<16x64xf32>
    %568 = vector.broadcast %566 : vector<1x64xf32> to vector<16x64xf32>
    %569 = arith.mulf %567, %568 : vector<16x64xf32>
    %570 = tpu.concatenate %564, %569 in 1 : vector<16x64xf32>, vector<16x64xf32> -> vector<16x128xf32>
    %cst_147 = arith.constant 0.000000e+00 : f32
    %571 = vector.broadcast %cst_147 : f32 to vector<16x128xf32>
    %572 = arith.mulf %454, %571 : vector<16x128xf32>
    %573 = arith.addf %572, %493 : vector<16x128xf32>
    %574 = vector.extract_strided_slice %445 {offsets = [0, 0], sizes = [16, 1], strides = [1, 1]} : vector<16x16xf32> to vector<16x1xf32>
    %575 = vector.extract_strided_slice %573 {offsets = [0, 0], sizes = [16, 64], strides = [1, 1]} : vector<16x128xf32> to vector<16x64xf32>
    %576 = vector.broadcast %574 : vector<16x1xf32> to vector<16x64xf32>
    %577 = arith.mulf %576, %575 : vector<16x64xf32>
    %cst_148 = arith.constant dense<0.000000e+00> : vector<64xf32>
    %578 = vector.multi_reduction <add>, %577, %cst_148 [0] : vector<16x64xf32> to vector<64xf32>
    %579 = vector.shape_cast %578 : vector<64xf32> to vector<1x64xf32>
    %c0_149 = arith.constant 0 : index
    %c0_150 = arith.constant 0 : index
    %580 = vector.load %arg16[%c0_149, %c0_150] : memref<16x64xf32, #tpu.memory_space<vmem>>, vector<1x64xf32>
    tpu.vector_store %arg16[%c0_149, %c0_150], %579 {strides = array<i32>} : memref<16x64xf32, #tpu.memory_space<vmem>>, vector<1x64xf32>,
    %581 = vector.extract_strided_slice %445 {offsets = [0, 8], sizes = [16, 1], strides = [1, 1]} : vector<16x16xf32> to vector<16x1xf32>
    %582 = vector.extract_strided_slice %573 {offsets = [0, 64], sizes = [16, 64], strides = [1, 1]} : vector<16x128xf32> to vector<16x64xf32>
    %583 = vector.broadcast %581 : vector<16x1xf32> to vector<16x64xf32>
    %584 = arith.mulf %583, %582 : vector<16x64xf32>
    %cst_151 = arith.constant dense<0.000000e+00> : vector<64xf32>
    %585 = vector.multi_reduction <add>, %584, %cst_151 [0] : vector<16x64xf32> to vector<64xf32>
    %586 = vector.shape_cast %585 : vector<64xf32> to vector<1x64xf32>
    %c8_152 = arith.constant 8 : index
    %c0_153 = arith.constant 0 : index
    %587 = vector.load %arg16[%c8_152, %c0_153] : memref<16x64xf32, #tpu.memory_space<vmem>>, vector<1x64xf32>
    tpu.vector_store %arg16[%c8_152, %c0_153], %586 {strides = array<i32>} : memref<16x64xf32, #tpu.memory_space<vmem>>, vector<1x64xf32>,
    %588 = arith.mulf %458, %573 : vector<16x128xf32>
    %589 = arith.addf %588, %504 : vector<16x128xf32>
    %590 = vector.extract_strided_slice %445 {offsets = [0, 1], sizes = [16, 1], strides = [1, 1]} : vector<16x16xf32> to vector<16x1xf32>
    %591 = vector.extract_strided_slice %589 {offsets = [0, 0], sizes = [16, 64], strides = [1, 1]} : vector<16x128xf32> to vector<16x64xf32>
    %592 = vector.broadcast %590 : vector<16x1xf32> to vector<16x64xf32>
    %593 = arith.mulf %592, %591 : vector<16x64xf32>
    %cst_154 = arith.constant dense<0.000000e+00> : vector<64xf32>
    %594 = vector.multi_reduction <add>, %593, %cst_154 [0] : vector<16x64xf32> to vector<64xf32>
    %595 = vector.shape_cast %594 : vector<64xf32> to vector<1x64xf32>
    %c1_155 = arith.constant 1 : index
    %c0_156 = arith.constant 0 : index
    %596 = vector.load %arg16[%c1_155, %c0_156] : memref<16x64xf32, #tpu.memory_space<vmem>>, vector<1x64xf32>
    tpu.vector_store %arg16[%c1_155, %c0_156], %595 {strides = array<i32>} : memref<16x64xf32, #tpu.memory_space<vmem>>, vector<1x64xf32>,
    %597 = vector.extract_strided_slice %445 {offsets = [0, 9], sizes = [16, 1], strides = [1, 1]} : vector<16x16xf32> to vector<16x1xf32>
    %598 = vector.extract_strided_slice %589 {offsets = [0, 64], sizes = [16, 64], strides = [1, 1]} : vector<16x128xf32> to vector<16x64xf32>
    %599 = vector.broadcast %597 : vector<16x1xf32> to vector<16x64xf32>
    %600 = arith.mulf %599, %598 : vector<16x64xf32>
    %cst_157 = arith.constant dense<0.000000e+00> : vector<64xf32>
    %601 = vector.multi_reduction <add>, %600, %cst_157 [0] : vector<16x64xf32> to vector<64xf32>
    %602 = vector.shape_cast %601 : vector<64xf32> to vector<1x64xf32>
    %c9_158 = arith.constant 9 : index
    %c0_159 = arith.constant 0 : index
    %603 = vector.load %arg16[%c9_158, %c0_159] : memref<16x64xf32, #tpu.memory_space<vmem>>, vector<1x64xf32>
    tpu.vector_store %arg16[%c9_158, %c0_159], %602 {strides = array<i32>} : memref<16x64xf32, #tpu.memory_space<vmem>>, vector<1x64xf32>,
    %604 = arith.mulf %462, %589 : vector<16x128xf32>
    %605 = arith.addf %604, %515 : vector<16x128xf32>
    %606 = vector.extract_strided_slice %445 {offsets = [0, 2], sizes = [16, 1], strides = [1, 1]} : vector<16x16xf32> to vector<16x1xf32>
    %607 = vector.extract_strided_slice %605 {offsets = [0, 0], sizes = [16, 64], strides = [1, 1]} : vector<16x128xf32> to vector<16x64xf32>
    %608 = vector.broadcast %606 : vector<16x1xf32> to vector<16x64xf32>
    %609 = arith.mulf %608, %607 : vector<16x64xf32>
    %cst_160 = arith.constant dense<0.000000e+00> : vector<64xf32>
    %610 = vector.multi_reduction <add>, %609, %cst_160 [0] : vector<16x64xf32> to vector<64xf32>
    %611 = vector.shape_cast %610 : vector<64xf32> to vector<1x64xf32>
    %c2_161 = arith.constant 2 : index
    %c0_162 = arith.constant 0 : index
    %612 = vector.load %arg16[%c2_161, %c0_162] : memref<16x64xf32, #tpu.memory_space<vmem>>, vector<1x64xf32>
    tpu.vector_store %arg16[%c2_161, %c0_162], %611 {strides = array<i32>} : memref<16x64xf32, #tpu.memory_space<vmem>>, vector<1x64xf32>,
    %613 = vector.extract_strided_slice %445 {offsets = [0, 10], sizes = [16, 1], strides = [1, 1]} : vector<16x16xf32> to vector<16x1xf32>
    %614 = vector.extract_strided_slice %605 {offsets = [0, 64], sizes = [16, 64], strides = [1, 1]} : vector<16x128xf32> to vector<16x64xf32>
    %615 = vector.broadcast %613 : vector<16x1xf32> to vector<16x64xf32>
    %616 = arith.mulf %615, %614 : vector<16x64xf32>
    %cst_163 = arith.constant dense<0.000000e+00> : vector<64xf32>
    %617 = vector.multi_reduction <add>, %616, %cst_163 [0] : vector<16x64xf32> to vector<64xf32>
    %618 = vector.shape_cast %617 : vector<64xf32> to vector<1x64xf32>
    %c10_164 = arith.constant 10 : index
    %c0_165 = arith.constant 0 : index
    %619 = vector.load %arg16[%c10_164, %c0_165] : memref<16x64xf32, #tpu.memory_space<vmem>>, vector<1x64xf32>
    tpu.vector_store %arg16[%c10_164, %c0_165], %618 {strides = array<i32>} : memref<16x64xf32, #tpu.memory_space<vmem>>, vector<1x64xf32>,
    %620 = arith.mulf %466, %605 : vector<16x128xf32>
    %621 = arith.addf %620, %526 : vector<16x128xf32>
    %622 = vector.extract_strided_slice %445 {offsets = [0, 3], sizes = [16, 1], strides = [1, 1]} : vector<16x16xf32> to vector<16x1xf32>
    %623 = vector.extract_strided_slice %621 {offsets = [0, 0], sizes = [16, 64], strides = [1, 1]} : vector<16x128xf32> to vector<16x64xf32>
    %624 = vector.broadcast %622 : vector<16x1xf32> to vector<16x64xf32>
    %625 = arith.mulf %624, %623 : vector<16x64xf32>
    %cst_166 = arith.constant dense<0.000000e+00> : vector<64xf32>
    %626 = vector.multi_reduction <add>, %625, %cst_166 [0] : vector<16x64xf32> to vector<64xf32>
    %627 = vector.shape_cast %626 : vector<64xf32> to vector<1x64xf32>
    %c3_167 = arith.constant 3 : index
    %c0_168 = arith.constant 0 : index
    %628 = vector.load %arg16[%c3_167, %c0_168] : memref<16x64xf32, #tpu.memory_space<vmem>>, vector<1x64xf32>
    tpu.vector_store %arg16[%c3_167, %c0_168], %627 {strides = array<i32>} : memref<16x64xf32, #tpu.memory_space<vmem>>, vector<1x64xf32>,
    %629 = vector.extract_strided_slice %445 {offsets = [0, 11], sizes = [16, 1], strides = [1, 1]} : vector<16x16xf32> to vector<16x1xf32>
    %630 = vector.extract_strided_slice %621 {offsets = [0, 64], sizes = [16, 64], strides = [1, 1]} : vector<16x128xf32> to vector<16x64xf32>
    %631 = vector.broadcast %629 : vector<16x1xf32> to vector<16x64xf32>
    %632 = arith.mulf %631, %630 : vector<16x64xf32>
    %cst_169 = arith.constant dense<0.000000e+00> : vector<64xf32>
    %633 = vector.multi_reduction <add>, %632, %cst_169 [0] : vector<16x64xf32> to vector<64xf32>
    %634 = vector.shape_cast %633 : vector<64xf32> to vector<1x64xf32>
    %c11_170 = arith.constant 11 : index
    %c0_171 = arith.constant 0 : index
    %635 = vector.load %arg16[%c11_170, %c0_171] : memref<16x64xf32, #tpu.memory_space<vmem>>, vector<1x64xf32>
    tpu.vector_store %arg16[%c11_170, %c0_171], %634 {strides = array<i32>} : memref<16x64xf32, #tpu.memory_space<vmem>>, vector<1x64xf32>,
    %636 = arith.mulf %470, %621 : vector<16x128xf32>
    %637 = arith.addf %636, %537 : vector<16x128xf32>
    %638 = vector.extract_strided_slice %445 {offsets = [0, 4], sizes = [16, 1], strides = [1, 1]} : vector<16x16xf32> to vector<16x1xf32>
    %639 = vector.extract_strided_slice %637 {offsets = [0, 0], sizes = [16, 64], strides = [1, 1]} : vector<16x128xf32> to vector<16x64xf32>
    %640 = vector.broadcast %638 : vector<16x1xf32> to vector<16x64xf32>
    %641 = arith.mulf %640, %639 : vector<16x64xf32>
    %cst_172 = arith.constant dense<0.000000e+00> : vector<64xf32>
    %642 = vector.multi_reduction <add>, %641, %cst_172 [0] : vector<16x64xf32> to vector<64xf32>
    %643 = vector.shape_cast %642 : vector<64xf32> to vector<1x64xf32>
    %c4_173 = arith.constant 4 : index
    %c0_174 = arith.constant 0 : index
    %644 = vector.load %arg16[%c4_173, %c0_174] : memref<16x64xf32, #tpu.memory_space<vmem>>, vector<1x64xf32>
    tpu.vector_store %arg16[%c4_173, %c0_174], %643 {strides = array<i32>} : memref<16x64xf32, #tpu.memory_space<vmem>>, vector<1x64xf32>,
    %645 = vector.extract_strided_slice %445 {offsets = [0, 12], sizes = [16, 1], strides = [1, 1]} : vector<16x16xf32> to vector<16x1xf32>
    %646 = vector.extract_strided_slice %637 {offsets = [0, 64], sizes = [16, 64], strides = [1, 1]} : vector<16x128xf32> to vector<16x64xf32>
    %647 = vector.broadcast %645 : vector<16x1xf32> to vector<16x64xf32>
    %648 = arith.mulf %647, %646 : vector<16x64xf32>
    %cst_175 = arith.constant dense<0.000000e+00> : vector<64xf32>
    %649 = vector.multi_reduction <add>, %648, %cst_175 [0] : vector<16x64xf32> to vector<64xf32>
    %650 = vector.shape_cast %649 : vector<64xf32> to vector<1x64xf32>
    %c12_176 = arith.constant 12 : index
    %c0_177 = arith.constant 0 : index
    %651 = vector.load %arg16[%c12_176, %c0_177] : memref<16x64xf32, #tpu.memory_space<vmem>>, vector<1x64xf32>
    tpu.vector_store %arg16[%c12_176, %c0_177], %650 {strides = array<i32>} : memref<16x64xf32, #tpu.memory_space<vmem>>, vector<1x64xf32>,
    %652 = arith.mulf %474, %637 : vector<16x128xf32>
    %653 = arith.addf %652, %548 : vector<16x128xf32>
    %654 = vector.extract_strided_slice %445 {offsets = [0, 5], sizes = [16, 1], strides = [1, 1]} : vector<16x16xf32> to vector<16x1xf32>
    %655 = vector.extract_strided_slice %653 {offsets = [0, 0], sizes = [16, 64], strides = [1, 1]} : vector<16x128xf32> to vector<16x64xf32>
    %656 = vector.broadcast %654 : vector<16x1xf32> to vector<16x64xf32>
    %657 = arith.mulf %656, %655 : vector<16x64xf32>
    %cst_178 = arith.constant dense<0.000000e+00> : vector<64xf32>
    %658 = vector.multi_reduction <add>, %657, %cst_178 [0] : vector<16x64xf32> to vector<64xf32>
    %659 = vector.shape_cast %658 : vector<64xf32> to vector<1x64xf32>
    %c5_179 = arith.constant 5 : index
    %c0_180 = arith.constant 0 : index
    %660 = vector.load %arg16[%c5_179, %c0_180] : memref<16x64xf32, #tpu.memory_space<vmem>>, vector<1x64xf32>
    tpu.vector_store %arg16[%c5_179, %c0_180], %659 {strides = array<i32>} : memref<16x64xf32, #tpu.memory_space<vmem>>, vector<1x64xf32>,
    %661 = vector.extract_strided_slice %445 {offsets = [0, 13], sizes = [16, 1], strides = [1, 1]} : vector<16x16xf32> to vector<16x1xf32>
    %662 = vector.extract_strided_slice %653 {offsets = [0, 64], sizes = [16, 64], strides = [1, 1]} : vector<16x128xf32> to vector<16x64xf32>
    %663 = vector.broadcast %661 : vector<16x1xf32> to vector<16x64xf32>
    %664 = arith.mulf %663, %662 : vector<16x64xf32>
    %cst_181 = arith.constant dense<0.000000e+00> : vector<64xf32>
    %665 = vector.multi_reduction <add>, %664, %cst_181 [0] : vector<16x64xf32> to vector<64xf32>
    %666 = vector.shape_cast %665 : vector<64xf32> to vector<1x64xf32>
    %c13_182 = arith.constant 13 : index
    %c0_183 = arith.constant 0 : index
    %667 = vector.load %arg16[%c13_182, %c0_183] : memref<16x64xf32, #tpu.memory_space<vmem>>, vector<1x64xf32>
    tpu.vector_store %arg16[%c13_182, %c0_183], %666 {strides = array<i32>} : memref<16x64xf32, #tpu.memory_space<vmem>>, vector<1x64xf32>,
    %668 = arith.mulf %478, %653 : vector<16x128xf32>
    %669 = arith.addf %668, %559 : vector<16x128xf32>
    %670 = vector.extract_strided_slice %445 {offsets = [0, 6], sizes = [16, 1], strides = [1, 1]} : vector<16x16xf32> to vector<16x1xf32>
    %671 = vector.extract_strided_slice %669 {offsets = [0, 0], sizes = [16, 64], strides = [1, 1]} : vector<16x128xf32> to vector<16x64xf32>
    %672 = vector.broadcast %670 : vector<16x1xf32> to vector<16x64xf32>
    %673 = arith.mulf %672, %671 : vector<16x64xf32>
    %cst_184 = arith.constant dense<0.000000e+00> : vector<64xf32>
    %674 = vector.multi_reduction <add>, %673, %cst_184 [0] : vector<16x64xf32> to vector<64xf32>
    %675 = vector.shape_cast %674 : vector<64xf32> to vector<1x64xf32>
    %c6_185 = arith.constant 6 : index
    %c0_186 = arith.constant 0 : index
    %676 = vector.load %arg16[%c6_185, %c0_186] : memref<16x64xf32, #tpu.memory_space<vmem>>, vector<1x64xf32>
    tpu.vector_store %arg16[%c6_185, %c0_186], %675 {strides = array<i32>} : memref<16x64xf32, #tpu.memory_space<vmem>>, vector<1x64xf32>,
    %677 = vector.extract_strided_slice %445 {offsets = [0, 14], sizes = [16, 1], strides = [1, 1]} : vector<16x16xf32> to vector<16x1xf32>
    %678 = vector.extract_strided_slice %669 {offsets = [0, 64], sizes = [16, 64], strides = [1, 1]} : vector<16x128xf32> to vector<16x64xf32>
    %679 = vector.broadcast %677 : vector<16x1xf32> to vector<16x64xf32>
    %680 = arith.mulf %679, %678 : vector<16x64xf32>
    %cst_187 = arith.constant dense<0.000000e+00> : vector<64xf32>
    %681 = vector.multi_reduction <add>, %680, %cst_187 [0] : vector<16x64xf32> to vector<64xf32>
    %682 = vector.shape_cast %681 : vector<64xf32> to vector<1x64xf32>
    %c14_188 = arith.constant 14 : index
    %c0_189 = arith.constant 0 : index
    %683 = vector.load %arg16[%c14_188, %c0_189] : memref<16x64xf32, #tpu.memory_space<vmem>>, vector<1x64xf32>
    tpu.vector_store %arg16[%c14_188, %c0_189], %682 {strides = array<i32>} : memref<16x64xf32, #tpu.memory_space<vmem>>, vector<1x64xf32>,
    %684 = arith.mulf %482, %669 : vector<16x128xf32>
    %685 = arith.addf %684, %570 : vector<16x128xf32>
    %686 = vector.extract_strided_slice %445 {offsets = [0, 7], sizes = [16, 1], strides = [1, 1]} : vector<16x16xf32> to vector<16x1xf32>
    %687 = vector.extract_strided_slice %685 {offsets = [0, 0], sizes = [16, 64], strides = [1, 1]} : vector<16x128xf32> to vector<16x64xf32>
    %688 = vector.broadcast %686 : vector<16x1xf32> to vector<16x64xf32>
    %689 = arith.mulf %688, %687 : vector<16x64xf32>
    %cst_190 = arith.constant dense<0.000000e+00> : vector<64xf32>
    %690 = vector.multi_reduction <add>, %689, %cst_190 [0] : vector<16x64xf32> to vector<64xf32>
    %691 = vector.shape_cast %690 : vector<64xf32> to vector<1x64xf32>
    %c7_191 = arith.constant 7 : index
    %c0_192 = arith.constant 0 : index
    %692 = vector.load %arg16[%c7_191, %c0_192] : memref<16x64xf32, #tpu.memory_space<vmem>>, vector<1x64xf32>
    tpu.vector_store %arg16[%c7_191, %c0_192], %691 {strides = array<i32>} : memref<16x64xf32, #tpu.memory_space<vmem>>, vector<1x64xf32>,
    %693 = vector.extract_strided_slice %445 {offsets = [0, 15], sizes = [16, 1], strides = [1, 1]} : vector<16x16xf32> to vector<16x1xf32>
    %694 = vector.extract_strided_slice %685 {offsets = [0, 64], sizes = [16, 64], strides = [1, 1]} : vector<16x128xf32> to vector<16x64xf32>
    %695 = vector.broadcast %693 : vector<16x1xf32> to vector<16x64xf32>
    %696 = arith.mulf %695, %694 : vector<16x64xf32>
    %cst_193 = arith.constant dense<0.000000e+00> : vector<64xf32>
    %697 = vector.multi_reduction <add>, %696, %cst_193 [0] : vector<16x64xf32> to vector<64xf32>
    %698 = vector.shape_cast %697 : vector<64xf32> to vector<1x64xf32>
    %c15_194 = arith.constant 15 : index
    %c0_195 = arith.constant 0 : index
    %699 = vector.load %arg16[%c15_194, %c0_195] : memref<16x64xf32, #tpu.memory_space<vmem>>, vector<1x64xf32>
    tpu.vector_store %arg16[%c15_194, %c0_195], %698 {strides = array<i32>} : memref<16x64xf32, #tpu.memory_space<vmem>>, vector<1x64xf32>,
    %c0_196 = arith.constant 0 : index
    %c0_197 = arith.constant 0 : index
    %700 = vector.load %arg16[%c0_196, %c0_197] : memref<16x64xf32, #tpu.memory_space<vmem>>, vector<16x64xf32>
    %c1_198 = arith.constant 1 : index
    %c0_199 = arith.constant 0 : index
    %c0_200 = arith.constant 0 : index
    %701 = vector.load %arg12[%c1_198, %c0_199, %c0_200] : memref<2x1x64xf32, #tpu.memory_space<vmem>>, vector<1x1x64xf32>
    %702 = vector.shape_cast %701 : vector<1x1x64xf32> to vector<1x64xf32>
    %703 = vector.broadcast %702 : vector<1x64xf32> to vector<16x64xf32>
    %704 = arith.mulf %411, %703 : vector<16x64xf32>
    %705 = arith.addf %700, %704 : vector<16x64xf32>
    %706 = arith.negf %383 : vector<16x64xf32>
    %707 = math.exp %706 : vector<16x64xf32>
    %cst_201 = arith.constant 1.000000e+00 : f32
    %708 = vector.broadcast %cst_201 : f32 to vector<16x64xf32>
    %709 = arith.addf %708, %707 : vector<16x64xf32>
    %710 = arith.divf %708, %709 : vector<16x64xf32>
    %711 = arith.mulf %383, %710 : vector<16x64xf32>
    %712 = arith.mulf %705, %711 : vector<16x64xf32>
    %c1_202 = arith.constant 1 : index
    %c0_203 = arith.constant 0 : index
    %c0_204 = arith.constant 0 : index
    %713 = vector.load %arg13[%c1_202, %c0_203, %c0_204] : memref<2x64x32xf32, #tpu.memory_space<vmem>>, vector<1x64x32xf32>
    %714 = vector.shape_cast %713 : vector<1x64x32xf32> to vector<64x32xf32>
    %715 = arith.truncf %712 : vector<16x64xf32> to vector<16x64xbf16>
    %716 = arith.truncf %714 : vector<64x32xf32> to vector<64x32xbf16>
    %cst_205 = arith.constant dense<0.000000e+00> : vector<16x32xf32>
    %717 = tpu.matmul %715, %716, %cst_205 {dimension_numbers = #tpu.dot_dimension_numbers<[1], [0], [0], [1], [0, 0, 1, 1], [], []>} : vector<16x64xbf16>, vector<64x32xbf16>, vector<16x32xf32> -> vector<16x32xf32>
    %718 = arith.addf %717, %359 : vector<16x32xf32>
    %c0_206 = arith.constant 0 : index
    %c0_207 = arith.constant 0 : index
    %719 = vector.load %arg14[%c0_206, %c0_207] : memref<1x32xf32, #tpu.memory_space<vmem>>, vector<1x32xf32>
    %720 = arith.mulf %718, %718 : vector<16x32xf32>
    %cst_208 = arith.constant dense<0.000000e+00> : vector<16xf32>
    %721 = vector.multi_reduction <add>, %720, %cst_208 [1] : vector<16x32xf32> to vector<16xf32>
    %722 = vector.shape_cast %721 : vector<16xf32> to vector<16x1xf32>
    %cst_209 = arith.constant 3.200000e+01 : f32
    %723 = vector.broadcast %cst_209 : f32 to vector<16x1xf32>
    %724 = arith.divf %722, %723 : vector<16x1xf32>
    %cst_210 = arith.constant 9.99999974E-6 : f32
    %725 = vector.broadcast %cst_210 : f32 to vector<16x1xf32>
    %726 = arith.addf %724, %725 : vector<16x1xf32>
    %727 = math.rsqrt %726 : vector<16x1xf32>
    %728 = vector.broadcast %727 : vector<16x1xf32> to vector<16x32xf32>
    %729 = arith.mulf %718, %728 : vector<16x32xf32>
    %730 = vector.broadcast %719 : vector<1x32xf32> to vector<16x32xf32>
    %731 = arith.mulf %729, %730 : vector<16x32xf32>
    %c0_211 = arith.constant 0 : index
    %c0_212 = arith.constant 0 : index
    %732 = vector.load %arg15[%c0_211, %c0_212] : memref<16x32xf32, #tpu.memory_space<vmem>>, vector<16x32xf32>
    tpu.vector_store %arg15[%c0_211, %c0_212], %731 {strides = array<i32>} : memref<16x32xf32, #tpu.memory_space<vmem>>, vector<16x32xf32>,
    return
  }
  func.func @transform_0(%arg0: i32) -> (i32, i32) {
    %c0_i32 = arith.constant 0 : i32
    %c0_i32_0 = arith.constant 0 : i32
    %c0_i32_1 = arith.constant 0 : i32
    return %c0_i32, %c0_i32_0 : i32, i32
  }
  func.func @transform_1(%arg0: i32) -> (i32, i32, i32) {
    %c0_i32 = arith.constant 0 : i32
    %c0_i32_0 = arith.constant 0 : i32
    %c0_i32_1 = arith.constant 0 : i32
    %c0_i32_2 = arith.constant 0 : i32
    return %c0_i32, %c0_i32_0, %c0_i32_1 : i32, i32, i32
  }
  func.func @transform_2(%arg0: i32) -> (i32, i32, i32) {
    %c0_i32 = arith.constant 0 : i32
    %c0_i32_0 = arith.constant 0 : i32
    %c0_i32_1 = arith.constant 0 : i32
    %c0_i32_2 = arith.constant 0 : i32
    return %c0_i32, %c0_i32_0, %c0_i32_1 : i32, i32, i32
  }
  func.func @transform_3(%arg0: i32) -> (i32, i32, i32) {
    %c0_i32 = arith.constant 0 : i32
    %c0_i32_0 = arith.constant 0 : i32
    %c0_i32_1 = arith.constant 0 : i32
    %c0_i32_2 = arith.constant 0 : i32
    return %c0_i32, %c0_i32_0, %c0_i32_1 : i32, i32, i32
  }
  func.func @transform_4(%arg0: i32) -> (i32, i32, i32) {
    %c0_i32 = arith.constant 0 : i32
    %c0_i32_0 = arith.constant 0 : i32
    %c0_i32_1 = arith.constant 0 : i32
    %c0_i32_2 = arith.constant 0 : i32
    return %c0_i32, %c0_i32_0, %c0_i32_1 : i32, i32, i32
  }
  func.func @transform_5(%arg0: i32) -> (i32, i32, i32) {
    %c0_i32 = arith.constant 0 : i32
    %c0_i32_0 = arith.constant 0 : i32
    %c0_i32_1 = arith.constant 0 : i32
    %c0_i32_2 = arith.constant 0 : i32
    return %c0_i32, %c0_i32_0, %c0_i32_1 : i32, i32, i32
  }
  func.func @transform_6(%arg0: i32) -> (i32, i32, i32) {
    %c0_i32 = arith.constant 0 : i32
    %c0_i32_0 = arith.constant 0 : i32
    %c0_i32_1 = arith.constant 0 : i32
    %c0_i32_2 = arith.constant 0 : i32
    return %c0_i32, %c0_i32_0, %c0_i32_1 : i32, i32, i32
  }
  func.func @transform_7(%arg0: i32) -> (i32, i32, i32) {
    %c0_i32 = arith.constant 0 : i32
    %c0_i32_0 = arith.constant 0 : i32
    %c0_i32_1 = arith.constant 0 : i32
    %c0_i32_2 = arith.constant 0 : i32
    return %c0_i32, %c0_i32_0, %c0_i32_1 : i32, i32, i32
  }
  func.func @transform_8(%arg0: i32) -> (i32, i32, i32) {
    %c0_i32 = arith.constant 0 : i32
    %c0_i32_0 = arith.constant 0 : i32
    %c0_i32_1 = arith.constant 0 : i32
    %c0_i32_2 = arith.constant 0 : i32
    return %c0_i32, %c0_i32_0, %c0_i32_1 : i32, i32, i32
  }
  func.func @transform_9(%arg0: i32) -> (i32, i32, i32) {
    %c0_i32 = arith.constant 0 : i32
    %c0_i32_0 = arith.constant 0 : i32
    %c0_i32_1 = arith.constant 0 : i32
    %c0_i32_2 = arith.constant 0 : i32
    return %c0_i32, %c0_i32_0, %c0_i32_1 : i32, i32, i32
  }
  func.func @transform_10(%arg0: i32) -> (i32, i32, i32) {
    %c0_i32 = arith.constant 0 : i32
    %c0_i32_0 = arith.constant 0 : i32
    %c0_i32_1 = arith.constant 0 : i32
    %c0_i32_2 = arith.constant 0 : i32
    return %c0_i32, %c0_i32_0, %c0_i32_1 : i32, i32, i32
  }
  func.func @transform_11(%arg0: i32) -> (i32, i32, i32) {
    %c0_i32 = arith.constant 0 : i32
    %c0_i32_0 = arith.constant 0 : i32
    %c0_i32_1 = arith.constant 0 : i32
    %c0_i32_2 = arith.constant 0 : i32
    return %c0_i32, %c0_i32_0, %c0_i32_1 : i32, i32, i32
  }
  func.func @transform_12(%arg0: i32) -> (i32, i32, i32) {
    %c0_i32 = arith.constant 0 : i32
    %c0_i32_0 = arith.constant 0 : i32
    %c0_i32_1 = arith.constant 0 : i32
    %c0_i32_2 = arith.constant 0 : i32
    return %c0_i32, %c0_i32_0, %c0_i32_1 : i32, i32, i32
  }
  func.func @transform_13(%arg0: i32) -> (i32, i32) {
    %c0_i32 = arith.constant 0 : i32
    %c0_i32_0 = arith.constant 0 : i32
    %c0_i32_1 = arith.constant 0 : i32
    return %c0_i32, %c0_i32_0 : i32, i32
  }
  func.func @transform_14(%arg0: i32) -> (i32, i32) {
    %c0_i32 = arith.constant 0 : i32
    %c0_i32_0 = arith.constant 0 : i32
    %c0_i32_1 = arith.constant 0 : i32
    return %c0_i32, %c0_i32_0 : i32, i32
  }
}

</mosaic_0001>

<llo_original>
// kernel: mamba_att_forward.1
$region0: #{mamba_att_forward.1}
  #allocation0 [shape = 'u32[]', space=smem, size = 0x4, offset = 0x4, fixed_abs, tag = 'smem constant byte address 0x4 - core index']
  #allocation1 [shape = 'u32[144,128]{1,0:T(1,128)}', space=vmem, size = 0x12000, scoped, tag = 'internal scratch']
  #allocation2 [shape = 'f32[16,64]{1,0:T(8,128)}', space=vmem, size = 0x2000, scoped, tag = 'scratch operand']
  %s0 = inlined_call_operand.vmem [shape: f32[16,32], index: 0, kind: input, shape index: {}]
  %s1 = inlined_call_operand.vmem [shape: f32[2,1,32], index: 1, kind: input, shape index: {}]
  %s2 = inlined_call_operand.vmem [shape: f32[2,32,64], index: 2, kind: input, shape index: {}]
  %s3 = inlined_call_operand.hbm [shape: f32[2,32,64], index: 3, kind: input, shape index: {}]
  %s4 = inlined_call_operand.vmem [shape: f32[8,16,64], index: 4, kind: input, shape index: {}]
  %s5 = inlined_call_operand.vmem [shape: f32[2,1,64], index: 5, kind: input, shape index: {}]
  %s6 = inlined_call_operand.hbm [shape: f32[2,16,64], index: 6, kind: input, shape index: {}]
  %s7 = inlined_call_operand.hbm [shape: f32[2,16,64], index: 7, kind: input, shape index: {}]
  %s8 = inlined_call_operand.hbm [shape: f32[2,64,64], index: 8, kind: input, shape index: {}]
  %s9 = inlined_call_operand.vmem [shape: f32[2,1,64], index: 9, kind: input, shape index: {}]
  %s10 = inlined_call_operand.hbm [shape: f32[2,16,128], index: 10, kind: input, shape index: {}]
  %s11 = inlined_call_operand.vmem [shape: f32[2,1,64], index: 11, kind: input, shape index: {}]
  %s12 = inlined_call_operand.vmem [shape: f32[2,64,32], index: 12, kind: input, shape index: {}]
  %s13 = inlined_call_operand.vmem [shape: f32[1,32], index: 13, kind: input, shape index: {}]
  %s14 = inlined_call_operand.hbm [shape: f32[16,32], index: 14, kind: output, shape index: {}]
  %s15 = sld [smem:[#allocation0]]
  $region86: #{mamba_att_forward.1} parent=0
    _
  %s17 = ssub.s32 1, %s15
  %s18 = scalar_select 0, %s17, %s15
  $region1: #{mamba_att_forward.1} parent=0
    #allocation3 [shape = 'u8[32768]{0}', space=vmem, size = 0x8000, scoped, tag = 'input window, operand 3, single buffered']
    #allocation4 [shape = 's32[1]{0}', space=sflag, size = 0x4, scoped, tag = 'scoped memory for mamba_att_forward.1']
    #allocation5 [shape = 's32[1]{0}', space=sflag, size = 0x4, scoped, tag = 'scoped memory for mamba_att_forward.1']
    #allocation6 [shape = 'u8[16384]{0}', space=vmem, size = 0x4000, scoped, tag = 'input window, operand 6, single buffered']
    #allocation7 [shape = 's32[1]{0}', space=sflag, size = 0x4, scoped, tag = 'scoped memory for mamba_att_forward.1']
    #allocation8 [shape = 'u8[16384]{0}', space=vmem, size = 0x4000, scoped, tag = 'input window, operand 7, single buffered']
    #allocation9 [shape = 'u8[65536]{0}', space=vmem, size = 0x10000, scoped, tag = 'input window, operand 8, single buffered']
    #allocation10 [shape = 's32[1]{0}', space=sflag, size = 0x4, scoped, tag = 'scoped memory for mamba_att_forward.1']
    #allocation11 [shape = 'u8[16384]{0}', space=vmem, size = 0x4000, scoped, tag = 'input window, operand 10, single buffered']
    #allocation12 [shape = 'u8[8192]{0}', space=vmem, size = 0x2000, scoped, tag = 'output window, operand 0, single buffered']
    %19 = vsyncpa [#allocation4], 0
    %20 = vsyncpa [#allocation7], 0
    %21 = vsyncpa [#allocation10], 0
    %22 = vsyncpa [#allocation5], 0
    // Predicated region
    $region2: #{mamba_att_forward.1} parent=1 // pred_check
      _
    $region3: #{mamba_att_forward.1} parent=1 // pred_check_branch
      %24 = sbr.rel (0) target = $region5
    $region4: #{mamba_att_forward.1} parent=1 // pred_region
      _
    $region5: #{mamba_att_forward.1} parent=1 // pred_fallthru
      _
    // Predicated region
    $region6: #{mamba_att_forward.1} parent=1 // pred_check
      _
    $region7: #{mamba_att_forward.1} parent=1 // pred_check_branch
      %26 = sbr.rel (0) target = $region9
    $region8: #{mamba_att_forward.1} parent=1 // pred_region
      _
    $region9: #{mamba_att_forward.1} parent=1 // pred_fallthru
      _
    // Predicated region
    $region10: #{mamba_att_forward.1} parent=1 // pred_check
      _
    $region11: #{mamba_att_forward.1} parent=1 // pred_check_branch
      %28 = sbr.rel (0) target = $region13
    $region12: #{mamba_att_forward.1} parent=1 // pred_region
      _
    $region13: #{mamba_att_forward.1} parent=1 // pred_fallthru
      _
    // Predicated region
    $region14: #{mamba_att_forward.1} parent=1 // pred_check
      _
    $region15: #{mamba_att_forward.1} parent=1 // pred_check_branch
      %30 = sbr.rel (0) target = $region17
    $region16: #{mamba_att_forward.1} parent=1 // pred_region
      %s32 = ssub.s32 1024, 1024
      %33 = vsyncadd [#allocation4], %s32
      %s34 = sshll.u32 [#allocation3], 4
      %s35 = int_to_ptr.vmem [resolvable:$true] %s34
      %40 = dma.hbm_to_vmem [thread:$0]  %s3, 1024, %s35, [#allocation4], 128, 128, 8
    $region17: #{mamba_att_forward.1} parent=1 // pred_fallthru
      _
    // Predicated region
    $region18: #{mamba_att_forward.1} parent=1 // pred_check
      _
    $region19: #{mamba_att_forward.1} parent=1 // pred_check_branch
      %42 = sbr.rel (0) target = $region21
    $region20: #{mamba_att_forward.1} parent=1 // pred_region
      _
    $region21: #{mamba_att_forward.1} parent=1 // pred_fallthru
      _
    // Predicated region
    $region22: #{mamba_att_forward.1} parent=1 // pred_check
      _
    $region23: #{mamba_att_forward.1} parent=1 // pred_check_branch
      %44 = sbr.rel (0) target = $region25
    $region24: #{mamba_att_forward.1} parent=1 // pred_region
      _
    $region25: #{mamba_att_forward.1} parent=1 // pred_fallthru
      _
    // Predicated region
    $region26: #{mamba_att_forward.1} parent=1 // pred_check
      _
    $region27: #{mamba_att_forward.1} parent=1 // pred_check_branch
      %46 = sbr.rel (0) target = $region29
    $region28: #{mamba_att_forward.1} parent=1 // pred_region
      %s48 = ssub.s32 512, 512
      %49 = vsyncadd [#allocation7], %s48
      %s50 = sshll.u32 [#allocation6], 4
      %s51 = int_to_ptr.vmem [resolvable:$true] %s50
      %56 = dma.hbm_to_vmem [thread:$0]  %s6, 512, %s51, [#allocation7], 128, 128, 8
    $region29: #{mamba_att_forward.1} parent=1 // pred_fallthru
      _
    // Predicated region
    $region30: #{mamba_att_forward.1} parent=1 // pred_check
      _
    $region31: #{mamba_att_forward.1} parent=1 // pred_check_branch
      %58 = sbr.rel (0) target = $region33
    $region32: #{mamba_att_forward.1} parent=1 // pred_region
      %s60 = ssub.s32 512, 512
      %61 = vsyncadd [#allocation7], %s60
      %s62 = sshll.u32 [#allocation8], 4
      %s63 = int_to_ptr.vmem [resolvable:$true] %s62
      %68 = dma.hbm_to_vmem [thread:$0]  %s7, 512, %s63, [#allocation7], 128, 128, 8
    $region33: #{mamba_att_forward.1} parent=1 // pred_fallthru
      _
    // Predicated region
    $region34: #{mamba_att_forward.1} parent=1 // pred_check
      _
    $region35: #{mamba_att_forward.1} parent=1 // pred_check_branch
      %70 = sbr.rel (0) target = $region37
    $region36: #{mamba_att_forward.1} parent=1 // pred_region
      %s72 = ssub.s32 2048, 2048
      %73 = vsyncadd [#allocation10], %s72
      %s74 = sshll.u32 [#allocation9], 4
      %s75 = int_to_ptr.vmem [resolvable:$true] %s74
      %80 = dma.hbm_to_vmem [thread:$0]  %s8, 2048, %s75, [#allocation10], 128, 128, 8
    $region37: #{mamba_att_forward.1} parent=1 // pred_fallthru
      _
    // Predicated region
    $region38: #{mamba_att_forward.1} parent=1 // pred_check
      _
    $region39: #{mamba_att_forward.1} parent=1 // pred_check_branch
      %82 = sbr.rel (0) target = $region41
    $region40: #{mamba_att_forward.1} parent=1 // pred_region
      _
    $region41: #{mamba_att_forward.1} parent=1 // pred_fallthru
      _
    // Predicated region
    $region42: #{mamba_att_forward.1} parent=1 // pred_check
      _
    $region43: #{mamba_att_forward.1} parent=1 // pred_check_branch
      %84 = sbr.rel (0) target = $region45
    $region44: #{mamba_att_forward.1} parent=1 // pred_region
      %s86 = ssub.s32 512, 512
      %87 = vsyncadd [#allocation10], %s86
      %s88 = sshll.u32 [#allocation11], 4
      %s89 = int_to_ptr.vmem [resolvable:$true] %s88
      %94 = dma.hbm_to_vmem [thread:$0]  %s10, 512, %s89, [#allocation10], 128, 128, 8
    $region45: #{mamba_att_forward.1} parent=1 // pred_fallthru
      _
    // Predicated region
    $region46: #{mamba_att_forward.1} parent=1 // pred_check
      _
    $region47: #{mamba_att_forward.1} parent=1 // pred_check_branch
      %96 = sbr.rel (0) target = $region49
    $region48: #{mamba_att_forward.1} parent=1 // pred_region
      _
    $region49: #{mamba_att_forward.1} parent=1 // pred_fallthru
      _
    // Predicated region
    $region50: #{mamba_att_forward.1} parent=1 // pred_check
      _
    $region51: #{mamba_att_forward.1} parent=1 // pred_check_branch
      %98 = sbr.rel (0) target = $region53
    $region52: #{mamba_att_forward.1} parent=1 // pred_region
      _
    $region53: #{mamba_att_forward.1} parent=1 // pred_fallthru
      _
    // Predicated region
    $region54: #{mamba_att_forward.1} parent=1 // pred_check
      _
    $region55: #{mamba_att_forward.1} parent=1 // pred_check_branch
      %100 = sbr.rel (0) target = $region57
    $region56: #{mamba_att_forward.1} parent=1 // pred_region
      _
    $region57: #{mamba_att_forward.1} parent=1 // pred_fallthru
      _
    // Predicated region
    $region58: #{mamba_att_forward.1} parent=1 // pred_check
      _
    $region59: #{mamba_att_forward.1} parent=1 // pred_check_branch
      %102 = sbr.rel (0) target = $region61
    $region60: #{mamba_att_forward.1} parent=1 // pred_region
      %103 = dma.done [#allocation4], 1024
    $region61: #{mamba_att_forward.1} parent=1 // pred_fallthru
      _
    // Predicated region
    $region62: #{mamba_att_forward.1} parent=1 // pred_check
      _
    $region63: #{mamba_att_forward.1} parent=1 // pred_check_branch
      %105 = sbr.rel (0) target = $region65
    $region64: #{mamba_att_forward.1} parent=1 // pred_region
      %106 = dma.done [#allocation7], 512
    $region65: #{mamba_att_forward.1} parent=1 // pred_fallthru
      _
    // Predicated region
    $region66: #{mamba_att_forward.1} parent=1 // pred_check
      _
    $region67: #{mamba_att_forward.1} parent=1 // pred_check_branch
      %108 = sbr.rel (0) target = $region69
    $region68: #{mamba_att_forward.1} parent=1 // pred_region
      %109 = dma.done [#allocation7], 512
    $region69: #{mamba_att_forward.1} parent=1 // pred_fallthru
      _
    // Predicated region
    $region70: #{mamba_att_forward.1} parent=1 // pred_check
      _
    $region71: #{mamba_att_forward.1} parent=1 // pred_check_branch
      %111 = sbr.rel (0) target = $region73
    $region72: #{mamba_att_forward.1} parent=1 // pred_region
      %112 = dma.done [#allocation10], 2048
    $region73: #{mamba_att_forward.1} parent=1 // pred_fallthru
      _
    // Predicated region
    $region74: #{mamba_att_forward.1} parent=1 // pred_check
      _
    $region75: #{mamba_att_forward.1} parent=1 // pred_check_branch
      %114 = sbr.rel (0) target = $region77
    $region76: #{mamba_att_forward.1} parent=1 // pred_region
      %115 = dma.done [#allocation10], 512
    $region77: #{mamba_att_forward.1} parent=1 // pred_fallthru
      _
    %v117 = vld [vmem:[%s0] sm:$0xff]
    %v118 = vld [vmem:[%s0 + $0x8] sm:$0xff]
    %v119 = vld [vmem:[%s1] sm:$0x1]
    %v120 = vmul.f32 %v117, %v117
    %v121 = vmul.f32 %v118, %v118
    %vm122 = vcmask 261120
    %v123 = vsel %vm122, %v120, 0.0
    %124 = vadd.xlane.f32.xlu0 %v123
    %v125 = vpop.xlane.xlu0 %124
    %v126 = vsel %vm122, %v121, 0.0
    %127 = vadd.xlane.f32.xlu0 %v126
    %v128 = vpop.xlane.xlu0 %127
    %v129 = vrcp.pop 32.0
    %v130 = vmul.f32 %v125, %v129
    %v131 = vmul.f32 %v128, %v129
    %v132 = vadd.f32 %v130, 1e-05
    %v133 = vadd.f32 %v131, 1e-05
    %v134 = vrsqrt.pop %v132
    %v135 = vrsqrt.pop %v133
    %v136 = vmul.f32 %v117, %v134
    %v137 = vmul.f32 %v118, %v135
    %v139 = vlaneseq
    %v140 = vshrl.u32 %v139, 7
    %v141 = vsub.s32 0, %v140
    %v142 = vrot.slane %v119, %v141
    %v144 = vmul.f32 %v136, %v142
    %v145 = vmul.f32 %v137, %v142
    %v146 = vld [vmem:[%s2] sm:$0xff]
    %v147 = vld [vmem:[%s2 + $0x8] sm:$0xff]
    %v148 = vld [vmem:[%s2 + $0x10] sm:$0xff]
    %v149 = vld [vmem:[%s2 + $0x18] sm:$0xff]
    %v150 = vpack.c.bf16 %v145, %v144
    %v151 = vpack.c.bf16 %v147, %v146
    %v152 = vpack.c.bf16 %v149, %v148
    %v154 = vsel %vm122, %v150, 0
    %156 = vmatprep.subr.bf16.mxu0 0
    %157 = vmatpush1.bf16.msra.mxu0 %v151
    %158 = vmatprep.subr.bf16.mxu0 0
    %159 = vmatpush1.bf16.msra.mxu0 %v152
    %160 = vmatprep.subr.bf16.mxu0 0
    %161 = vmatpush1.bf16.msra.mxu0 0
    %162 = vmatprep.subr.bf16.mxu0 0
    %163 = vmatpush1.bf16.msra.mxu0 0
    %164 = vmatprep.subr.bf16.mxu0 0
    %165 = vmatpush1.bf16.msra.mxu0 0
    %166 = vmatprep.subr.bf16.mxu0 0
    %167 = vmatpush1.bf16.msra.mxu0 0
    %168 = vmatprep.subr.bf16.mxu0 0
    %169 = vmatpush1.bf16.msra.mxu0 0
    %170 = vmatprep.subr.bf16.mxu0 0
    %171 = vmatpush1.bf16.msra.mxu0 0
    %172 = vmatprep.subr.bf16.mxu0 0
    %173 = vmatpush1.bf16.msra.mxu0 0
    %174 = vmatprep.subr.bf16.mxu0 0
    %175 = vmatpush1.bf16.msra.mxu0 0
    %176 = vmatprep.subr.bf16.mxu0 0
    %177 = vmatpush1.bf16.msra.mxu0 0
    %178 = vmatprep.subr.bf16.mxu0 0
    %179 = vmatpush1.bf16.msra.mxu0 0
    %180 = vmatprep.subr.bf16.mxu0 0
    %181 = vmatpush1.bf16.msra.mxu0 0
    %182 = vmatprep.subr.bf16.mxu0 0
    %183 = vmatpush1.bf16.msra.mxu0 0
    %184 = vmatprep.subr.bf16.mxu0 0
    %185 = vmatpush1.bf16.msra.mxu0 0
    %186 = vmatprep.subr.bf16.mxu0 0
    %187 = vmatpush1.bf16.msra.mxu0 0
    %188 = vmatprep.mubr.bf16.mxu0 0
    %189 = vmatmul.mubr.bf16.gmra.mrb[0].mxu0 %v154
    %v190 = vpop.f32.mrb[0].mxu0
    %v191 = vadd.f32 0.0, %v190
    %v192 = vpop.f32.mrb[0].mxu0
    %v193 = vpop.f32.mrb[0].mxu0
    %v194 = vadd.f32 0.0, %v193
    %v195 = vpop.f32.mrb[0].mxu0
    %196 = vdwg.mxu0
    %v197 = vld [vmem:[#allocation3] sm:$0xff]
    %v198 = vld [vmem:[#allocation3 + $0x8] sm:$0xff]
    %v199 = vld [vmem:[#allocation3 + $0x10] sm:$0xff]
    %v200 = vld [vmem:[#allocation3 + $0x18] sm:$0xff]
    %v201 = vpack.c.bf16 %v198, %v197
    %v202 = vpack.c.bf16 %v200, %v199
    %203 = vmatprep.subr.bf16.mxu0 0
    %204 = vmatpush1.bf16.msra.mxu0 %v201
    %205 = vmatprep.subr.bf16.mxu0 0
    %206 = vmatpush1.bf16.msra.mxu0 %v202
    %207 = vmatprep.subr.bf16.mxu0 0
    %208 = vmatpush1.bf16.msra.mxu0 0
    %209 = vmatprep.subr.bf16.mxu0 0
    %210 = vmatpush1.bf16.msra.mxu0 0
    %211 = vmatprep.subr.bf16.mxu0 0
    %212 = vmatpush1.bf16.msra.mxu0 0
    %213 = vmatprep.subr.bf16.mxu0 0
    %214 = vmatpush1.bf16.msra.mxu0 0
    %215 = vmatprep.subr.bf16.mxu0 0
    %216 = vmatpush1.bf16.msra.mxu0 0
    %217 = vmatprep.subr.bf16.mxu0 0
    %218 = vmatpush1.bf16.msra.mxu0 0
    %219 = vmatprep.subr.bf16.mxu0 0
    %220 = vmatpush1.bf16.msra.mxu0 0
    %221 = vmatprep.subr.bf16.mxu0 0
    %222 = vmatpush1.bf16.msra.mxu0 0
    %223 = vmatprep.subr.bf16.mxu0 0
    %224 = vmatpush1.bf16.msra.mxu0 0
    %225 = vmatprep.subr.bf16.mxu0 0
    %226 = vmatpush1.bf16.msra.mxu0 0
    %227 = vmatprep.subr.bf16.mxu0 0
    %228 = vmatpush1.bf16.msra.mxu0 0
    %229 = vmatprep.subr.bf16.mxu0 0
    %230 = vmatpush1.bf16.msra.mxu0 0
    %231 = vmatprep.subr.bf16.mxu0 0
    %232 = vmatpush1.bf16.msra.mxu0 0
    %233 = vmatprep.subr.bf16.mxu0 0
    %234 = vmatpush1.bf16.msra.mxu0 0
    %235 = vmatprep.mubr.bf16.mxu0 0
    %236 = vmatmul.mubr.bf16.gmra.mrb[0].mxu0 %v154
    %v237 = vpop.f32.mrb[0].mxu0
    %v238 = vadd.f32 0.0, %v237
    %v239 = vpop.f32.mrb[0].mxu0
    %v240 = vpop.f32.mrb[0].mxu0
    %v241 = vadd.f32 0.0, %v240
    %v242 = vpop.f32.mrb[0].mxu0
    %243 = vdwg.mxu0
    %v244 = vld [vmem:[%s5] sm:$0x1]
    %v245 = vld [vmem:[%s4] sm:$0xff]
    %v246 = vld [vmem:[%s4 + $0x8] sm:$0xff]
    %v247 = vmul.f32 %v245, %v191
    %v248 = vmul.f32 %v246, %v194
    %v250 = vlaneseq
    %v251 = vshrl.u32 %v250, 7
    %v252 = vsub.s32 0, %v251
    %v253 = vrot.slane %v244, %v252
    %v255 = vadd.f32 %v253, %v247
    %v256 = vadd.f32 %v253, %v248
    %s257 = scalar_lea.vmem %s4, 16
    %v258 = vld [vmem:[%s257] sm:$0xff]
    %v259 = vld [vmem:[%s257 + $0x8] sm:$0xff]
    %v260 = vrot.slane %v191, 7
    %v261 = vrot.slane %v194, 7
    %v262 = vlaneseq
    %v263 = vshrl.u32 %v262, 7
    %vm264 = vcmp.lt.s32.totalorder %v263, 1
    %v265 = vsel %vm264, %v260, %v261
    %v266 = vsel %vm264, %v261, %v260
    %v267 = vmul.f32 %v258, %v266
    %v268 = vmul.f32 %v259, %v265
    %v269 = vadd.f32 %v255, %v267
    %v270 = vadd.f32 %v256, %v268
    %s271 = scalar_lea.vmem %s4, 32
    %v272 = vld [vmem:[%s271] sm:$0xff]
    %v273 = vld [vmem:[%s271 + $0x8] sm:$0xff]
    %v274 = vrot.slane %v191, 6
    %v275 = vrot.slane %v194, 6
    %vm276 = vcmp.lt.s32.totalorder %v263, 2
    %v277 = vsel %vm276, %v274, %v275
    %v278 = vsel %vm276, %v275, %v274
    %v279 = vmul.f32 %v272, %v278
    %v280 = vmul.f32 %v273, %v277
    %v281 = vadd.f32 %v269, %v279
    %v282 = vadd.f32 %v270, %v280
    %s283 = scalar_lea.vmem %s4, 48
    %v284 = vld [vmem:[%s283] sm:$0xff]
    %v285 = vld [vmem:[%s283 + $0x8] sm:$0xff]
    %v286 = vrot.slane %v191, 5
    %v287 = vrot.slane %v194, 5
    %vm288 = vcmp.lt.s32.totalorder %v263, 3
    %v289 = vsel %vm288, %v286, %v287
    %v290 = vsel %vm288, %v287, %v286
    %v291 = vmul.f32 %v284, %v290
    %v292 = vmul.f32 %v285, %v289
    %v293 = vadd.f32 %v281, %v291
    %v294 = vadd.f32 %v282, %v292
    %v295 = vxor.u32 %v293, 2147483648
    %v296 = vxor.u32 %v294, 2147483648
    %v297 = vmul.f32 %v295, 1.442695
    %v298 = vpow.pop %v297
    %v299 = vmul.f32 %v296, 1.442695
    %v300 = vpow.pop %v299
    %v301 = vadd.f32 %v298, 1.0
    %v302 = vadd.f32 %v300, 1.0
    %v303 = vrcp.pop %v301
    %v304 = vmul.f32 1.0, %v303
    %v305 = vrcp.pop %v302
    %v306 = vmul.f32 1.0, %v305
    %v307 = vmul.f32 %v293, %v304
    %v308 = vmul.f32 %v294, %v306
    %v309 = vld [vmem:[#allocation9] sm:$0xff]
    %v310 = vld [vmem:[#allocation9 + $0x8] sm:$0xff]
    %v311 = vld [vmem:[#allocation9 + $0x10] sm:$0xff]
    %v312 = vld [vmem:[#allocation9 + $0x18] sm:$0xff]
    %v313 = vld [vmem:[#allocation9 + $0x20] sm:$0xff]
    %v314 = vld [vmem:[#allocation9 + $0x28] sm:$0xff]
    %v315 = vld [vmem:[#allocation9 + $0x30] sm:$0xff]
    %v316 = vld [vmem:[#allocation9 + $0x38] sm:$0xff]
    %v317 = vpack.c.bf16 %v308, %v307
    %v318 = vpack.c.bf16 %v310, %v309
    %v319 = vpack.c.bf16 %v312, %v311
    %v320 = vpack.c.bf16 %v314, %v313
    %v321 = vpack.c.bf16 %v316, %v315
    %v322 = vld [vmem:[%s9] sm:$0x1]
    %v324 = vlaneseq
    %v325 = vshrl.u32 %v324, 7
    %v326 = vsub.s32 0, %v325
    %v327 = vrot.slane %v322, %v326
    %vm329 = vcmask 523264
    %v331 = vsel %vm329, %v317, 0
    %333 = vmatprep.subr.bf16.mxu0 0
    %334 = vmatpush1.bf16.msra.mxu0 %v318
    %335 = vmatprep.subr.bf16.mxu0 0
    %336 = vmatpush1.bf16.msra.mxu0 %v319
    %337 = vmatprep.subr.bf16.mxu0 0
    %338 = vmatpush1.bf16.msra.mxu0 %v320
    %339 = vmatprep.subr.bf16.mxu0 0
    %340 = vmatpush1.bf16.msra.mxu0 %v321
    %341 = vmatprep.subr.bf16.mxu0 0
    %342 = vmatpush1.bf16.msra.mxu0 0
    %343 = vmatprep.subr.bf16.mxu0 0
    %344 = vmatpush1.bf16.msra.mxu0 0
    %345 = vmatprep.subr.bf16.mxu0 0
    %346 = vmatpush1.bf16.msra.mxu0 0
    %347 = vmatprep.subr.bf16.mxu0 0
    %348 = vmatpush1.bf16.msra.mxu0 0
    %349 = vmatprep.subr.bf16.mxu0 0
    %350 = vmatpush1.bf16.msra.mxu0 0
    %351 = vmatprep.subr.bf16.mxu0 0
    %352 = vmatpush1.bf16.msra.mxu0 0
    %353 = vmatprep.subr.bf16.mxu0 0
    %354 = vmatpush1.bf16.msra.mxu0 0
    %355 = vmatprep.subr.bf16.mxu0 0
    %356 = vmatpush1.bf16.msra.mxu0 0
    %357 = vmatprep.subr.bf16.mxu0 0
    %358 = vmatpush1.bf16.msra.mxu0 0
    %359 = vmatprep.subr.bf16.mxu0 0
    %360 = vmatpush1.bf16.msra.mxu0 0
    %361 = vmatprep.subr.bf16.mxu0 0
    %362 = vmatpush1.bf16.msra.mxu0 0
    %363 = vmatprep.subr.bf16.mxu0 0
    %364 = vmatpush1.bf16.msra.mxu0 0
    %365 = vmatprep.mubr.bf16.mxu0 0
    %366 = vmatmul.mubr.bf16.gmra.mrb[0].mxu0 %v331
    %v367 = vpop.f32.mrb[0].mxu0
    %v368 = vadd.f32 %v327, %v367
    %v369 = vpop.f32.mrb[0].mxu0
    %v370 = vpop.f32.mrb[0].mxu0
    %v371 = vadd.f32 %v327, %v370
    %v372 = vpop.f32.mrb[0].mxu0
    %373 = vdwg.mxu0
    %v374 = vmax.f32 %v368, 0.0
    %v375 = vmax.f32 %v371, 0.0
    %vm376 = vcmp.ne.f32.partialorder %v368, %v368
    %vm377 = vcmp.ne.f32.partialorder %v371, %v371
    %v378 = vadd.f32 %v368, 0.0
    %v379 = vadd.f32 %v371, 0.0
    %v380 = vand.u32 2147483647, %v368
    %v381 = vand.u32 2147483647, %v371
    %v382 = vsub.f32 0.0, %v380
    %v383 = vsub.f32 0.0, %v381
    %v384 = vmul.f32 %v382, 1.442695
    %v385 = vpow.pop %v384
    %v386 = vmul.f32 %v383, 1.442695
    %v387 = vpow.pop %v386
    %v388 = vadd.f32 %v385, 1.0
    %v389 = vlog2.pop %v388
    %v390 = vmul.f32 %v389, 0.6931472
    %v391 = vmul.f32 -0.5, %v385
    %v392 = vadd.f32 %v391, 1.0
    %v393 = vmul.f32 %v392, %v385
    %v394 = vand.u32 2147483647, %v385
    %vm395 = vcmp.lt.f32.partialorder %v394, 0.0004427343
    %v396 = vsel %vm395, %v393, %v390
    %v397 = vadd.f32 %v387, 1.0
    %v398 = vlog2.pop %v397
    %v399 = vmul.f32 %v398, 0.6931472
    %v400 = vmul.f32 -0.5, %v387
    %v401 = vadd.f32 %v400, 1.0
    %v402 = vmul.f32 %v401, %v387
    %v403 = vand.u32 2147483647, %v387
    %vm404 = vcmp.lt.f32.partialorder %v403, 0.0004427343
    %v405 = vsel %vm404, %v402, %v399
    %v406 = vadd.f32 %v374, %v396
    %v407 = vadd.f32 %v375, %v405
    %v408 = vsel %vm376, %v378, %v406
    %v409 = vsel %vm377, %v379, %v407
    %v410 = vmul.f32 %v408, %v307
    %v411 = vmul.f32 %v409, %v308
    %v412 = vld [vmem:[#allocation6] sm:$0xff]
    %v413 = vld [vmem:[#allocation6 + $0x8] sm:$0xff]
    %v414 = vpack.c.bf16 %v413, %v412
    %v416 = vsel %vm329, %v414, 0
    %418 = vmatprep.subr.bf16.mxu0 0
    %419 = vmatpush1.bf16.xpose.msra.mxu0 %v331
    %420 = vmatprep.subr.bf16.mxu0 0
    %421 = vmatpush1.bf16.xpose.msra.mxu0 0
    %422 = vmatprep.subr.bf16.mxu0 0
    %423 = vmatpush1.bf16.xpose.msra.mxu0 0
    %424 = vmatprep.subr.bf16.mxu0 0
    %425 = vmatpush1.bf16.xpose.msra.mxu0 0
    %426 = vmatprep.subr.bf16.mxu0 0
    %427 = vmatpush1.bf16.xpose.msra.mxu0 0
    %428 = vmatprep.subr.bf16.mxu0 0
    %429 = vmatpush1.bf16.xpose.msra.mxu0 0
    %430 = vmatprep.subr.bf16.mxu0 0
    %431 = vmatpush1.bf16.xpose.msra.mxu0 0
    %432 = vmatprep.subr.bf16.mxu0 0
    %433 = vmatpush1.bf16.xpose.msra.mxu0 0
    %434 = vmatprep.subr.bf16.mxu0 0
    %435 = vmatpush1.bf16.xpose.msra.mxu0 0
    %436 = vmatprep.subr.bf16.mxu0 0
    %437 = vmatpush1.bf16.xpose.msra.mxu0 0
    %438 = vmatprep.subr.bf16.mxu0 0
    %439 = vmatpush1.bf16.xpose.msra.mxu0 0
    %440 = vmatprep.subr.bf16.mxu0 0
    %441 = vmatpush1.bf16.xpose.msra.mxu0 0
    %442 = vmatprep.subr.bf16.mxu0 0
    %443 = vmatpush1.bf16.xpose.msra.mxu0 0
    %444 = vmatprep.subr.bf16.mxu0 0
    %445 = vmatpush1.bf16.xpose.msra.mxu0 0
    %446 = vmatprep.subr.bf16.mxu0 0
    %447 = vmatpush1.bf16.xpose.msra.mxu0 0
    %448 = vmatprep.subr.bf16.mxu0 0
    %449 = vmatpush1.bf16.xpose.msra.mxu0 0
    %450 = vmatprep.mubr.bf16.mxu0 0
    %451 = vmatmul.mubr.bf16.gmra.mrb[0].mxu0 %v416
    %v452 = vpop.f32.mrb[0].mxu0
    %v453 = vadd.f32 0.0, %v452
    %v454 = vpop.f32.mrb[0].mxu0
    %v455 = vpop.f32.mrb[0].mxu0
    %v456 = vadd.f32 0.0, %v455
    %v457 = vpop.f32.mrb[0].mxu0
    %458 = vdwg.mxu0
    %v459 = vld [vmem:[#allocation8] sm:$0xff]
    %v460 = vld [vmem:[#allocation8 + $0x8] sm:$0xff]
    %v461 = vpack.c.bf16 %v460, %v459
    %v463 = vsel %vm329, %v461, 0
    %465 = vmatprep.subr.bf16.mxu0 0
    %466 = vmatpush1.bf16.xpose.msra.mxu0 %v331
    %467 = vmatprep.subr.bf16.mxu0 0
    %468 = vmatpush1.bf16.xpose.msra.mxu0 0
    %469 = vmatprep.subr.bf16.mxu0 0
    %470 = vmatpush1.bf16.xpose.msra.mxu0 0
    %471 = vmatprep.subr.bf16.mxu0 0
    %472 = vmatpush1.bf16.xpose.msra.mxu0 0
    %473 = vmatprep.subr.bf16.mxu0 0
    %474 = vmatpush1.bf16.xpose.msra.mxu0 0
    %475 = vmatprep.subr.bf16.mxu0 0
    %476 = vmatpush1.bf16.xpose.msra.mxu0 0
    %477 = vmatprep.subr.bf16.mxu0 0
    %478 = vmatpush1.bf16.xpose.msra.mxu0 0
    %479 = vmatprep.subr.bf16.mxu0 0
    %480 = vmatpush1.bf16.xpose.msra.mxu0 0
    %481 = vmatprep.subr.bf16.mxu0 0
    %482 = vmatpush1.bf16.xpose.msra.mxu0 0
    %483 = vmatprep.subr.bf16.mxu0 0
    %484 = vmatpush1.bf16.xpose.msra.mxu0 0
    %485 = vmatprep.subr.bf16.mxu0 0
    %486 = vmatpush1.bf16.xpose.msra.mxu0 0
    %487 = vmatprep.subr.bf16.mxu0 0
    %488 = vmatpush1.bf16.xpose.msra.mxu0 0
    %489 = vmatprep.subr.bf16.mxu0 0
    %490 = vmatpush1.bf16.xpose.msra.mxu0 0
    %491 = vmatprep.subr.bf16.mxu0 0
    %492 = vmatpush1.bf16.xpose.msra.mxu0 0
    %493 = vmatprep.subr.bf16.mxu0 0
    %494 = vmatpush1.bf16.xpose.msra.mxu0 0
    %495 = vmatprep.subr.bf16.mxu0 0
    %496 = vmatpush1.bf16.xpose.msra.mxu0 0
    %497 = vmatprep.mubr.bf16.mxu0 0
    %498 = vmatmul.mubr.bf16.gmra.mrb[0].mxu0 %v463
    %v499 = vpop.f32.mrb[0].mxu0
    %v500 = vadd.f32 0.0, %v499
    %v501 = vpop.f32.mrb[0].mxu0
    %v502 = vpop.f32.mrb[0].mxu0
    %v503 = vadd.f32 0.0, %v502
    %v504 = vpop.f32.mrb[0].mxu0
    %505 = vdwg.mxu0
    %v506 = vld [vmem:[#allocation11] sm:$0xff]
    %v507 = vld [vmem:[#allocation11 + $0x8] sm:$0xff]
    %509 = vrot.lane.b32.xlu0 %v409, 64
    %v510 = vpop.permute.xlu0 %509
    %v512 = vsel %vm329, %v408, %v510
    %v513 = vlaneseq
    %v514 = vshrl.u32 %v513, 7
    %v515 = vsub.s32 0, %v514
    %v516 = vrot.slane %v512, %v515
    %v517 = vmul.f32 %v516, %v506
    %v518 = vmul.f32 %v516, %v507
    %v519 = vmul.f32 %v517, 1.442695
    %v520 = vpow.pop %v519
    %v521 = vmul.f32 %v518, 1.442695
    %v522 = vpow.pop %v521
    %v523 = vlaneseq
    %v524 = vshrl.u32 %v523, 7
    %v525 = vsub.s32 1, %v524
    %v526 = vrot.slane %v512, %v525
    %v527 = vmul.f32 %v526, %v506
    %v528 = vmul.f32 %v526, %v507
    %v529 = vmul.f32 %v527, 1.442695
    %v530 = vpow.pop %v529
    %v531 = vmul.f32 %v528, 1.442695
    %v532 = vpow.pop %v531
    %v533 = vlaneseq
    %v534 = vshrl.u32 %v533, 7
    %v535 = vsub.s32 2, %v534
    %v536 = vrot.slane %v512, %v535
    %v537 = vmul.f32 %v536, %v506
    %v538 = vmul.f32 %v536, %v507
    %v539 = vmul.f32 %v537, 1.442695
    %v540 = vpow.pop %v539
    %v541 = vmul.f32 %v538, 1.442695
    %v542 = vpow.pop %v541
    %v543 = vlaneseq
    %v544 = vshrl.u32 %v543, 7
    %v545 = vsub.s32 3, %v544
    %v546 = vrot.slane %v512, %v545
    %v547 = vmul.f32 %v546, %v506
    %v548 = vmul.f32 %v546, %v507
    %v549 = vmul.f32 %v547, 1.442695
    %v550 = vpow.pop %v549
    %v551 = vmul.f32 %v548, 1.442695
    %v552 = vpow.pop %v551
    %v553 = vlaneseq
    %v554 = vshrl.u32 %v553, 7
    %v555 = vsub.s32 4, %v554
    %v556 = vrot.slane %v512, %v555
    %v557 = vmul.f32 %v556, %v506
    %v558 = vmul.f32 %v556, %v507
    %v559 = vmul.f32 %v557, 1.442695
    %v560 = vpow.pop %v559
    %v561 = vmul.f32 %v558, 1.442695
    %v562 = vpow.pop %v561
    %v563 = vlaneseq
    %v564 = vshrl.u32 %v563, 7
    %v565 = vsub.s32 5, %v564
    %v566 = vrot.slane %v512, %v565
    %v567 = vmul.f32 %v566, %v506
    %v568 = vmul.f32 %v566, %v507
    %v569 = vmul.f32 %v567, 1.442695
    %v570 = vpow.pop %v569
    %v571 = vmul.f32 %v568, 1.442695
    %v572 = vpow.pop %v571
    %v573 = vlaneseq
    %v574 = vshrl.u32 %v573, 7
    %v575 = vsub.s32 6, %v574
    %v576 = vrot.slane %v512, %v575
    %v577 = vmul.f32 %v576, %v506
    %v578 = vmul.f32 %v576, %v507
    %v579 = vmul.f32 %v577, 1.442695
    %v580 = vpow.pop %v579
    %v581 = vmul.f32 %v578, 1.442695
    %v582 = vpow.pop %v581
    %v583 = vlaneseq
    %v584 = vshrl.u32 %v583, 7
    %v585 = vsub.s32 7, %v584
    %v586 = vrot.slane %v512, %v585
    %v587 = vmul.f32 %v586, %v506
    %v588 = vmul.f32 %v586, %v507
    %v589 = vmul.f32 %v587, 1.442695
    %v590 = vpow.pop %v589
    %v591 = vmul.f32 %v588, 1.442695
    %v592 = vpow.pop %v591
    %594 = vset.pattern.permute.xlu0 0
    %595 = vperm.xlu0 %594, %v453
    %v596 = vpop.permute.xlu0 %595
    %599 = vset.pattern.permute.xlu0 0
    %600 = vperm.xlu0 %599, %v456
    %v601 = vpop.permute.xlu0 %600
    %v603 = vlaneseq
    %v604 = vshrl.u32 %v603, 7
    %v605 = vsub.s32 0, %v604
    %v606 = vrot.slane %v410, %v605
    %v607 = vmul.f32 %v596, %v606
    %v608 = vmul.f32 %v601, %v606
    %609 = vset.pattern.permute.xlu0 8
    %610 = vperm.xlu0 %609, %v453
    %v611 = vpop.permute.xlu0 %610
    %613 = vset.pattern.permute.xlu0 8
    %614 = vperm.xlu0 %613, %v456
    %v615 = vpop.permute.xlu0 %614
    %v617 = vlaneseq
    %v618 = vshrl.u32 %v617, 7
    %v619 = vsub.s32 0, %v618
    %v620 = vrot.slane %v411, %v619
    %v621 = vmul.f32 %v611, %v620
    %v622 = vmul.f32 %v615, %v620
    %625 = vrot.lane.b32.xlu0 %v621, 64
    %v626 = vpop.permute.xlu0 %625
    %627 = vrot.lane.b32.xlu0 %v622, 64
    %v628 = vpop.permute.xlu0 %627
    %v631 = vsel %vm329, %v607, %v626
    %v632 = vsel %vm329, %v608, %v628
    %633 = vset.pattern.permute.xlu0 1
    %634 = vperm.xlu0 %633, %v453
    %v635 = vpop.permute.xlu0 %634
    %637 = vset.pattern.permute.xlu0 1
    %638 = vperm.xlu0 %637, %v456
    %v639 = vpop.permute.xlu0 %638
    %v641 = vlaneseq
    %v642 = vshrl.u32 %v641, 7
    %v643 = vsub.s32 1, %v642
    %v644 = vrot.slane %v410, %v643
    %v645 = vmul.f32 %v635, %v644
    %v646 = vmul.f32 %v639, %v644
    %647 = vset.pattern.permute.xlu0 9
    %648 = vperm.xlu0 %647, %v453
    %v649 = vpop.permute.xlu0 %648
    %651 = vset.pattern.permute.xlu0 9
    %652 = vperm.xlu0 %651, %v456
    %v653 = vpop.permute.xlu0 %652
    %v655 = vlaneseq
    %v656 = vshrl.u32 %v655, 7
    %v657 = vsub.s32 1, %v656
    %v658 = vrot.slane %v411, %v657
    %v659 = vmul.f32 %v649, %v658
    %v660 = vmul.f32 %v653, %v658
    %663 = vrot.lane.b32.xlu0 %v659, 64
    %v664 = vpop.permute.xlu0 %663
    %665 = vrot.lane.b32.xlu0 %v660, 64
    %v666 = vpop.permute.xlu0 %665
    %v669 = vsel %vm329, %v645, %v664
    %v670 = vsel %vm329, %v646, %v666
    %671 = vset.pattern.permute.xlu0 2
    %672 = vperm.xlu0 %671, %v453
    %v673 = vpop.permute.xlu0 %672
    %675 = vset.pattern.permute.xlu0 2
    %676 = vperm.xlu0 %675, %v456
    %v677 = vpop.permute.xlu0 %676
    %v679 = vlaneseq
    %v680 = vshrl.u32 %v679, 7
    %v681 = vsub.s32 2, %v680
    %v682 = vrot.slane %v410, %v681
    %v683 = vmul.f32 %v673, %v682
    %v684 = vmul.f32 %v677, %v682
    %685 = vset.pattern.permute.xlu0 10
    %686 = vperm.xlu0 %685, %v453
    %v687 = vpop.permute.xlu0 %686
    %689 = vset.pattern.permute.xlu0 10
    %690 = vperm.xlu0 %689, %v456
    %v691 = vpop.permute.xlu0 %690
    %v693 = vlaneseq
    %v694 = vshrl.u32 %v693, 7
    %v695 = vsub.s32 2, %v694
    %v696 = vrot.slane %v411, %v695
    %v697 = vmul.f32 %v687, %v696
    %v698 = vmul.f32 %v691, %v696
    %701 = vrot.lane.b32.xlu0 %v697, 64
    %v702 = vpop.permute.xlu0 %701
    %703 = vrot.lane.b32.xlu0 %v698, 64
    %v704 = vpop.permute.xlu0 %703
    %v707 = vsel %vm329, %v683, %v702
    %v708 = vsel %vm329, %v684, %v704
    %709 = vset.pattern.permute.xlu0 3
    %710 = vperm.xlu0 %709, %v453
    %v711 = vpop.permute.xlu0 %710
    %713 = vset.pattern.permute.xlu0 3
    %714 = vperm.xlu0 %713, %v456
    %v715 = vpop.permute.xlu0 %714
    %v717 = vlaneseq
    %v718 = vshrl.u32 %v717, 7
    %v719 = vsub.s32 3, %v718
    %v720 = vrot.slane %v410, %v719
    %v721 = vmul.f32 %v711, %v720
    %v722 = vmul.f32 %v715, %v720
    %723 = vset.pattern.permute.xlu0 11
    %724 = vperm.xlu0 %723, %v453
    %v725 = vpop.permute.xlu0 %724
    %727 = vset.pattern.permute.xlu0 11
    %728 = vperm.xlu0 %727, %v456
    %v729 = vpop.permute.xlu0 %728
    %v731 = vlaneseq
    %v732 = vshrl.u32 %v731, 7
    %v733 = vsub.s32 3, %v732
    %v734 = vrot.slane %v411, %v733
    %v735 = vmul.f32 %v725, %v734
    %v736 = vmul.f32 %v729, %v734
    %739 = vrot.lane.b32.xlu0 %v735, 64
    %v740 = vpop.permute.xlu0 %739
    %741 = vrot.lane.b32.xlu0 %v736, 64
    %v742 = vpop.permute.xlu0 %741
    %v745 = vsel %vm329, %v721, %v740
    %v746 = vsel %vm329, %v722, %v742
    %747 = vset.pattern.permute.xlu0 4
    %748 = vperm.xlu0 %747, %v453
    %v749 = vpop.permute.xlu0 %748
    %751 = vset.pattern.permute.xlu0 4
    %752 = vperm.xlu0 %751, %v456
    %v753 = vpop.permute.xlu0 %752
    %v755 = vlaneseq
    %v756 = vshrl.u32 %v755, 7
    %v757 = vsub.s32 4, %v756
    %v758 = vrot.slane %v410, %v757
    %v759 = vmul.f32 %v749, %v758
    %v760 = vmul.f32 %v753, %v758
    %761 = vset.pattern.permute.xlu0 12
    %762 = vperm.xlu0 %761, %v453
    %v763 = vpop.permute.xlu0 %762
    %765 = vset.pattern.permute.xlu0 12
    %766 = vperm.xlu0 %765, %v456
    %v767 = vpop.permute.xlu0 %766
    %v769 = vlaneseq
    %v770 = vshrl.u32 %v769, 7
    %v771 = vsub.s32 4, %v770
    %v772 = vrot.slane %v411, %v771
    %v773 = vmul.f32 %v763, %v772
    %v774 = vmul.f32 %v767, %v772
    %777 = vrot.lane.b32.xlu0 %v773, 64
    %v778 = vpop.permute.xlu0 %777
    %779 = vrot.lane.b32.xlu0 %v774, 64
    %v780 = vpop.permute.xlu0 %779
    %v783 = vsel %vm329, %v759, %v778
    %v784 = vsel %vm329, %v760, %v780
    %785 = vset.pattern.permute.xlu0 5
    %786 = vperm.xlu0 %785, %v453
    %v787 = vpop.permute.xlu0 %786
    %789 = vset.pattern.permute.xlu0 5
    %790 = vperm.xlu0 %789, %v456
    %v791 = vpop.permute.xlu0 %790
    %v793 = vlaneseq
    %v794 = vshrl.u32 %v793, 7
    %v795 = vsub.s32 5, %v794
    %v796 = vrot.slane %v410, %v795
    %v797 = vmul.f32 %v787, %v796
    %v798 = vmul.f32 %v791, %v796
    %799 = vset.pattern.permute.xlu0 13
    %800 = vperm.xlu0 %799, %v453
    %v801 = vpop.permute.xlu0 %800
    %803 = vset.pattern.permute.xlu0 13
    %804 = vperm.xlu0 %803, %v456
    %v805 = vpop.permute.xlu0 %804
    %v807 = vlaneseq
    %v808 = vshrl.u32 %v807, 7
    %v809 = vsub.s32 5, %v808
    %v810 = vrot.slane %v411, %v809
    %v811 = vmul.f32 %v801, %v810
    %v812 = vmul.f32 %v805, %v810
    %815 = vrot.lane.b32.xlu0 %v811, 64
    %v816 = vpop.permute.xlu0 %815
    %817 = vrot.lane.b32.xlu0 %v812, 64
    %v818 = vpop.permute.xlu0 %817
    %v821 = vsel %vm329, %v797, %v816
    %v822 = vsel %vm329, %v798, %v818
    %823 = vset.pattern.permute.xlu0 6
    %824 = vperm.xlu0 %823, %v453
    %v825 = vpop.permute.xlu0 %824
    %827 = vset.pattern.permute.xlu0 6
    %828 = vperm.xlu0 %827, %v456
    %v829 = vpop.permute.xlu0 %828
    %v831 = vlaneseq
    %v832 = vshrl.u32 %v831, 7
    %v833 = vsub.s32 6, %v832
    %v834 = vrot.slane %v410, %v833
    %v835 = vmul.f32 %v825, %v834
    %v836 = vmul.f32 %v829, %v834
    %837 = vset.pattern.permute.xlu0 14
    %838 = vperm.xlu0 %837, %v453
    %v839 = vpop.permute.xlu0 %838
    %841 = vset.pattern.permute.xlu0 14
    %842 = vperm.xlu0 %841, %v456
    %v843 = vpop.permute.xlu0 %842
    %v845 = vlaneseq
    %v846 = vshrl.u32 %v845, 7
    %v847 = vsub.s32 6, %v846
    %v848 = vrot.slane %v411, %v847
    %v849 = vmul.f32 %v839, %v848
    %v850 = vmul.f32 %v843, %v848
    %853 = vrot.lane.b32.xlu0 %v849, 64
    %v854 = vpop.permute.xlu0 %853
    %855 = vrot.lane.b32.xlu0 %v850, 64
    %v856 = vpop.permute.xlu0 %855
    %v859 = vsel %vm329, %v835, %v854
    %v860 = vsel %vm329, %v836, %v856
    %861 = vset.pattern.permute.xlu0 7
    %862 = vperm.xlu0 %861, %v453
    %v863 = vpop.permute.xlu0 %862
    %865 = vset.pattern.permute.xlu0 7
    %866 = vperm.xlu0 %865, %v456
    %v867 = vpop.permute.xlu0 %866
    %v869 = vlaneseq
    %v870 = vshrl.u32 %v869, 7
    %v871 = vsub.s32 7, %v870
    %v872 = vrot.slane %v410, %v871
    %v873 = vmul.f32 %v863, %v872
    %v874 = vmul.f32 %v867, %v872
    %875 = vset.pattern.permute.xlu0 15
    %876 = vperm.xlu0 %875, %v453
    %v877 = vpop.permute.xlu0 %876
    %879 = vset.pattern.permute.xlu0 15
    %880 = vperm.xlu0 %879, %v456
    %v881 = vpop.permute.xlu0 %880
    %v883 = vlaneseq
    %v884 = vshrl.u32 %v883, 7
    %v885 = vsub.s32 7, %v884
    %v886 = vrot.slane %v411, %v885
    %v887 = vmul.f32 %v877, %v886
    %v888 = vmul.f32 %v881, %v886
    %891 = vrot.lane.b32.xlu0 %v887, 64
    %v892 = vpop.permute.xlu0 %891
    %893 = vrot.lane.b32.xlu0 %v888, 64
    %v894 = vpop.permute.xlu0 %893
    %v897 = vsel %vm329, %v873, %v892
    %v898 = vsel %vm329, %v874, %v894
    %v899 = vmul.f32 %v520, 0.0
    %v900 = vmul.f32 %v522, 0.0
    %v901 = vadd.f32 %v899, %v631
    %v902 = vadd.f32 %v900, %v632
    %904 = vset.pattern.permute.xlu0 0
    %905 = vperm.xlu0 %904, %v500
    %v906 = vpop.permute.xlu0 %905
    %909 = vset.pattern.permute.xlu0 0
    %910 = vperm.xlu0 %909, %v503
    %v911 = vpop.permute.xlu0 %910
    %v913 = vmul.f32 %v906, %v901
    %v914 = vmul.f32 %v911, %v902
    %v915 = vsel %vm329, %v913, 0.0
    %v916 = vsel %vm329, %v914, 0.0
    %v917 = vadd.f32 %v915, %v916
    %v918 = vrot.slane %v917, 4
    %v919 = vadd.f32 %v917, %v918
    %v920 = vrot.slane %v919, 2
    %v921 = vadd.f32 %v919, %v920
    %v922 = vrot.slane %v921, 1
    %v923 = vadd.f32 %v921, %v922
    %vm924 = vcmask 516096
    %925 = vst.msk [vmem:[#allocation2] sm:$0x1] %vm924, %v923
    %926 = vset.pattern.permute.xlu0 8
    %927 = vperm.xlu0 %926, %v500
    %v928 = vpop.permute.xlu0 %927
    %930 = vset.pattern.permute.xlu0 8
    %931 = vperm.xlu0 %930, %v503
    %v932 = vpop.permute.xlu0 %931
    %v934 = vmul.f32 %v928, %v901
    %v935 = vmul.f32 %v932, %v902
    %vm936 = vcmask 1048064
    %v937 = vsel %vm936, %v934, 0.0
    %v938 = vsel %vm936, %v935, 0.0
    %v939 = vadd.f32 %v937, %v938
    %v940 = vrot.slane %v939, 4
    %v941 = vadd.f32 %v939, %v940
    %v942 = vrot.slane %v941, 2
    %v943 = vadd.f32 %v941, %v942
    %v944 = vrot.slane %v943, 1
    %v945 = vadd.f32 %v943, %v944
    %947 = vrot.lane.b32.xlu0 %v945, 64
    %v948 = vpop.permute.xlu0 %947
    %950 = vst.msk [vmem:[#allocation2 + $0x8] sm:$0x1] %vm924, %v948
    %v951 = vmul.f32 %v530, %v901
    %v952 = vmul.f32 %v532, %v902
    %v953 = vadd.f32 %v951, %v669
    %v954 = vadd.f32 %v952, %v670
    %955 = vset.pattern.permute.xlu0 1
    %956 = vperm.xlu0 %955, %v500
    %v957 = vpop.permute.xlu0 %956
    %959 = vset.pattern.permute.xlu0 1
    %960 = vperm.xlu0 %959, %v503
    %v961 = vpop.permute.xlu0 %960
    %v963 = vmul.f32 %v957, %v953
    %v964 = vmul.f32 %v961, %v954
    %v965 = vsel %vm329, %v963, 0.0
    %v966 = vsel %vm329, %v964, 0.0
    %v967 = vadd.f32 %v965, %v966
    %v968 = vrot.slane %v967, 4
    %v969 = vadd.f32 %v967, %v968
    %v970 = vrot.slane %v969, 2
    %v971 = vadd.f32 %v969, %v970
    %v972 = vrot.slane %v971, 1
    %v973 = vadd.f32 %v971, %v972
    %974 = vst.msk [vmem:[#allocation2 + $0x1] sm:$0x1] %vm924, %v973
    %975 = vset.pattern.permute.xlu0 9
    %976 = vperm.xlu0 %975, %v500
    %v977 = vpop.permute.xlu0 %976
    %979 = vset.pattern.permute.xlu0 9
    %980 = vperm.xlu0 %979, %v503
    %v981 = vpop.permute.xlu0 %980
    %v983 = vmul.f32 %v977, %v953
    %v984 = vmul.f32 %v981, %v954
    %v985 = vsel %vm936, %v983, 0.0
    %v986 = vsel %vm936, %v984, 0.0
    %v987 = vadd.f32 %v985, %v986
    %v988 = vrot.slane %v987, 4
    %v989 = vadd.f32 %v987, %v988
    %v990 = vrot.slane %v989, 2
    %v991 = vadd.f32 %v989, %v990
    %v992 = vrot.slane %v991, 1
    %v993 = vadd.f32 %v991, %v992
    %995 = vrot.lane.b32.xlu0 %v993, 64
    %v996 = vpop.permute.xlu0 %995
    %998 = vst.msk [vmem:[#allocation2 + $0x9] sm:$0x1] %vm924, %v996
    %v999 = vmul.f32 %v540, %v953
    %v1000 = vmul.f32 %v542, %v954
    %v1001 = vadd.f32 %v999, %v707
    %v1002 = vadd.f32 %v1000, %v708
    %1003 = vset.pattern.permute.xlu0 2
    %1004 = vperm.xlu0 %1003, %v500
    %v1005 = vpop.permute.xlu0 %1004
    %1007 = vset.pattern.permute.xlu0 2
    %1008 = vperm.xlu0 %1007, %v503
    %v1009 = vpop.permute.xlu0 %1008
    %v1011 = vmul.f32 %v1005, %v1001
    %v1012 = vmul.f32 %v1009, %v1002
    %v1013 = vsel %vm329, %v1011, 0.0
    %v1014 = vsel %vm329, %v1012, 0.0
    %v1015 = vadd.f32 %v1013, %v1014
    %v1016 = vrot.slane %v1015, 4
    %v1017 = vadd.f32 %v1015, %v1016
    %v1018 = vrot.slane %v1017, 2
    %v1019 = vadd.f32 %v1017, %v1018
    %v1020 = vrot.slane %v1019, 1
    %v1021 = vadd.f32 %v1019, %v1020
    %1022 = vst.msk [vmem:[#allocation2 + $0x2] sm:$0x1] %vm924, %v1021
    %1023 = vset.pattern.permute.xlu0 10
    %1024 = vperm.xlu0 %1023, %v500
    %v1025 = vpop.permute.xlu0 %1024
    %1027 = vset.pattern.permute.xlu0 10
    %1028 = vperm.xlu0 %1027, %v503
    %v1029 = vpop.permute.xlu0 %1028
    %v1031 = vmul.f32 %v1025, %v1001
    %v1032 = vmul.f32 %v1029, %v1002
    %v1033 = vsel %vm936, %v1031, 0.0
    %v1034 = vsel %vm936, %v1032, 0.0
    %v1035 = vadd.f32 %v1033, %v1034
    %v1036 = vrot.slane %v1035, 4
    %v1037 = vadd.f32 %v1035, %v1036
    %v1038 = vrot.slane %v1037, 2
    %v1039 = vadd.f32 %v1037, %v1038
    %v1040 = vrot.slane %v1039, 1
    %v1041 = vadd.f32 %v1039, %v1040
    %1043 = vrot.lane.b32.xlu0 %v1041, 64
    %v1044 = vpop.permute.xlu0 %1043
    %1046 = vst.msk [vmem:[#allocation2 + $0xa] sm:$0x1] %vm924, %v1044
    %v1047 = vmul.f32 %v550, %v1001
    %v1048 = vmul.f32 %v552, %v1002
    %v1049 = vadd.f32 %v1047, %v745
    %v1050 = vadd.f32 %v1048, %v746
    %1051 = vset.pattern.permute.xlu0 3
    %1052 = vperm.xlu0 %1051, %v500
    %v1053 = vpop.permute.xlu0 %1052
    %1055 = vset.pattern.permute.xlu0 3
    %1056 = vperm.xlu0 %1055, %v503
    %v1057 = vpop.permute.xlu0 %1056
    %v1059 = vmul.f32 %v1053, %v1049
    %v1060 = vmul.f32 %v1057, %v1050
    %v1061 = vsel %vm329, %v1059, 0.0
    %v1062 = vsel %vm329, %v1060, 0.0
    %v1063 = vadd.f32 %v1061, %v1062
    %v1064 = vrot.slane %v1063, 4
    %v1065 = vadd.f32 %v1063, %v1064
    %v1066 = vrot.slane %v1065, 2
    %v1067 = vadd.f32 %v1065, %v1066
    %v1068 = vrot.slane %v1067, 1
    %v1069 = vadd.f32 %v1067, %v1068
    %1070 = vst.msk [vmem:[#allocation2 + $0x3] sm:$0x1] %vm924, %v1069
    %1071 = vset.pattern.permute.xlu0 11
    %1072 = vperm.xlu0 %1071, %v500
    %v1073 = vpop.permute.xlu0 %1072
    %1075 = vset.pattern.permute.xlu0 11
    %1076 = vperm.xlu0 %1075, %v503
    %v1077 = vpop.permute.xlu0 %1076
    %v1079 = vmul.f32 %v1073, %v1049
    %v1080 = vmul.f32 %v1077, %v1050
    %v1081 = vsel %vm936, %v1079, 0.0
    %v1082 = vsel %vm936, %v1080, 0.0
    %v1083 = vadd.f32 %v1081, %v1082
    %v1084 = vrot.slane %v1083, 4
    %v1085 = vadd.f32 %v1083, %v1084
    %v1086 = vrot.slane %v1085, 2
    %v1087 = vadd.f32 %v1085, %v1086
    %v1088 = vrot.slane %v1087, 1
    %v1089 = vadd.f32 %v1087, %v1088
    %1091 = vrot.lane.b32.xlu0 %v1089, 64
    %v1092 = vpop.permute.xlu0 %1091
    %1094 = vst.msk [vmem:[#allocation2 + $0xb] sm:$0x1] %vm924, %v1092
    %v1095 = vmul.f32 %v560, %v1049
    %v1096 = vmul.f32 %v562, %v1050
    %v1097 = vadd.f32 %v1095, %v783
    %v1098 = vadd.f32 %v1096, %v784
    %1099 = vset.pattern.permute.xlu0 4
    %1100 = vperm.xlu0 %1099, %v500
    %v1101 = vpop.permute.xlu0 %1100
    %1103 = vset.pattern.permute.xlu0 4
    %1104 = vperm.xlu0 %1103, %v503
    %v1105 = vpop.permute.xlu0 %1104
    %v1107 = vmul.f32 %v1101, %v1097
    %v1108 = vmul.f32 %v1105, %v1098
    %v1109 = vsel %vm329, %v1107, 0.0
    %v1110 = vsel %vm329, %v1108, 0.0
    %v1111 = vadd.f32 %v1109, %v1110
    %v1112 = vrot.slane %v1111, 4
    %v1113 = vadd.f32 %v1111, %v1112
    %v1114 = vrot.slane %v1113, 2
    %v1115 = vadd.f32 %v1113, %v1114
    %v1116 = vrot.slane %v1115, 1
    %v1117 = vadd.f32 %v1115, %v1116
    %1118 = vst.msk [vmem:[#allocation2 + $0x4] sm:$0x1] %vm924, %v1117
    %1119 = vset.pattern.permute.xlu0 12
    %1120 = vperm.xlu0 %1119, %v500
    %v1121 = vpop.permute.xlu0 %1120
    %1123 = vset.pattern.permute.xlu0 12
    %1124 = vperm.xlu0 %1123, %v503
    %v1125 = vpop.permute.xlu0 %1124
    %v1127 = vmul.f32 %v1121, %v1097
    %v1128 = vmul.f32 %v1125, %v1098
    %v1129 = vsel %vm936, %v1127, 0.0
    %v1130 = vsel %vm936, %v1128, 0.0
    %v1131 = vadd.f32 %v1129, %v1130
    %v1132 = vrot.slane %v1131, 4
    %v1133 = vadd.f32 %v1131, %v1132
    %v1134 = vrot.slane %v1133, 2
    %v1135 = vadd.f32 %v1133, %v1134
    %v1136 = vrot.slane %v1135, 1
    %v1137 = vadd.f32 %v1135, %v1136
    %1139 = vrot.lane.b32.xlu0 %v1137, 64
    %v1140 = vpop.permute.xlu0 %1139
    %1142 = vst.msk [vmem:[#allocation2 + $0xc] sm:$0x1] %vm924, %v1140
    %v1143 = vmul.f32 %v570, %v1097
    %v1144 = vmul.f32 %v572, %v1098
    %v1145 = vadd.f32 %v1143, %v821
    %v1146 = vadd.f32 %v1144, %v822
    %1147 = vset.pattern.permute.xlu0 5
    %1148 = vperm.xlu0 %1147, %v500
    %v1149 = vpop.permute.xlu0 %1148
    %1151 = vset.pattern.permute.xlu0 5
    %1152 = vperm.xlu0 %1151, %v503
    %v1153 = vpop.permute.xlu0 %1152
    %v1155 = vmul.f32 %v1149, %v1145
    %v1156 = vmul.f32 %v1153, %v1146
    %v1157 = vsel %vm329, %v1155, 0.0
    %v1158 = vsel %vm329, %v1156, 0.0
    %v1159 = vadd.f32 %v1157, %v1158
    %v1160 = vrot.slane %v1159, 4
    %v1161 = vadd.f32 %v1159, %v1160
    %v1162 = vrot.slane %v1161, 2
    %v1163 = vadd.f32 %v1161, %v1162
    %v1164 = vrot.slane %v1163, 1
    %v1165 = vadd.f32 %v1163, %v1164
    %1166 = vst.msk [vmem:[#allocation2 + $0x5] sm:$0x1] %vm924, %v1165
    %1167 = vset.pattern.permute.xlu0 13
    %1168 = vperm.xlu0 %1167, %v500
    %v1169 = vpop.permute.xlu0 %1168
    %1171 = vset.pattern.permute.xlu0 13
    %1172 = vperm.xlu0 %1171, %v503
    %v1173 = vpop.permute.xlu0 %1172
    %v1175 = vmul.f32 %v1169, %v1145
    %v1176 = vmul.f32 %v1173, %v1146
    %v1177 = vsel %vm936, %v1175, 0.0
    %v1178 = vsel %vm936, %v1176, 0.0
    %v1179 = vadd.f32 %v1177, %v1178
    %v1180 = vrot.slane %v1179, 4
    %v1181 = vadd.f32 %v1179, %v1180
    %v1182 = vrot.slane %v1181, 2
    %v1183 = vadd.f32 %v1181, %v1182
    %v1184 = vrot.slane %v1183, 1
    %v1185 = vadd.f32 %v1183, %v1184
    %1187 = vrot.lane.b32.xlu0 %v1185, 64
    %v1188 = vpop.permute.xlu0 %1187
    %1190 = vst.msk [vmem:[#allocation2 + $0xd] sm:$0x1] %vm924, %v1188
    %v1191 = vmul.f32 %v580, %v1145
    %v1192 = vmul.f32 %v582, %v1146
    %v1193 = vadd.f32 %v1191, %v859
    %v1194 = vadd.f32 %v1192, %v860
    %1195 = vset.pattern.permute.xlu0 6
    %1196 = vperm.xlu0 %1195, %v500
    %v1197 = vpop.permute.xlu0 %1196
    %1199 = vset.pattern.permute.xlu0 6
    %1200 = vperm.xlu0 %1199, %v503
    %v1201 = vpop.permute.xlu0 %1200
    %v1203 = vmul.f32 %v1197, %v1193
    %v1204 = vmul.f32 %v1201, %v1194
    %v1205 = vsel %vm329, %v1203, 0.0
    %v1206 = vsel %vm329, %v1204, 0.0
    %v1207 = vadd.f32 %v1205, %v1206
    %v1208 = vrot.slane %v1207, 4
    %v1209 = vadd.f32 %v1207, %v1208
    %v1210 = vrot.slane %v1209, 2
    %v1211 = vadd.f32 %v1209, %v1210
    %v1212 = vrot.slane %v1211, 1
    %v1213 = vadd.f32 %v1211, %v1212
    %1214 = vst.msk [vmem:[#allocation2 + $0x6] sm:$0x1] %vm924, %v1213
    %1215 = vset.pattern.permute.xlu0 14
    %1216 = vperm.xlu0 %1215, %v500
    %v1217 = vpop.permute.xlu0 %1216
    %1219 = vset.pattern.permute.xlu0 14
    %1220 = vperm.xlu0 %1219, %v503
    %v1221 = vpop.permute.xlu0 %1220
    %v1223 = vmul.f32 %v1217, %v1193
    %v1224 = vmul.f32 %v1221, %v1194
    %v1225 = vsel %vm936, %v1223, 0.0
    %v1226 = vsel %vm936, %v1224, 0.0
    %v1227 = vadd.f32 %v1225, %v1226
    %v1228 = vrot.slane %v1227, 4
    %v1229 = vadd.f32 %v1227, %v1228
    %v1230 = vrot.slane %v1229, 2
    %v1231 = vadd.f32 %v1229, %v1230
    %v1232 = vrot.slane %v1231, 1
    %v1233 = vadd.f32 %v1231, %v1232
    %1235 = vrot.lane.b32.xlu0 %v1233, 64
    %v1236 = vpop.permute.xlu0 %1235
    %1238 = vst.msk [vmem:[#allocation2 + $0xe] sm:$0x1] %vm924, %v1236
    %v1239 = vmul.f32 %v590, %v1193
    %v1240 = vmul.f32 %v592, %v1194
    %v1241 = vadd.f32 %v1239, %v897
    %v1242 = vadd.f32 %v1240, %v898
    %1243 = vset.pattern.permute.xlu0 7
    %1244 = vperm.xlu0 %1243, %v500
    %v1245 = vpop.permute.xlu0 %1244
    %1247 = vset.pattern.permute.xlu0 7
    %1248 = vperm.xlu0 %1247, %v503
    %v1249 = vpop.permute.xlu0 %1248
    %v1251 = vmul.f32 %v1245, %v1241
    %v1252 = vmul.f32 %v1249, %v1242
    %v1253 = vsel %vm329, %v1251, 0.0
    %v1254 = vsel %vm329, %v1252, 0.0
    %v1255 = vadd.f32 %v1253, %v1254
    %v1256 = vrot.slane %v1255, 4
    %v1257 = vadd.f32 %v1255, %v1256
    %v1258 = vrot.slane %v1257, 2
    %v1259 = vadd.f32 %v1257, %v1258
    %v1260 = vrot.slane %v1259, 1
    %v1261 = vadd.f32 %v1259, %v1260
    %1262 = vst.msk [vmem:[#allocation2 + $0x7] sm:$0x1] %vm924, %v1261
    %1263 = vset.pattern.permute.xlu0 15
    %1264 = vperm.xlu0 %1263, %v500
    %v1265 = vpop.permute.xlu0 %1264
    %1267 = vset.pattern.permute.xlu0 15
    %1268 = vperm.xlu0 %1267, %v503
    %v1269 = vpop.permute.xlu0 %1268
    %v1271 = vmul.f32 %v1265, %v1241
    %v1272 = vmul.f32 %v1269, %v1242
    %v1273 = vsel %vm936, %v1271, 0.0
    %v1274 = vsel %vm936, %v1272, 0.0
    %v1275 = vadd.f32 %v1273, %v1274
    %v1276 = vrot.slane %v1275, 4
    %v1277 = vadd.f32 %v1275, %v1276
    %v1278 = vrot.slane %v1277, 2
    %v1279 = vadd.f32 %v1277, %v1278
    %v1280 = vrot.slane %v1279, 1
    %v1281 = vadd.f32 %v1279, %v1280
    %1283 = vrot.lane.b32.xlu0 %v1281, 64
    %v1284 = vpop.permute.xlu0 %1283
    %1286 = vst.msk [vmem:[#allocation2 + $0xf] sm:$0x1] %vm924, %v1284
    %v1287 = vld [vmem:[#allocation2] sm:$0xff]
    %v1288 = vld [vmem:[#allocation2 + $0x8] sm:$0xff]
    %v1289 = vld [vmem:[%s11] sm:$0x1]
    %v1291 = vlaneseq
    %v1292 = vshrl.u32 %v1291, 7
    %v1293 = vsub.s32 0, %v1292
    %v1294 = vrot.slane %v1289, %v1293
    %v1296 = vmul.f32 %v307, %v1294
    %v1297 = vmul.f32 %v308, %v1294
    %v1298 = vadd.f32 %v1287, %v1296
    %v1299 = vadd.f32 %v1288, %v1297
    %v1300 = vxor.u32 %v238, 2147483648
    %v1301 = vxor.u32 %v241, 2147483648
    %v1302 = vmul.f32 %v1300, 1.442695
    %v1303 = vpow.pop %v1302
    %v1304 = vmul.f32 %v1301, 1.442695
    %v1305 = vpow.pop %v1304
    %v1306 = vadd.f32 %v1303, 1.0
    %v1307 = vadd.f32 %v1305, 1.0
    %v1308 = vrcp.pop %v1306
    %v1309 = vmul.f32 1.0, %v1308
    %v1310 = vrcp.pop %v1307
    %v1311 = vmul.f32 1.0, %v1310
    %v1312 = vmul.f32 %v238, %v1309
    %v1313 = vmul.f32 %v241, %v1311
    %v1314 = vmul.f32 %v1298, %v1312
    %v1315 = vmul.f32 %v1299, %v1313
    %v1316 = vld [vmem:[%s12] sm:$0xff]
    %v1317 = vld [vmem:[%s12 + $0x8] sm:$0xff]
    %v1318 = vld [vmem:[%s12 + $0x10] sm:$0xff]
    %v1319 = vld [vmem:[%s12 + $0x18] sm:$0xff]
    %v1320 = vld [vmem:[%s12 + $0x20] sm:$0xff]
    %v1321 = vld [vmem:[%s12 + $0x28] sm:$0xff]
    %v1322 = vld [vmem:[%s12 + $0x30] sm:$0xff]
    %v1323 = vld [vmem:[%s12 + $0x38] sm:$0xff]
    %v1324 = vpack.c.bf16 %v1315, %v1314
    %v1325 = vpack.c.bf16 %v1317, %v1316
    %v1326 = vpack.c.bf16 %v1319, %v1318
    %v1327 = vpack.c.bf16 %v1321, %v1320
    %v1328 = vpack.c.bf16 %v1323, %v1322
    %v1330 = vsel %vm329, %v1324, 0
    %1332 = vmatprep.subr.bf16.mxu0 0
    %1333 = vmatpush1.bf16.msra.mxu0 %v1325
    %1334 = vmatprep.subr.bf16.mxu0 0
    %1335 = vmatpush1.bf16.msra.mxu0 %v1326
    %1336 = vmatprep.subr.bf16.mxu0 0
    %1337 = vmatpush1.bf16.msra.mxu0 %v1327
    %1338 = vmatprep.subr.bf16.mxu0 0
    %1339 = vmatpush1.bf16.msra.mxu0 %v1328
    %1340 = vmatprep.subr.bf16.mxu0 0
    %1341 = vmatpush1.bf16.msra.mxu0 0
    %1342 = vmatprep.subr.bf16.mxu0 0
    %1343 = vmatpush1.bf16.msra.mxu0 0
    %1344 = vmatprep.subr.bf16.mxu0 0
    %1345 = vmatpush1.bf16.msra.mxu0 0
    %1346 = vmatprep.subr.bf16.mxu0 0
    %1347 = vmatpush1.bf16.msra.mxu0 0
    %1348 = vmatprep.subr.bf16.mxu0 0
    %1349 = vmatpush1.bf16.msra.mxu0 0
    %1350 = vmatprep.subr.bf16.mxu0 0
    %1351 = vmatpush1.bf16.msra.mxu0 0
    %1352 = vmatprep.subr.bf16.mxu0 0
    %1353 = vmatpush1.bf16.msra.mxu0 0
    %1354 = vmatprep.subr.bf16.mxu0 0
    %1355 = vmatpush1.bf16.msra.mxu0 0
    %1356 = vmatprep.subr.bf16.mxu0 0
    %1357 = vmatpush1.bf16.msra.mxu0 0
    %1358 = vmatprep.subr.bf16.mxu0 0
    %1359 = vmatpush1.bf16.msra.mxu0 0
    %1360 = vmatprep.subr.bf16.mxu0 0
    %1361 = vmatpush1.bf16.msra.mxu0 0
    %1362 = vmatprep.subr.bf16.mxu0 0
    %1363 = vmatpush1.bf16.msra.mxu0 0
    %1364 = vmatprep.mubr.bf16.mxu0 0
    %1365 = vmatmul.mubr.bf16.gmra.mrb[0].mxu0 %v1330
    %v1366 = vpop.f32.mrb[0].mxu0
    %v1367 = vadd.f32 %v117, %v1366
    %v1368 = vpop.f32.mrb[0].mxu0
    %v1369 = vpop.f32.mrb[0].mxu0
    %v1370 = vadd.f32 %v118, %v1369
    %v1371 = vpop.f32.mrb[0].mxu0
    %1372 = vdwg.mxu0
    %s1373 = scalar_lea.vmem %s1, 1
    %v1374 = vld [vmem:[%s1373] sm:$0x1]
    %v1375 = vmul.f32 %v1367, %v1367
    %v1376 = vmul.f32 %v1370, %v1370
    %v1377 = vsel %vm122, %v1375, 0.0
    %1378 = vadd.xlane.f32.xlu0 %v1377
    %v1379 = vpop.xlane.xlu0 %1378
    %v1380 = vsel %vm122, %v1376, 0.0
    %1381 = vadd.xlane.f32.xlu0 %v1380
    %v1382 = vpop.xlane.xlu0 %1381
    %v1383 = vmul.f32 %v1379, %v129
    %v1384 = vmul.f32 %v1382, %v129
    %v1385 = vadd.f32 %v1383, 1e-05
    %v1386 = vadd.f32 %v1384, 1e-05
    %v1387 = vrsqrt.pop %v1385
    %v1388 = vrsqrt.pop %v1386
    %v1389 = vmul.f32 %v1367, %v1387
    %v1390 = vmul.f32 %v1370, %v1388
    %v1392 = vlaneseq
    %v1393 = vshrl.u32 %v1392, 7
    %v1394 = vsub.s32 0, %v1393
    %v1395 = vrot.slane %v1374, %v1394
    %v1397 = vmul.f32 %v1389, %v1395
    %v1398 = vmul.f32 %v1390, %v1395
    %s1399 = scalar_lea.vmem %s2, 32
    %v1400 = vld [vmem:[%s1399] sm:$0xff]
    %v1401 = vld [vmem:[%s1399 + $0x8] sm:$0xff]
    %v1402 = vld [vmem:[%s1399 + $0x10] sm:$0xff]
    %v1403 = vld [vmem:[%s1399 + $0x18] sm:$0xff]
    %v1404 = vpack.c.bf16 %v1398, %v1397
    %v1405 = vpack.c.bf16 %v1401, %v1400
    %v1406 = vpack.c.bf16 %v1403, %v1402
    %v1408 = vsel %vm122, %v1404, 0
    %1410 = vmatprep.subr.bf16.mxu0 0
    %1411 = vmatpush1.bf16.msra.mxu0 %v1405
    %1412 = vmatprep.subr.bf16.mxu0 0
    %1413 = vmatpush1.bf16.msra.mxu0 %v1406
    %1414 = vmatprep.subr.bf16.mxu0 0
    %1415 = vmatpush1.bf16.msra.mxu0 0
    %1416 = vmatprep.subr.bf16.mxu0 0
    %1417 = vmatpush1.bf16.msra.mxu0 0
    %1418 = vmatprep.subr.bf16.mxu0 0
    %1419 = vmatpush1.bf16.msra.mxu0 0
    %1420 = vmatprep.subr.bf16.mxu0 0
    %1421 = vmatpush1.bf16.msra.mxu0 0
    %1422 = vmatprep.subr.bf16.mxu0 0
    %1423 = vmatpush1.bf16.msra.mxu0 0
    %1424 = vmatprep.subr.bf16.mxu0 0
    %1425 = vmatpush1.bf16.msra.mxu0 0
    %1426 = vmatprep.subr.bf16.mxu0 0
    %1427 = vmatpush1.bf16.msra.mxu0 0
    %1428 = vmatprep.subr.bf16.mxu0 0
    %1429 = vmatpush1.bf16.msra.mxu0 0
    %1430 = vmatprep.subr.bf16.mxu0 0
    %1431 = vmatpush1.bf16.msra.mxu0 0
    %1432 = vmatprep.subr.bf16.mxu0 0
    %1433 = vmatpush1.bf16.msra.mxu0 0
    %1434 = vmatprep.subr.bf16.mxu0 0
    %1435 = vmatpush1.bf16.msra.mxu0 0
    %1436 = vmatprep.subr.bf16.mxu0 0
    %1437 = vmatpush1.bf16.msra.mxu0 0
    %1438 = vmatprep.subr.bf16.mxu0 0
    %1439 = vmatpush1.bf16.msra.mxu0 0
    %1440 = vmatprep.subr.bf16.mxu0 0
    %1441 = vmatpush1.bf16.msra.mxu0 0
    %1442 = vmatprep.mubr.bf16.mxu0 0
    %1443 = vmatmul.mubr.bf16.gmra.mrb[0].mxu0 %v1408
    %v1444 = vpop.f32.mrb[0].mxu0
    %v1445 = vadd.f32 0.0, %v1444
    %v1446 = vpop.f32.mrb[0].mxu0
    %v1447 = vpop.f32.mrb[0].mxu0
    %v1448 = vadd.f32 0.0, %v1447
    %v1449 = vpop.f32.mrb[0].mxu0
    %1450 = vdwg.mxu0
    %s1451 = scalar_lea.vmem [#allocation3], 32
    %v1452 = vld [vmem:[%s1451] sm:$0xff]
    %v1453 = vld [vmem:[%s1451 + $0x8] sm:$0xff]
    %v1454 = vld [vmem:[%s1451 + $0x10] sm:$0xff]
    %v1455 = vld [vmem:[%s1451 + $0x18] sm:$0xff]
    %v1456 = vpack.c.bf16 %v1453, %v1452
    %v1457 = vpack.c.bf16 %v1455, %v1454
    %1458 = vmatprep.subr.bf16.mxu0 0
    %1459 = vmatpush1.bf16.msra.mxu0 %v1456
    %1460 = vmatprep.subr.bf16.mxu0 0
    %1461 = vmatpush1.bf16.msra.mxu0 %v1457
    %1462 = vmatprep.subr.bf16.mxu0 0
    %1463 = vmatpush1.bf16.msra.mxu0 0
    %1464 = vmatprep.subr.bf16.mxu0 0
    %1465 = vmatpush1.bf16.msra.mxu0 0
    %1466 = vmatprep.subr.bf16.mxu0 0
    %1467 = vmatpush1.bf16.msra.mxu0 0
    %1468 = vmatprep.subr.bf16.mxu0 0
    %1469 = vmatpush1.bf16.msra.mxu0 0
    %1470 = vmatprep.subr.bf16.mxu0 0
    %1471 = vmatpush1.bf16.msra.mxu0 0
    %1472 = vmatprep.subr.bf16.mxu0 0
    %1473 = vmatpush1.bf16.msra.mxu0 0
    %1474 = vmatprep.subr.bf16.mxu0 0
    %1475 = vmatpush1.bf16.msra.mxu0 0
    %1476 = vmatprep.subr.bf16.mxu0 0
    %1477 = vmatpush1.bf16.msra.mxu0 0
    %1478 = vmatprep.subr.bf16.mxu0 0
    %1479 = vmatpush1.bf16.msra.mxu0 0
    %1480 = vmatprep.subr.bf16.mxu0 0
    %1481 = vmatpush1.bf16.msra.mxu0 0
    %1482 = vmatprep.subr.bf16.mxu0 0
    %1483 = vmatpush1.bf16.msra.mxu0 0
    %1484 = vmatprep.subr.bf16.mxu0 0
    %1485 = vmatpush1.bf16.msra.mxu0 0
    %1486 = vmatprep.subr.bf16.mxu0 0
    %1487 = vmatpush1.bf16.msra.mxu0 0
    %1488 = vmatprep.subr.bf16.mxu0 0
    %1489 = vmatpush1.bf16.msra.mxu0 0
    %1490 = vmatprep.mubr.bf16.mxu0 0
    %1491 = vmatmul.mubr.bf16.gmra.mrb[0].mxu0 %v1408
    %v1492 = vpop.f32.mrb[0].mxu0
    %v1493 = vadd.f32 0.0, %v1492
    %v1494 = vpop.f32.mrb[0].mxu0
    %v1495 = vpop.f32.mrb[0].mxu0
    %v1496 = vadd.f32 0.0, %v1495
    %v1497 = vpop.f32.mrb[0].mxu0
    %1498 = vdwg.mxu0
    %s1499 = scalar_lea.vmem %s5, 1
    %v1500 = vld [vmem:[%s1499] sm:$0x1]
    %s1501 = scalar_lea.vmem %s4, 64
    %v1502 = vld [vmem:[%s1501] sm:$0xff]
    %v1503 = vld [vmem:[%s1501 + $0x8] sm:$0xff]
    %v1504 = vmul.f32 %v1502, %v1445
    %v1505 = vmul.f32 %v1503, %v1448
    %v1507 = vlaneseq
    %v1508 = vshrl.u32 %v1507, 7
    %v1509 = vsub.s32 0, %v1508
    %v1510 = vrot.slane %v1500, %v1509
    %v1512 = vadd.f32 %v1510, %v1504
    %v1513 = vadd.f32 %v1510, %v1505
    %s1514 = scalar_lea.vmem %s4, 80
    %v1515 = vld [vmem:[%s1514] sm:$0xff]
    %v1516 = vld [vmem:[%s1514 + $0x8] sm:$0xff]
    %v1517 = vrot.slane %v1445, 7
    %v1518 = vrot.slane %v1448, 7
    %v1519 = vsel %vm264, %v1517, %v1518
    %v1520 = vsel %vm264, %v1518, %v1517
    %v1521 = vmul.f32 %v1515, %v1520
    %v1522 = vmul.f32 %v1516, %v1519
    %v1523 = vadd.f32 %v1512, %v1521
    %v1524 = vadd.f32 %v1513, %v1522
    %s1525 = scalar_lea.vmem %s4, 96
    %v1526 = vld [vmem:[%s1525] sm:$0xff]
    %v1527 = vld [vmem:[%s1525 + $0x8] sm:$0xff]
    %v1528 = vrot.slane %v1445, 6
    %v1529 = vrot.slane %v1448, 6
    %v1530 = vsel %vm276, %v1528, %v1529
    %v1531 = vsel %vm276, %v1529, %v1528
    %v1532 = vmul.f32 %v1526, %v1531
    %v1533 = vmul.f32 %v1527, %v1530
    %v1534 = vadd.f32 %v1523, %v1532
    %v1535 = vadd.f32 %v1524, %v1533
    %s1536 = scalar_lea.vmem %s4, 112
    %v1537 = vld [vmem:[%s1536] sm:$0xff]
    %v1538 = vld [vmem:[%s1536 + $0x8] sm:$0xff]
    %v1539 = vrot.slane %v1445, 5
    %v1540 = vrot.slane %v1448, 5
    %v1541 = vsel %vm288, %v1539, %v1540
    %v1542 = vsel %vm288, %v1540, %v1539
    %v1543 = vmul.f32 %v1537, %v1542
    %v1544 = vmul.f32 %v1538, %v1541
    %v1545 = vadd.f32 %v1534, %v1543
    %v1546 = vadd.f32 %v1535, %v1544
    %v1547 = vxor.u32 %v1545, 2147483648
    %v1548 = vxor.u32 %v1546, 2147483648
    %v1549 = vmul.f32 %v1547, 1.442695
    %v1550 = vpow.pop %v1549
    %v1551 = vmul.f32 %v1548, 1.442695
    %v1552 = vpow.pop %v1551
    %v1553 = vadd.f32 %v1550, 1.0
    %v1554 = vadd.f32 %v1552, 1.0
    %v1555 = vrcp.pop %v1553
    %v1556 = vmul.f32 1.0, %v1555
    %v1557 = vrcp.pop %v1554
    %v1558 = vmul.f32 1.0, %v1557
    %v1559 = vmul.f32 %v1545, %v1556
    %v1560 = vmul.f32 %v1546, %v1558
    %s1561 = scalar_lea.vmem [#allocation9], 64
    %v1562 = vld [vmem:[%s1561] sm:$0xff]
    %v1563 = vld [vmem:[%s1561 + $0x8] sm:$0xff]
    %v1564 = vld [vmem:[%s1561 + $0x10] sm:$0xff]
    %v1565 = vld [vmem:[%s1561 + $0x18] sm:$0xff]
    %v1566 = vld [vmem:[%s1561 + $0x20] sm:$0xff]
    %v1567 = vld [vmem:[%s1561 + $0x28] sm:$0xff]
    %v1568 = vld [vmem:[%s1561 + $0x30] sm:$0xff]
    %v1569 = vld [vmem:[%s1561 + $0x38] sm:$0xff]
    %v1570 = vpack.c.bf16 %v1560, %v1559
    %v1571 = vpack.c.bf16 %v1563, %v1562
    %v1572 = vpack.c.bf16 %v1565, %v1564
    %v1573 = vpack.c.bf16 %v1567, %v1566
    %v1574 = vpack.c.bf16 %v1569, %v1568
    %s1575 = scalar_lea.vmem %s9, 1
    %v1576 = vld [vmem:[%s1575] sm:$0x1]
    %v1578 = vlaneseq
    %v1579 = vshrl.u32 %v1578, 7
    %v1580 = vsub.s32 0, %v1579
    %v1581 = vrot.slane %v1576, %v1580
    %v1584 = vsel %vm329, %v1570, 0
    %1586 = vmatprep.subr.bf16.mxu0 0
    %1587 = vmatpush1.bf16.msra.mxu0 %v1571
    %1588 = vmatprep.subr.bf16.mxu0 0
    %1589 = vmatpush1.bf16.msra.mxu0 %v1572
    %1590 = vmatprep.subr.bf16.mxu0 0
    %1591 = vmatpush1.bf16.msra.mxu0 %v1573
    %1592 = vmatprep.subr.bf16.mxu0 0
    %1593 = vmatpush1.bf16.msra.mxu0 %v1574
    %1594 = vmatprep.subr.bf16.mxu0 0
    %1595 = vmatpush1.bf16.msra.mxu0 0
    %1596 = vmatprep.subr.bf16.mxu0 0
    %1597 = vmatpush1.bf16.msra.mxu0 0
    %1598 = vmatprep.subr.bf16.mxu0 0
    %1599 = vmatpush1.bf16.msra.mxu0 0
    %1600 = vmatprep.subr.bf16.mxu0 0
    %1601 = vmatpush1.bf16.msra.mxu0 0
    %1602 = vmatprep.subr.bf16.mxu0 0
    %1603 = vmatpush1.bf16.msra.mxu0 0
    %1604 = vmatprep.subr.bf16.mxu0 0
    %1605 = vmatpush1.bf16.msra.mxu0 0
    %1606 = vmatprep.subr.bf16.mxu0 0
    %1607 = vmatpush1.bf16.msra.mxu0 0
    %1608 = vmatprep.subr.bf16.mxu0 0
    %1609 = vmatpush1.bf16.msra.mxu0 0
    %1610 = vmatprep.subr.bf16.mxu0 0
    %1611 = vmatpush1.bf16.msra.mxu0 0
    %1612 = vmatprep.subr.bf16.mxu0 0
    %1613 = vmatpush1.bf16.msra.mxu0 0
    %1614 = vmatprep.subr.bf16.mxu0 0
    %1615 = vmatpush1.bf16.msra.mxu0 0
    %1616 = vmatprep.subr.bf16.mxu0 0
    %1617 = vmatpush1.bf16.msra.mxu0 0
    %1618 = vmatprep.mubr.bf16.mxu0 0
    %1619 = vmatmul.mubr.bf16.gmra.mrb[0].mxu0 %v1584
    %v1620 = vpop.f32.mrb[0].mxu0
    %v1621 = vadd.f32 %v1581, %v1620
    %v1622 = vpop.f32.mrb[0].mxu0
    %v1623 = vpop.f32.mrb[0].mxu0
    %v1624 = vadd.f32 %v1581, %v1623
    %v1625 = vpop.f32.mrb[0].mxu0
    %1626 = vdwg.mxu0
    %v1627 = vmax.f32 %v1621, 0.0
    %v1628 = vmax.f32 %v1624, 0.0
    %vm1629 = vcmp.ne.f32.partialorder %v1621, %v1621
    %vm1630 = vcmp.ne.f32.partialorder %v1624, %v1624
    %v1631 = vadd.f32 %v1621, 0.0
    %v1632 = vadd.f32 %v1624, 0.0
    %v1633 = vand.u32 2147483647, %v1621
    %v1634 = vand.u32 2147483647, %v1624
    %v1635 = vsub.f32 0.0, %v1633
    %v1636 = vsub.f32 0.0, %v1634
    %v1637 = vmul.f32 %v1635, 1.442695
    %v1638 = vpow.pop %v1637
    %v1639 = vmul.f32 %v1636, 1.442695
    %v1640 = vpow.pop %v1639
    %v1641 = vadd.f32 %v1638, 1.0
    %v1642 = vlog2.pop %v1641
    %v1643 = vmul.f32 %v1642, 0.6931472
    %v1644 = vmul.f32 -0.5, %v1638
    %v1645 = vadd.f32 %v1644, 1.0
    %v1646 = vmul.f32 %v1645, %v1638
    %v1647 = vand.u32 2147483647, %v1638
    %vm1648 = vcmp.lt.f32.partialorder %v1647, 0.0004427343
    %v1649 = vsel %vm1648, %v1646, %v1643
    %v1650 = vadd.f32 %v1640, 1.0
    %v1651 = vlog2.pop %v1650
    %v1652 = vmul.f32 %v1651, 0.6931472
    %v1653 = vmul.f32 -0.5, %v1640
    %v1654 = vadd.f32 %v1653, 1.0
    %v1655 = vmul.f32 %v1654, %v1640
    %v1656 = vand.u32 2147483647, %v1640
    %vm1657 = vcmp.lt.f32.partialorder %v1656, 0.0004427343
    %v1658 = vsel %vm1657, %v1655, %v1652
    %v1659 = vadd.f32 %v1627, %v1649
    %v1660 = vadd.f32 %v1628, %v1658
    %v1661 = vsel %vm1629, %v1631, %v1659
    %v1662 = vsel %vm1630, %v1632, %v1660
    %v1663 = vmul.f32 %v1661, %v1559
    %v1664 = vmul.f32 %v1662, %v1560
    %s1665 = scalar_lea.vmem [#allocation6], 16
    %v1666 = vld [vmem:[%s1665] sm:$0xff]
    %v1667 = vld [vmem:[%s1665 + $0x8] sm:$0xff]
    %v1668 = vpack.c.bf16 %v1667, %v1666
    %v1670 = vsel %vm329, %v1668, 0
    %1672 = vmatprep.subr.bf16.mxu0 0
    %1673 = vmatpush1.bf16.xpose.msra.mxu0 %v1584
    %1674 = vmatprep.subr.bf16.mxu0 0
    %1675 = vmatpush1.bf16.xpose.msra.mxu0 0
    %1676 = vmatprep.subr.bf16.mxu0 0
    %1677 = vmatpush1.bf16.xpose.msra.mxu0 0
    %1678 = vmatprep.subr.bf16.mxu0 0
    %1679 = vmatpush1.bf16.xpose.msra.mxu0 0
    %1680 = vmatprep.subr.bf16.mxu0 0
    %1681 = vmatpush1.bf16.xpose.msra.mxu0 0
    %1682 = vmatprep.subr.bf16.mxu0 0
    %1683 = vmatpush1.bf16.xpose.msra.mxu0 0
    %1684 = vmatprep.subr.bf16.mxu0 0
    %1685 = vmatpush1.bf16.xpose.msra.mxu0 0
    %1686 = vmatprep.subr.bf16.mxu0 0
    %1687 = vmatpush1.bf16.xpose.msra.mxu0 0
    %1688 = vmatprep.subr.bf16.mxu0 0
    %1689 = vmatpush1.bf16.xpose.msra.mxu0 0
    %1690 = vmatprep.subr.bf16.mxu0 0
    %1691 = vmatpush1.bf16.xpose.msra.mxu0 0
    %1692 = vmatprep.subr.bf16.mxu0 0
    %1693 = vmatpush1.bf16.xpose.msra.mxu0 0
    %1694 = vmatprep.subr.bf16.mxu0 0
    %1695 = vmatpush1.bf16.xpose.msra.mxu0 0
    %1696 = vmatprep.subr.bf16.mxu0 0
    %1697 = vmatpush1.bf16.xpose.msra.mxu0 0
    %1698 = vmatprep.subr.bf16.mxu0 0
    %1699 = vmatpush1.bf16.xpose.msra.mxu0 0
    %1700 = vmatprep.subr.bf16.mxu0 0
    %1701 = vmatpush1.bf16.xpose.msra.mxu0 0
    %1702 = vmatprep.subr.bf16.mxu0 0
    %1703 = vmatpush1.bf16.xpose.msra.mxu0 0
    %1704 = vmatprep.mubr.bf16.mxu0 0
    %1705 = vmatmul.mubr.bf16.gmra.mrb[0].mxu0 %v1670
    %v1706 = vpop.f32.mrb[0].mxu0
    %v1707 = vadd.f32 0.0, %v1706
    %v1708 = vpop.f32.mrb[0].mxu0
    %v1709 = vpop.f32.mrb[0].mxu0
    %v1710 = vadd.f32 0.0, %v1709
    %v1711 = vpop.f32.mrb[0].mxu0
    %1712 = vdwg.mxu0
    %s1713 = scalar_lea.vmem [#allocation8], 16
    %v1714 = vld [vmem:[%s1713] sm:$0xff]
    %v1715 = vld [vmem:[%s1713 + $0x8] sm:$0xff]
    %v1716 = vpack.c.bf16 %v1715, %v1714
    %v1718 = vsel %vm329, %v1716, 0
    %1720 = vmatprep.subr.bf16.mxu0 0
    %1721 = vmatpush1.bf16.xpose.msra.mxu0 %v1584
    %1722 = vmatprep.subr.bf16.mxu0 0
    %1723 = vmatpush1.bf16.xpose.msra.mxu0 0
    %1724 = vmatprep.subr.bf16.mxu0 0
    %1725 = vmatpush1.bf16.xpose.msra.mxu0 0
    %1726 = vmatprep.subr.bf16.mxu0 0
    %1727 = vmatpush1.bf16.xpose.msra.mxu0 0
    %1728 = vmatprep.subr.bf16.mxu0 0
    %1729 = vmatpush1.bf16.xpose.msra.mxu0 0
    %1730 = vmatprep.subr.bf16.mxu0 0
    %1731 = vmatpush1.bf16.xpose.msra.mxu0 0
    %1732 = vmatprep.subr.bf16.mxu0 0
    %1733 = vmatpush1.bf16.xpose.msra.mxu0 0
    %1734 = vmatprep.subr.bf16.mxu0 0
    %1735 = vmatpush1.bf16.xpose.msra.mxu0 0
    %1736 = vmatprep.subr.bf16.mxu0 0
    %1737 = vmatpush1.bf16.xpose.msra.mxu0 0
    %1738 = vmatprep.subr.bf16.mxu0 0
    %1739 = vmatpush1.bf16.xpose.msra.mxu0 0
    %1740 = vmatprep.subr.bf16.mxu0 0
    %1741 = vmatpush1.bf16.xpose.msra.mxu0 0
    %1742 = vmatprep.subr.bf16.mxu0 0
    %1743 = vmatpush1.bf16.xpose.msra.mxu0 0
    %1744 = vmatprep.subr.bf16.mxu0 0
    %1745 = vmatpush1.bf16.xpose.msra.mxu0 0
    %1746 = vmatprep.subr.bf16.mxu0 0
    %1747 = vmatpush1.bf16.xpose.msra.mxu0 0
    %1748 = vmatprep.subr.bf16.mxu0 0
    %1749 = vmatpush1.bf16.xpose.msra.mxu0 0
    %1750 = vmatprep.subr.bf16.mxu0 0
    %1751 = vmatpush1.bf16.xpose.msra.mxu0 0
    %1752 = vmatprep.mubr.bf16.mxu0 0
    %1753 = vmatmul.mubr.bf16.gmra.mrb[0].mxu0 %v1718
    %v1754 = vpop.f32.mrb[0].mxu0
    %v1755 = vadd.f32 0.0, %v1754
    %v1756 = vpop.f32.mrb[0].mxu0
    %v1757 = vpop.f32.mrb[0].mxu0
    %v1758 = vadd.f32 0.0, %v1757
    %v1759 = vpop.f32.mrb[0].mxu0
    %1760 = vdwg.mxu0
    %s1761 = scalar_lea.vmem [#allocation11], 16
    %v1762 = vld [vmem:[%s1761] sm:$0xff]
    %v1763 = vld [vmem:[%s1761 + $0x8] sm:$0xff]
    %1765 = vrot.lane.b32.xlu0 %v1662, 64
    %v1766 = vpop.permute.xlu0 %1765
    %v1768 = vsel %vm329, %v1661, %v1766
    %v1769 = vlaneseq
    %v1770 = vshrl.u32 %v1769, 7
    %v1771 = vsub.s32 0, %v1770
    %v1772 = vrot.slane %v1768, %v1771
    %v1773 = vmul.f32 %v1772, %v1762
    %v1774 = vmul.f32 %v1772, %v1763
    %v1775 = vmul.f32 %v1773, 1.442695
    %v1776 = vpow.pop %v1775
    %v1777 = vmul.f32 %v1774, 1.442695
    %v1778 = vpow.pop %v1777
    %v1779 = vlaneseq
    %v1780 = vshrl.u32 %v1779, 7
    %v1781 = vsub.s32 1, %v1780
    %v1782 = vrot.slane %v1768, %v1781
    %v1783 = vmul.f32 %v1782, %v1762
    %v1784 = vmul.f32 %v1782, %v1763
    %v1785 = vmul.f32 %v1783, 1.442695
    %v1786 = vpow.pop %v1785
    %v1787 = vmul.f32 %v1784, 1.442695
    %v1788 = vpow.pop %v1787
    %v1789 = vlaneseq
    %v1790 = vshrl.u32 %v1789, 7
    %v1791 = vsub.s32 2, %v1790
    %v1792 = vrot.slane %v1768, %v1791
    %v1793 = vmul.f32 %v1792, %v1762
    %v1794 = vmul.f32 %v1792, %v1763
    %v1795 = vmul.f32 %v1793, 1.442695
    %v1796 = vpow.pop %v1795
    %v1797 = vmul.f32 %v1794, 1.442695
    %v1798 = vpow.pop %v1797
    %v1799 = vlaneseq
    %v1800 = vshrl.u32 %v1799, 7
    %v1801 = vsub.s32 3, %v1800
    %v1802 = vrot.slane %v1768, %v1801
    %v1803 = vmul.f32 %v1802, %v1762
    %v1804 = vmul.f32 %v1802, %v1763
    %v1805 = vmul.f32 %v1803, 1.442695
    %v1806 = vpow.pop %v1805
    %v1807 = vmul.f32 %v1804, 1.442695
    %v1808 = vpow.pop %v1807
    %v1809 = vlaneseq
    %v1810 = vshrl.u32 %v1809, 7
    %v1811 = vsub.s32 4, %v1810
    %v1812 = vrot.slane %v1768, %v1811
    %v1813 = vmul.f32 %v1812, %v1762
    %v1814 = vmul.f32 %v1812, %v1763
    %v1815 = vmul.f32 %v1813, 1.442695
    %v1816 = vpow.pop %v1815
    %v1817 = vmul.f32 %v1814, 1.442695
    %v1818 = vpow.pop %v1817
    %v1819 = vlaneseq
    %v1820 = vshrl.u32 %v1819, 7
    %v1821 = vsub.s32 5, %v1820
    %v1822 = vrot.slane %v1768, %v1821
    %v1823 = vmul.f32 %v1822, %v1762
    %v1824 = vmul.f32 %v1822, %v1763
    %v1825 = vmul.f32 %v1823, 1.442695
    %v1826 = vpow.pop %v1825
    %v1827 = vmul.f32 %v1824, 1.442695
    %v1828 = vpow.pop %v1827
    %v1829 = vlaneseq
    %v1830 = vshrl.u32 %v1829, 7
    %v1831 = vsub.s32 6, %v1830
    %v1832 = vrot.slane %v1768, %v1831
    %v1833 = vmul.f32 %v1832, %v1762
    %v1834 = vmul.f32 %v1832, %v1763
    %v1835 = vmul.f32 %v1833, 1.442695
    %v1836 = vpow.pop %v1835
    %v1837 = vmul.f32 %v1834, 1.442695
    %v1838 = vpow.pop %v1837
    %v1839 = vlaneseq
    %v1840 = vshrl.u32 %v1839, 7
    %v1841 = vsub.s32 7, %v1840
    %v1842 = vrot.slane %v1768, %v1841
    %v1843 = vmul.f32 %v1842, %v1762
    %v1844 = vmul.f32 %v1842, %v1763
    %v1845 = vmul.f32 %v1843, 1.442695
    %v1846 = vpow.pop %v1845
    %v1847 = vmul.f32 %v1844, 1.442695
    %v1848 = vpow.pop %v1847
    %1850 = vset.pattern.permute.xlu0 0
    %1851 = vperm.xlu0 %1850, %v1707
    %v1852 = vpop.permute.xlu0 %1851
    %1855 = vset.pattern.permute.xlu0 0
    %1856 = vperm.xlu0 %1855, %v1710
    %v1857 = vpop.permute.xlu0 %1856
    %v1859 = vlaneseq
    %v1860 = vshrl.u32 %v1859, 7
    %v1861 = vsub.s32 0, %v1860
    %v1862 = vrot.slane %v1663, %v1861
    %v1863 = vmul.f32 %v1852, %v1862
    %v1864 = vmul.f32 %v1857, %v1862
    %1865 = vset.pattern.permute.xlu0 8
    %1866 = vperm.xlu0 %1865, %v1707
    %v1867 = vpop.permute.xlu0 %1866
    %1869 = vset.pattern.permute.xlu0 8
    %1870 = vperm.xlu0 %1869, %v1710
    %v1871 = vpop.permute.xlu0 %1870
    %v1873 = vlaneseq
    %v1874 = vshrl.u32 %v1873, 7
    %v1875 = vsub.s32 0, %v1874
    %v1876 = vrot.slane %v1664, %v1875
    %v1877 = vmul.f32 %v1867, %v1876
    %v1878 = vmul.f32 %v1871, %v1876
    %1881 = vrot.lane.b32.xlu0 %v1877, 64
    %v1882 = vpop.permute.xlu0 %1881
    %1883 = vrot.lane.b32.xlu0 %v1878, 64
    %v1884 = vpop.permute.xlu0 %1883
    %v1887 = vsel %vm329, %v1863, %v1882
    %v1888 = vsel %vm329, %v1864, %v1884
    %1889 = vset.pattern.permute.xlu0 1
    %1890 = vperm.xlu0 %1889, %v1707
    %v1891 = vpop.permute.xlu0 %1890
    %1893 = vset.pattern.permute.xlu0 1
    %1894 = vperm.xlu0 %1893, %v1710
    %v1895 = vpop.permute.xlu0 %1894
    %v1897 = vlaneseq
    %v1898 = vshrl.u32 %v1897, 7
    %v1899 = vsub.s32 1, %v1898
    %v1900 = vrot.slane %v1663, %v1899
    %v1901 = vmul.f32 %v1891, %v1900
    %v1902 = vmul.f32 %v1895, %v1900
    %1903 = vset.pattern.permute.xlu0 9
    %1904 = vperm.xlu0 %1903, %v1707
    %v1905 = vpop.permute.xlu0 %1904
    %1907 = vset.pattern.permute.xlu0 9
    %1908 = vperm.xlu0 %1907, %v1710
    %v1909 = vpop.permute.xlu0 %1908
    %v1911 = vlaneseq
    %v1912 = vshrl.u32 %v1911, 7
    %v1913 = vsub.s32 1, %v1912
    %v1914 = vrot.slane %v1664, %v1913
    %v1915 = vmul.f32 %v1905, %v1914
    %v1916 = vmul.f32 %v1909, %v1914
    %1919 = vrot.lane.b32.xlu0 %v1915, 64
    %v1920 = vpop.permute.xlu0 %1919
    %1921 = vrot.lane.b32.xlu0 %v1916, 64
    %v1922 = vpop.permute.xlu0 %1921
    %v1925 = vsel %vm329, %v1901, %v1920
    %v1926 = vsel %vm329, %v1902, %v1922
    %1927 = vset.pattern.permute.xlu0 2
    %1928 = vperm.xlu0 %1927, %v1707
    %v1929 = vpop.permute.xlu0 %1928
    %1931 = vset.pattern.permute.xlu0 2
    %1932 = vperm.xlu0 %1931, %v1710
    %v1933 = vpop.permute.xlu0 %1932
    %v1935 = vlaneseq
    %v1936 = vshrl.u32 %v1935, 7
    %v1937 = vsub.s32 2, %v1936
    %v1938 = vrot.slane %v1663, %v1937
    %v1939 = vmul.f32 %v1929, %v1938
    %v1940 = vmul.f32 %v1933, %v1938
    %1941 = vset.pattern.permute.xlu0 10
    %1942 = vperm.xlu0 %1941, %v1707
    %v1943 = vpop.permute.xlu0 %1942
    %1945 = vset.pattern.permute.xlu0 10
    %1946 = vperm.xlu0 %1945, %v1710
    %v1947 = vpop.permute.xlu0 %1946
    %v1949 = vlaneseq
    %v1950 = vshrl.u32 %v1949, 7
    %v1951 = vsub.s32 2, %v1950
    %v1952 = vrot.slane %v1664, %v1951
    %v1953 = vmul.f32 %v1943, %v1952
    %v1954 = vmul.f32 %v1947, %v1952
    %1957 = vrot.lane.b32.xlu0 %v1953, 64
    %v1958 = vpop.permute.xlu0 %1957
    %1959 = vrot.lane.b32.xlu0 %v1954, 64
    %v1960 = vpop.permute.xlu0 %1959
    %v1963 = vsel %vm329, %v1939, %v1958
    %v1964 = vsel %vm329, %v1940, %v1960
    %1965 = vset.pattern.permute.xlu0 3
    %1966 = vperm.xlu0 %1965, %v1707
    %v1967 = vpop.permute.xlu0 %1966
    %1969 = vset.pattern.permute.xlu0 3
    %1970 = vperm.xlu0 %1969, %v1710
    %v1971 = vpop.permute.xlu0 %1970
    %v1973 = vlaneseq
    %v1974 = vshrl.u32 %v1973, 7
    %v1975 = vsub.s32 3, %v1974
    %v1976 = vrot.slane %v1663, %v1975
    %v1977 = vmul.f32 %v1967, %v1976
    %v1978 = vmul.f32 %v1971, %v1976
    %1979 = vset.pattern.permute.xlu0 11
    %1980 = vperm.xlu0 %1979, %v1707
    %v1981 = vpop.permute.xlu0 %1980
    %1983 = vset.pattern.permute.xlu0 11
    %1984 = vperm.xlu0 %1983, %v1710
    %v1985 = vpop.permute.xlu0 %1984
    %v1987 = vlaneseq
    %v1988 = vshrl.u32 %v1987, 7
    %v1989 = vsub.s32 3, %v1988
    %v1990 = vrot.slane %v1664, %v1989
    %v1991 = vmul.f32 %v1981, %v1990
    %v1992 = vmul.f32 %v1985, %v1990
    %1995 = vrot.lane.b32.xlu0 %v1991, 64
    %v1996 = vpop.permute.xlu0 %1995
    %1997 = vrot.lane.b32.xlu0 %v1992, 64
    %v1998 = vpop.permute.xlu0 %1997
    %v2001 = vsel %vm329, %v1977, %v1996
    %v2002 = vsel %vm329, %v1978, %v1998
    %2003 = vset.pattern.permute.xlu0 4
    %2004 = vperm.xlu0 %2003, %v1707
    %v2005 = vpop.permute.xlu0 %2004
    %2007 = vset.pattern.permute.xlu0 4
    %2008 = vperm.xlu0 %2007, %v1710
    %v2009 = vpop.permute.xlu0 %2008
    %v2011 = vlaneseq
    %v2012 = vshrl.u32 %v2011, 7
    %v2013 = vsub.s32 4, %v2012
    %v2014 = vrot.slane %v1663, %v2013
    %v2015 = vmul.f32 %v2005, %v2014
    %v2016 = vmul.f32 %v2009, %v2014
    %2017 = vset.pattern.permute.xlu0 12
    %2018 = vperm.xlu0 %2017, %v1707
    %v2019 = vpop.permute.xlu0 %2018
    %2021 = vset.pattern.permute.xlu0 12
    %2022 = vperm.xlu0 %2021, %v1710
    %v2023 = vpop.permute.xlu0 %2022
    %v2025 = vlaneseq
    %v2026 = vshrl.u32 %v2025, 7
    %v2027 = vsub.s32 4, %v2026
    %v2028 = vrot.slane %v1664, %v2027
    %v2029 = vmul.f32 %v2019, %v2028
    %v2030 = vmul.f32 %v2023, %v2028
    %2033 = vrot.lane.b32.xlu0 %v2029, 64
    %v2034 = vpop.permute.xlu0 %2033
    %2035 = vrot.lane.b32.xlu0 %v2030, 64
    %v2036 = vpop.permute.xlu0 %2035
    %v2039 = vsel %vm329, %v2015, %v2034
    %v2040 = vsel %vm329, %v2016, %v2036
    %2041 = vset.pattern.permute.xlu0 5
    %2042 = vperm.xlu0 %2041, %v1707
    %v2043 = vpop.permute.xlu0 %2042
    %2045 = vset.pattern.permute.xlu0 5
    %2046 = vperm.xlu0 %2045, %v1710
    %v2047 = vpop.permute.xlu0 %2046
    %v2049 = vlaneseq
    %v2050 = vshrl.u32 %v2049, 7
    %v2051 = vsub.s32 5, %v2050
    %v2052 = vrot.slane %v1663, %v2051
    %v2053 = vmul.f32 %v2043, %v2052
    %v2054 = vmul.f32 %v2047, %v2052
    %2055 = vset.pattern.permute.xlu0 13
    %2056 = vperm.xlu0 %2055, %v1707
    %v2057 = vpop.permute.xlu0 %2056
    %2059 = vset.pattern.permute.xlu0 13
    %2060 = vperm.xlu0 %2059, %v1710
    %v2061 = vpop.permute.xlu0 %2060
    %v2063 = vlaneseq
    %v2064 = vshrl.u32 %v2063, 7
    %v2065 = vsub.s32 5, %v2064
    %v2066 = vrot.slane %v1664, %v2065
    %v2067 = vmul.f32 %v2057, %v2066
    %v2068 = vmul.f32 %v2061, %v2066
    %2071 = vrot.lane.b32.xlu0 %v2067, 64
    %v2072 = vpop.permute.xlu0 %2071
    %2073 = vrot.lane.b32.xlu0 %v2068, 64
    %v2074 = vpop.permute.xlu0 %2073
    %v2077 = vsel %vm329, %v2053, %v2072
    %v2078 = vsel %vm329, %v2054, %v2074
    %2079 = vset.pattern.permute.xlu0 6
    %2080 = vperm.xlu0 %2079, %v1707
    %v2081 = vpop.permute.xlu0 %2080
    %2083 = vset.pattern.permute.xlu0 6
    %2084 = vperm.xlu0 %2083, %v1710
    %v2085 = vpop.permute.xlu0 %2084
    %v2087 = vlaneseq
    %v2088 = vshrl.u32 %v2087, 7
    %v2089 = vsub.s32 6, %v2088
    %v2090 = vrot.slane %v1663, %v2089
    %v2091 = vmul.f32 %v2081, %v2090
    %v2092 = vmul.f32 %v2085, %v2090
    %2093 = vset.pattern.permute.xlu0 14
    %2094 = vperm.xlu0 %2093, %v1707
    %v2095 = vpop.permute.xlu0 %2094
    %2097 = vset.pattern.permute.xlu0 14
    %2098 = vperm.xlu0 %2097, %v1710
    %v2099 = vpop.permute.xlu0 %2098
    %v2101 = vlaneseq
    %v2102 = vshrl.u32 %v2101, 7
    %v2103 = vsub.s32 6, %v2102
    %v2104 = vrot.slane %v1664, %v2103
    %v2105 = vmul.f32 %v2095, %v2104
    %v2106 = vmul.f32 %v2099, %v2104
    %2109 = vrot.lane.b32.xlu0 %v2105, 64
    %v2110 = vpop.permute.xlu0 %2109
    %2111 = vrot.lane.b32.xlu0 %v2106, 64
    %v2112 = vpop.permute.xlu0 %2111
    %v2115 = vsel %vm329, %v2091, %v2110
    %v2116 = vsel %vm329, %v2092, %v2112
    %2117 = vset.pattern.permute.xlu0 7
    %2118 = vperm.xlu0 %2117, %v1707
    %v2119 = vpop.permute.xlu0 %2118
    %2121 = vset.pattern.permute.xlu0 7
    %2122 = vperm.xlu0 %2121, %v1710
    %v2123 = vpop.permute.xlu0 %2122
    %v2125 = vlaneseq
    %v2126 = vshrl.u32 %v2125, 7
    %v2127 = vsub.s32 7, %v2126
    %v2128 = vrot.slane %v1663, %v2127
    %v2129 = vmul.f32 %v2119, %v2128
    %v2130 = vmul.f32 %v2123, %v2128
    %2131 = vset.pattern.permute.xlu0 15
    %2132 = vperm.xlu0 %2131, %v1707
    %v2133 = vpop.permute.xlu0 %2132
    %2135 = vset.pattern.permute.xlu0 15
    %2136 = vperm.xlu0 %2135, %v1710
    %v2137 = vpop.permute.xlu0 %2136
    %v2139 = vlaneseq
    %v2140 = vshrl.u32 %v2139, 7
    %v2141 = vsub.s32 7, %v2140
    %v2142 = vrot.slane %v1664, %v2141
    %v2143 = vmul.f32 %v2133, %v2142
    %v2144 = vmul.f32 %v2137, %v2142
    %2147 = vrot.lane.b32.xlu0 %v2143, 64
    %v2148 = vpop.permute.xlu0 %2147
    %2149 = vrot.lane.b32.xlu0 %v2144, 64
    %v2150 = vpop.permute.xlu0 %2149
    %v2153 = vsel %vm329, %v2129, %v2148
    %v2154 = vsel %vm329, %v2130, %v2150
    %v2155 = vmul.f32 %v1776, 0.0
    %v2156 = vmul.f32 %v1778, 0.0
    %v2157 = vadd.f32 %v2155, %v1887
    %v2158 = vadd.f32 %v2156, %v1888
    %2160 = vset.pattern.permute.xlu0 0
    %2161 = vperm.xlu0 %2160, %v1755
    %v2162 = vpop.permute.xlu0 %2161
    %2165 = vset.pattern.permute.xlu0 0
    %2166 = vperm.xlu0 %2165, %v1758
    %v2167 = vpop.permute.xlu0 %2166
    %v2169 = vmul.f32 %v2162, %v2157
    %v2170 = vmul.f32 %v2167, %v2158
    %v2171 = vsel %vm329, %v2169, 0.0
    %v2172 = vsel %vm329, %v2170, 0.0
    %v2173 = vadd.f32 %v2171, %v2172
    %v2174 = vrot.slane %v2173, 4
    %v2175 = vadd.f32 %v2173, %v2174
    %v2176 = vrot.slane %v2175, 2
    %v2177 = vadd.f32 %v2175, %v2176
    %v2178 = vrot.slane %v2177, 1
    %v2179 = vadd.f32 %v2177, %v2178
    %2180 = vst.msk [vmem:[#allocation2] sm:$0x1] %vm924, %v2179
    %2181 = vset.pattern.permute.xlu0 8
    %2182 = vperm.xlu0 %2181, %v1755
    %v2183 = vpop.permute.xlu0 %2182
    %2185 = vset.pattern.permute.xlu0 8
    %2186 = vperm.xlu0 %2185, %v1758
    %v2187 = vpop.permute.xlu0 %2186
    %v2189 = vmul.f32 %v2183, %v2157
    %v2190 = vmul.f32 %v2187, %v2158
    %v2191 = vsel %vm936, %v2189, 0.0
    %v2192 = vsel %vm936, %v2190, 0.0
    %v2193 = vadd.f32 %v2191, %v2192
    %v2194 = vrot.slane %v2193, 4
    %v2195 = vadd.f32 %v2193, %v2194
    %v2196 = vrot.slane %v2195, 2
    %v2197 = vadd.f32 %v2195, %v2196
    %v2198 = vrot.slane %v2197, 1
    %v2199 = vadd.f32 %v2197, %v2198
    %2201 = vrot.lane.b32.xlu0 %v2199, 64
    %v2202 = vpop.permute.xlu0 %2201
    %2204 = vst.msk [vmem:[#allocation2 + $0x8] sm:$0x1] %vm924, %v2202
    %v2205 = vmul.f32 %v1786, %v2157
    %v2206 = vmul.f32 %v1788, %v2158
    %v2207 = vadd.f32 %v2205, %v1925
    %v2208 = vadd.f32 %v2206, %v1926
    %2209 = vset.pattern.permute.xlu0 1
    %2210 = vperm.xlu0 %2209, %v1755
    %v2211 = vpop.permute.xlu0 %2210
    %2213 = vset.pattern.permute.xlu0 1
    %2214 = vperm.xlu0 %2213, %v1758
    %v2215 = vpop.permute.xlu0 %2214
    %v2217 = vmul.f32 %v2211, %v2207
    %v2218 = vmul.f32 %v2215, %v2208
    %v2219 = vsel %vm329, %v2217, 0.0
    %v2220 = vsel %vm329, %v2218, 0.0
    %v2221 = vadd.f32 %v2219, %v2220
    %v2222 = vrot.slane %v2221, 4
    %v2223 = vadd.f32 %v2221, %v2222
    %v2224 = vrot.slane %v2223, 2
    %v2225 = vadd.f32 %v2223, %v2224
    %v2226 = vrot.slane %v2225, 1
    %v2227 = vadd.f32 %v2225, %v2226
    %2228 = vst.msk [vmem:[#allocation2 + $0x1] sm:$0x1] %vm924, %v2227
    %2229 = vset.pattern.permute.xlu0 9
    %2230 = vperm.xlu0 %2229, %v1755
    %v2231 = vpop.permute.xlu0 %2230
    %2233 = vset.pattern.permute.xlu0 9
    %2234 = vperm.xlu0 %2233, %v1758
    %v2235 = vpop.permute.xlu0 %2234
    %v2237 = vmul.f32 %v2231, %v2207
    %v2238 = vmul.f32 %v2235, %v2208
    %v2239 = vsel %vm936, %v2237, 0.0
    %v2240 = vsel %vm936, %v2238, 0.0
    %v2241 = vadd.f32 %v2239, %v2240
    %v2242 = vrot.slane %v2241, 4
    %v2243 = vadd.f32 %v2241, %v2242
    %v2244 = vrot.slane %v2243, 2
    %v2245 = vadd.f32 %v2243, %v2244
    %v2246 = vrot.slane %v2245, 1
    %v2247 = vadd.f32 %v2245, %v2246
    %2249 = vrot.lane.b32.xlu0 %v2247, 64
    %v2250 = vpop.permute.xlu0 %2249
    %2252 = vst.msk [vmem:[#allocation2 + $0x9] sm:$0x1] %vm924, %v2250
    %v2253 = vmul.f32 %v1796, %v2207
    %v2254 = vmul.f32 %v1798, %v2208
    %v2255 = vadd.f32 %v2253, %v1963
    %v2256 = vadd.f32 %v2254, %v1964
    %2257 = vset.pattern.permute.xlu0 2
    %2258 = vperm.xlu0 %2257, %v1755
    %v2259 = vpop.permute.xlu0 %2258
    %2261 = vset.pattern.permute.xlu0 2
    %2262 = vperm.xlu0 %2261, %v1758
    %v2263 = vpop.permute.xlu0 %2262
    %v2265 = vmul.f32 %v2259, %v2255
    %v2266 = vmul.f32 %v2263, %v2256
    %v2267 = vsel %vm329, %v2265, 0.0
    %v2268 = vsel %vm329, %v2266, 0.0
    %v2269 = vadd.f32 %v2267, %v2268
    %v2270 = vrot.slane %v2269, 4
    %v2271 = vadd.f32 %v2269, %v2270
    %v2272 = vrot.slane %v2271, 2
    %v2273 = vadd.f32 %v2271, %v2272
    %v2274 = vrot.slane %v2273, 1
    %v2275 = vadd.f32 %v2273, %v2274
    %2276 = vst.msk [vmem:[#allocation2 + $0x2] sm:$0x1] %vm924, %v2275
    %2277 = vset.pattern.permute.xlu0 10
    %2278 = vperm.xlu0 %2277, %v1755
    %v2279 = vpop.permute.xlu0 %2278
    %2281 = vset.pattern.permute.xlu0 10
    %2282 = vperm.xlu0 %2281, %v1758
    %v2283 = vpop.permute.xlu0 %2282
    %v2285 = vmul.f32 %v2279, %v2255
    %v2286 = vmul.f32 %v2283, %v2256
    %v2287 = vsel %vm936, %v2285, 0.0
    %v2288 = vsel %vm936, %v2286, 0.0
    %v2289 = vadd.f32 %v2287, %v2288
    %v2290 = vrot.slane %v2289, 4
    %v2291 = vadd.f32 %v2289, %v2290
    %v2292 = vrot.slane %v2291, 2
    %v2293 = vadd.f32 %v2291, %v2292
    %v2294 = vrot.slane %v2293, 1
    %v2295 = vadd.f32 %v2293, %v2294
    %2297 = vrot.lane.b32.xlu0 %v2295, 64
    %v2298 = vpop.permute.xlu0 %2297
    %2300 = vst.msk [vmem:[#allocation2 + $0xa] sm:$0x1] %vm924, %v2298
    %v2301 = vmul.f32 %v1806, %v2255
    %v2302 = vmul.f32 %v1808, %v2256
    %v2303 = vadd.f32 %v2301, %v2001
    %v2304 = vadd.f32 %v2302, %v2002
    %2305 = vset.pattern.permute.xlu0 3
    %2306 = vperm.xlu0 %2305, %v1755
    %v2307 = vpop.permute.xlu0 %2306
    %2309 = vset.pattern.permute.xlu0 3
    %2310 = vperm.xlu0 %2309, %v1758
    %v2311 = vpop.permute.xlu0 %2310
    %v2313 = vmul.f32 %v2307, %v2303
    %v2314 = vmul.f32 %v2311, %v2304
    %v2315 = vsel %vm329, %v2313, 0.0
    %v2316 = vsel %vm329, %v2314, 0.0
    %v2317 = vadd.f32 %v2315, %v2316
    %v2318 = vrot.slane %v2317, 4
    %v2319 = vadd.f32 %v2317, %v2318
    %v2320 = vrot.slane %v2319, 2
    %v2321 = vadd.f32 %v2319, %v2320
    %v2322 = vrot.slane %v2321, 1
    %v2323 = vadd.f32 %v2321, %v2322
    %2324 = vst.msk [vmem:[#allocation2 + $0x3] sm:$0x1] %vm924, %v2323
    %2325 = vset.pattern.permute.xlu0 11
    %2326 = vperm.xlu0 %2325, %v1755
    %v2327 = vpop.permute.xlu0 %2326
    %2329 = vset.pattern.permute.xlu0 11
    %2330 = vperm.xlu0 %2329, %v1758
    %v2331 = vpop.permute.xlu0 %2330
    %v2333 = vmul.f32 %v2327, %v2303
    %v2334 = vmul.f32 %v2331, %v2304
    %v2335 = vsel %vm936, %v2333, 0.0
    %v2336 = vsel %vm936, %v2334, 0.0
    %v2337 = vadd.f32 %v2335, %v2336
    %v2338 = vrot.slane %v2337, 4
    %v2339 = vadd.f32 %v2337, %v2338
    %v2340 = vrot.slane %v2339, 2
    %v2341 = vadd.f32 %v2339, %v2340
    %v2342 = vrot.slane %v2341, 1
    %v2343 = vadd.f32 %v2341, %v2342
    %2345 = vrot.lane.b32.xlu0 %v2343, 64
    %v2346 = vpop.permute.xlu0 %2345
    %2348 = vst.msk [vmem:[#allocation2 + $0xb] sm:$0x1] %vm924, %v2346
    %v2349 = vmul.f32 %v1816, %v2303
    %v2350 = vmul.f32 %v1818, %v2304
    %v2351 = vadd.f32 %v2349, %v2039
    %v2352 = vadd.f32 %v2350, %v2040
    %2353 = vset.pattern.permute.xlu0 4
    %2354 = vperm.xlu0 %2353, %v1755
    %v2355 = vpop.permute.xlu0 %2354
    %2357 = vset.pattern.permute.xlu0 4
    %2358 = vperm.xlu0 %2357, %v1758
    %v2359 = vpop.permute.xlu0 %2358
    %v2361 = vmul.f32 %v2355, %v2351
    %v2362 = vmul.f32 %v2359, %v2352
    %v2363 = vsel %vm329, %v2361, 0.0
    %v2364 = vsel %vm329, %v2362, 0.0
    %v2365 = vadd.f32 %v2363, %v2364
    %v2366 = vrot.slane %v2365, 4
    %v2367 = vadd.f32 %v2365, %v2366
    %v2368 = vrot.slane %v2367, 2
    %v2369 = vadd.f32 %v2367, %v2368
    %v2370 = vrot.slane %v2369, 1
    %v2371 = vadd.f32 %v2369, %v2370
    %2372 = vst.msk [vmem:[#allocation2 + $0x4] sm:$0x1] %vm924, %v2371
    %2373 = vset.pattern.permute.xlu0 12
    %2374 = vperm.xlu0 %2373, %v1755
    %v2375 = vpop.permute.xlu0 %2374
    %2377 = vset.pattern.permute.xlu0 12
    %2378 = vperm.xlu0 %2377, %v1758
    %v2379 = vpop.permute.xlu0 %2378
    %v2381 = vmul.f32 %v2375, %v2351
    %v2382 = vmul.f32 %v2379, %v2352
    %v2383 = vsel %vm936, %v2381, 0.0
    %v2384 = vsel %vm936, %v2382, 0.0
    %v2385 = vadd.f32 %v2383, %v2384
    %v2386 = vrot.slane %v2385, 4
    %v2387 = vadd.f32 %v2385, %v2386
    %v2388 = vrot.slane %v2387, 2
    %v2389 = vadd.f32 %v2387, %v2388
    %v2390 = vrot.slane %v2389, 1
    %v2391 = vadd.f32 %v2389, %v2390
    %2393 = vrot.lane.b32.xlu0 %v2391, 64
    %v2394 = vpop.permute.xlu0 %2393
    %2396 = vst.msk [vmem:[#allocation2 + $0xc] sm:$0x1] %vm924, %v2394
    %v2397 = vmul.f32 %v1826, %v2351
    %v2398 = vmul.f32 %v1828, %v2352
    %v2399 = vadd.f32 %v2397, %v2077
    %v2400 = vadd.f32 %v2398, %v2078
    %2401 = vset.pattern.permute.xlu0 5
    %2402 = vperm.xlu0 %2401, %v1755
    %v2403 = vpop.permute.xlu0 %2402
    %2405 = vset.pattern.permute.xlu0 5
    %2406 = vperm.xlu0 %2405, %v1758
    %v2407 = vpop.permute.xlu0 %2406
    %v2409 = vmul.f32 %v2403, %v2399
    %v2410 = vmul.f32 %v2407, %v2400
    %v2411 = vsel %vm329, %v2409, 0.0
    %v2412 = vsel %vm329, %v2410, 0.0
    %v2413 = vadd.f32 %v2411, %v2412
    %v2414 = vrot.slane %v2413, 4
    %v2415 = vadd.f32 %v2413, %v2414
    %v2416 = vrot.slane %v2415, 2
    %v2417 = vadd.f32 %v2415, %v2416
    %v2418 = vrot.slane %v2417, 1
    %v2419 = vadd.f32 %v2417, %v2418
    %2420 = vst.msk [vmem:[#allocation2 + $0x5] sm:$0x1] %vm924, %v2419
    %2421 = vset.pattern.permute.xlu0 13
    %2422 = vperm.xlu0 %2421, %v1755
    %v2423 = vpop.permute.xlu0 %2422
    %2425 = vset.pattern.permute.xlu0 13
    %2426 = vperm.xlu0 %2425, %v1758
    %v2427 = vpop.permute.xlu0 %2426
    %v2429 = vmul.f32 %v2423, %v2399
    %v2430 = vmul.f32 %v2427, %v2400
    %v2431 = vsel %vm936, %v2429, 0.0
    %v2432 = vsel %vm936, %v2430, 0.0
    %v2433 = vadd.f32 %v2431, %v2432
    %v2434 = vrot.slane %v2433, 4
    %v2435 = vadd.f32 %v2433, %v2434
    %v2436 = vrot.slane %v2435, 2
    %v2437 = vadd.f32 %v2435, %v2436
    %v2438 = vrot.slane %v2437, 1
    %v2439 = vadd.f32 %v2437, %v2438
    %2441 = vrot.lane.b32.xlu0 %v2439, 64
    %v2442 = vpop.permute.xlu0 %2441
    %2444 = vst.msk [vmem:[#allocation2 + $0xd] sm:$0x1] %vm924, %v2442
    %v2445 = vmul.f32 %v1836, %v2399
    %v2446 = vmul.f32 %v1838, %v2400
    %v2447 = vadd.f32 %v2445, %v2115
    %v2448 = vadd.f32 %v2446, %v2116
    %2449 = vset.pattern.permute.xlu0 6
    %2450 = vperm.xlu0 %2449, %v1755
    %v2451 = vpop.permute.xlu0 %2450
    %2453 = vset.pattern.permute.xlu0 6
    %2454 = vperm.xlu0 %2453, %v1758
    %v2455 = vpop.permute.xlu0 %2454
    %v2457 = vmul.f32 %v2451, %v2447
    %v2458 = vmul.f32 %v2455, %v2448
    %v2459 = vsel %vm329, %v2457, 0.0
    %v2460 = vsel %vm329, %v2458, 0.0
    %v2461 = vadd.f32 %v2459, %v2460
    %v2462 = vrot.slane %v2461, 4
    %v2463 = vadd.f32 %v2461, %v2462
    %v2464 = vrot.slane %v2463, 2
    %v2465 = vadd.f32 %v2463, %v2464
    %v2466 = vrot.slane %v2465, 1
    %v2467 = vadd.f32 %v2465, %v2466
    %2468 = vst.msk [vmem:[#allocation2 + $0x6] sm:$0x1] %vm924, %v2467
    %2469 = vset.pattern.permute.xlu0 14
    %2470 = vperm.xlu0 %2469, %v1755
    %v2471 = vpop.permute.xlu0 %2470
    %2473 = vset.pattern.permute.xlu0 14
    %2474 = vperm.xlu0 %2473, %v1758
    %v2475 = vpop.permute.xlu0 %2474
    %v2477 = vmul.f32 %v2471, %v2447
    %v2478 = vmul.f32 %v2475, %v2448
    %v2479 = vsel %vm936, %v2477, 0.0
    %v2480 = vsel %vm936, %v2478, 0.0
    %v2481 = vadd.f32 %v2479, %v2480
    %v2482 = vrot.slane %v2481, 4
    %v2483 = vadd.f32 %v2481, %v2482
    %v2484 = vrot.slane %v2483, 2
    %v2485 = vadd.f32 %v2483, %v2484
    %v2486 = vrot.slane %v2485, 1
    %v2487 = vadd.f32 %v2485, %v2486
    %2489 = vrot.lane.b32.xlu0 %v2487, 64
    %v2490 = vpop.permute.xlu0 %2489
    %2492 = vst.msk [vmem:[#allocation2 + $0xe] sm:$0x1] %vm924, %v2490
    %v2493 = vmul.f32 %v1846, %v2447
    %v2494 = vmul.f32 %v1848, %v2448
    %v2495 = vadd.f32 %v2493, %v2153
    %v2496 = vadd.f32 %v2494, %v2154
    %2497 = vset.pattern.permute.xlu0 7
    %2498 = vperm.xlu0 %2497, %v1755
    %v2499 = vpop.permute.xlu0 %2498
    %2501 = vset.pattern.permute.xlu0 7
    %2502 = vperm.xlu0 %2501, %v1758
    %v2503 = vpop.permute.xlu0 %2502
    %v2505 = vmul.f32 %v2499, %v2495
    %v2506 = vmul.f32 %v2503, %v2496
    %v2507 = vsel %vm329, %v2505, 0.0
    %v2508 = vsel %vm329, %v2506, 0.0
    %v2509 = vadd.f32 %v2507, %v2508
    %v2510 = vrot.slane %v2509, 4
    %v2511 = vadd.f32 %v2509, %v2510
    %v2512 = vrot.slane %v2511, 2
    %v2513 = vadd.f32 %v2511, %v2512
    %v2514 = vrot.slane %v2513, 1
    %v2515 = vadd.f32 %v2513, %v2514
    %2516 = vst.msk [vmem:[#allocation2 + $0x7] sm:$0x1] %vm924, %v2515
    %2517 = vset.pattern.permute.xlu0 15
    %2518 = vperm.xlu0 %2517, %v1755
    %v2519 = vpop.permute.xlu0 %2518
    %2521 = vset.pattern.permute.xlu0 15
    %2522 = vperm.xlu0 %2521, %v1758
    %v2523 = vpop.permute.xlu0 %2522
    %v2525 = vmul.f32 %v2519, %v2495
    %v2526 = vmul.f32 %v2523, %v2496
    %v2527 = vsel %vm936, %v2525, 0.0
    %v2528 = vsel %vm936, %v2526, 0.0
    %v2529 = vadd.f32 %v2527, %v2528
    %v2530 = vrot.slane %v2529, 4
    %v2531 = vadd.f32 %v2529, %v2530
    %v2532 = vrot.slane %v2531, 2
    %v2533 = vadd.f32 %v2531, %v2532
    %v2534 = vrot.slane %v2533, 1
    %v2535 = vadd.f32 %v2533, %v2534
    %2537 = vrot.lane.b32.xlu0 %v2535, 64
    %v2538 = vpop.permute.xlu0 %2537
    %2540 = vst.msk [vmem:[#allocation2 + $0xf] sm:$0x1] %vm924, %v2538
    %v2541 = vld [vmem:[#allocation2] sm:$0xff]
    %v2542 = vld [vmem:[#allocation2 + $0x8] sm:$0xff]
    %s2543 = scalar_lea.vmem %s11, 1
    %v2544 = vld [vmem:[%s2543] sm:$0x1]
    %v2546 = vlaneseq
    %v2547 = vshrl.u32 %v2546, 7
    %v2548 = vsub.s32 0, %v2547
    %v2549 = vrot.slane %v2544, %v2548
    %v2551 = vmul.f32 %v1559, %v2549
    %v2552 = vmul.f32 %v1560, %v2549
    %v2553 = vadd.f32 %v2541, %v2551
    %v2554 = vadd.f32 %v2542, %v2552
    %v2555 = vxor.u32 %v1493, 2147483648
    %v2556 = vxor.u32 %v1496, 2147483648
    %v2557 = vmul.f32 %v2555, 1.442695
    %v2558 = vpow.pop %v2557
    %v2559 = vmul.f32 %v2556, 1.442695
    %v2560 = vpow.pop %v2559
    %v2561 = vadd.f32 %v2558, 1.0
    %v2562 = vadd.f32 %v2560, 1.0
    %v2563 = vrcp.pop %v2561
    %v2564 = vmul.f32 1.0, %v2563
    %v2565 = vrcp.pop %v2562
    %v2566 = vmul.f32 1.0, %v2565
    %v2567 = vmul.f32 %v1493, %v2564
    %v2568 = vmul.f32 %v1496, %v2566
    %v2569 = vmul.f32 %v2553, %v2567
    %v2570 = vmul.f32 %v2554, %v2568
    %s2571 = scalar_lea.vmem %s12, 64
    %v2572 = vld [vmem:[%s2571] sm:$0xff]
    %v2573 = vld [vmem:[%s2571 + $0x8] sm:$0xff]
    %v2574 = vld [vmem:[%s2571 + $0x10] sm:$0xff]
    %v2575 = vld [vmem:[%s2571 + $0x18] sm:$0xff]
    %v2576 = vld [vmem:[%s2571 + $0x20] sm:$0xff]
    %v2577 = vld [vmem:[%s2571 + $0x28] sm:$0xff]
    %v2578 = vld [vmem:[%s2571 + $0x30] sm:$0xff]
    %v2579 = vld [vmem:[%s2571 + $0x38] sm:$0xff]
    %v2580 = vpack.c.bf16 %v2570, %v2569
    %v2581 = vpack.c.bf16 %v2573, %v2572
    %v2582 = vpack.c.bf16 %v2575, %v2574
    %v2583 = vpack.c.bf16 %v2577, %v2576
    %v2584 = vpack.c.bf16 %v2579, %v2578
    %v2586 = vsel %vm329, %v2580, 0
    %2588 = vmatprep.subr.bf16.mxu0 0
    %2589 = vmatpush1.bf16.msra.mxu0 %v2581
    %2590 = vmatprep.subr.bf16.mxu0 0
    %2591 = vmatpush1.bf16.msra.mxu0 %v2582
    %2592 = vmatprep.subr.bf16.mxu0 0
    %2593 = vmatpush1.bf16.msra.mxu0 %v2583
    %2594 = vmatprep.subr.bf16.mxu0 0
    %2595 = vmatpush1.bf16.msra.mxu0 %v2584
    %2596 = vmatprep.subr.bf16.mxu0 0
    %2597 = vmatpush1.bf16.msra.mxu0 0
    %2598 = vmatprep.subr.bf16.mxu0 0
    %2599 = vmatpush1.bf16.msra.mxu0 0
    %2600 = vmatprep.subr.bf16.mxu0 0
    %2601 = vmatpush1.bf16.msra.mxu0 0
    %2602 = vmatprep.subr.bf16.mxu0 0
    %2603 = vmatpush1.bf16.msra.mxu0 0
    %2604 = vmatprep.subr.bf16.mxu0 0
    %2605 = vmatpush1.bf16.msra.mxu0 0
    %2606 = vmatprep.subr.bf16.mxu0 0
    %2607 = vmatpush1.bf16.msra.mxu0 0
    %2608 = vmatprep.subr.bf16.mxu0 0
    %2609 = vmatpush1.bf16.msra.mxu0 0
    %2610 = vmatprep.subr.bf16.mxu0 0
    %2611 = vmatpush1.bf16.msra.mxu0 0
    %2612 = vmatprep.subr.bf16.mxu0 0
    %2613 = vmatpush1.bf16.msra.mxu0 0
    %2614 = vmatprep.subr.bf16.mxu0 0
    %2615 = vmatpush1.bf16.msra.mxu0 0
    %2616 = vmatprep.subr.bf16.mxu0 0
    %2617 = vmatpush1.bf16.msra.mxu0 0
    %2618 = vmatprep.subr.bf16.mxu0 0
    %2619 = vmatpush1.bf16.msra.mxu0 0
    %2620 = vmatprep.mubr.bf16.mxu0 0
    %2621 = vmatmul.mubr.bf16.gmra.mrb[0].mxu0 %v2586
    %v2622 = vpop.f32.mrb[0].mxu0
    %v2623 = vadd.f32 %v1367, %v2622
    %v2624 = vpop.f32.mrb[0].mxu0
    %v2625 = vpop.f32.mrb[0].mxu0
    %v2626 = vadd.f32 %v1370, %v2625
    %v2627 = vpop.f32.mrb[0].mxu0
    %2628 = vdwg.mxu0
    %v2629 = vld [vmem:[%s13] sm:$0x1]
    %v2630 = vmul.f32 %v2623, %v2623
    %v2631 = vmul.f32 %v2626, %v2626
    %v2632 = vsel %vm122, %v2630, 0.0
    %2633 = vadd.xlane.f32.xlu0 %v2632
    %v2634 = vpop.xlane.xlu0 %2633
    %v2635 = vsel %vm122, %v2631, 0.0
    %2636 = vadd.xlane.f32.xlu0 %v2635
    %v2637 = vpop.xlane.xlu0 %2636
    %v2638 = vmul.f32 %v2634, %v129
    %v2639 = vmul.f32 %v2637, %v129
    %v2640 = vadd.f32 %v2638, 1e-05
    %v2641 = vadd.f32 %v2639, 1e-05
    %v2642 = vrsqrt.pop %v2640
    %v2643 = vrsqrt.pop %v2641
    %v2644 = vmul.f32 %v2623, %v2642
    %v2645 = vmul.f32 %v2626, %v2643
    %v2647 = vlaneseq
    %v2648 = vshrl.u32 %v2647, 7
    %v2649 = vsub.s32 0, %v2648
    %v2650 = vrot.slane %v2629, %v2649
    %v2652 = vmul.f32 %v2644, %v2650
    %v2653 = vmul.f32 %v2645, %v2650
    %2654 = vst.msk [vmem:[#allocation12] sm:$0xff] %vm122, %v2652
    %2655 = vst.msk [vmem:[#allocation12 + $0x8] sm:$0xff] %vm122, %v2653
    // Predicated region
    $region78: #{mamba_att_forward.1} parent=1 // pred_check
      _
    $region79: #{mamba_att_forward.1} parent=1 // pred_check_branch
      %2657 = sbr.rel (0) target = $region81
    $region80: #{mamba_att_forward.1} parent=1 // pred_region
      %s2659 = ssub.s32 256, 256
      %2660 = vsyncadd [#allocation5], %s2659
      %s2661 = sshll.u32 [#allocation12], 4
      %s2662 = int_to_ptr.vmem [resolvable:$true] %s2661
      %2667 = dma.vmem_to_hbm [thread:$0]  %s2662, 256, %s14, [#allocation5], 128, 128, 8
    $region81: #{mamba_att_forward.1} parent=1 // pred_fallthru
      _
    // Predicated region
    $region82: #{mamba_att_forward.1} parent=1 // pred_check
      _
    $region83: #{mamba_att_forward.1} parent=1 // pred_check_branch
      %2669 = sbr.rel (0) target = $region85
    $region84: #{mamba_att_forward.1} parent=1 // pred_region
      %2670 = dma.done [#allocation5], 256
    $region85: #{mamba_att_forward.1} parent=1 // pred_fallthru
      _
    %2671 = vsyncpa [#allocation4], 1
    %2672 = vsyncpa [#allocation7], 1
    %2673 = vsyncpa [#allocation10], 1
    %2674 = vsyncpa [#allocation5], 1

</llo_original>
